<compile_context>
chip_gen: v5e
topology: v5e:2x2
jax: 0.10.0
libtpu: 0.0.40
codegen_flags: <defaults>
</compile_context>

<pallas_src>
import numpy as np
import jax
import jax.numpy as jnp
from jax.experimental import pallas as pl
from jax.experimental.pallas import tpu as pltpu


# ---------------------------------------------------------------------------
# One-time weight preparation (pure layout/einsum work, done outside the jit).
# ---------------------------------------------------------------------------

def _banded_conv_weight(w_hwio, width, r):
    """Fold a KxK stride-1 'same' conv (HWIO weight) into per-ky banded matmul
    weights acting on a lane-flattened (rows, width*Cin) slab.

    Returns B of shape (K, width*Cin, r*width*r*(Cout//r^2)) such that
        out[h, :] = sum_ky  slab[h+ky, :] @ B[ky]
    where `slab` has K//2 zero rows above/below the image.  The kx taps and
    the W-axis zero padding live in the band; the output columns are permuted
    to (i, w_fine, c) so NHWC PixelShuffle(r) becomes a row redistribution.
    """
    K, _, cin, cout = map(int, w_hwio.shape)
    p = K // 2
    cs = cout // (r * r)
    sel = np.zeros((K, width, width), np.float32)          # sel[kx, w_src, w_dst]
    for kx in range(K):
        for w_dst in range(width):
            w_src = w_dst + kx - p
            if 0 <= w_src < width:
                sel[kx, w_src, w_dst] = 1.0
    # (K, w_src, cin, w_dst, cout)
    band = jnp.einsum("xsw,yxio->ysiwo", jnp.asarray(sel),
                      w_hwio.astype(jnp.float32))
    band = band.reshape(K, width, cin, width, cs, r, r)    # cout -> (c, i, j)
    band = band.transpose(0, 1, 2, 5, 3, 6, 4)             # cols -> (i, w_dst, j, c)
    return band.reshape(K, width * cin, r * width * r * cs)


def _shuffled_bias(b, width, r):
    """Bias row matching _banded_conv_weight's (i, w_fine, c) column order."""
    cs = int(b.shape[0]) // (r * r)
    bb = b.astype(jnp.float32).reshape(cs, r, r).transpose(1, 2, 0)   # (i, j, c)
    bb = jnp.broadcast_to(bb[:, None, :, :], (r, width, r, cs))
    return bb.reshape(1, r * width * r * cs)


def mff_prepare_params(params, H, W, scale=1):
    """Convert HWIO conv params into the fused kernel's banded weights (once)."""
    if scale != 1:
        # TODO(synk): scale != 1 needs PixelUnshuffle folded into the branch-1
        # weight (a row gather); only scale=1 is implemented in the Pallas path.
        raise NotImplementedError("fused MFF Pallas kernel supports scale=1 only")
    (w1, b1, w2, b2, w3, b3, wo, bo) = params
    base = int(w1.shape[2])
    cs = base                                   # per-branch channels after shuffle
    W2, W4 = W // 2, W // 4
    w1b = _banded_conv_weight(w1, W, 1)         # (7, W*b,    W*b)
    w2b = _banded_conv_weight(w2, W2, 2)        # (5, W2*2b,  2*W*b)
    w4b = _banded_conv_weight(w3, W4, 4)        # (3, W4*8b,  4*W*b)
    b1r = _shuffled_bias(b1, W, 1)
    b2r = _shuffled_bias(b2, W2, 2)
    b4r = _shuffled_bias(b3, W4, 4)
    # Output conv over concat([x1_, x2_, x4_], C): split its input channels by
    # branch and stack the banded weights along the contraction rows, so the
    # concatenated tensor never has to be materialised.
    wob = jnp.concatenate(
        [_banded_conv_weight(wo[:, :, k * cs:(k + 1) * cs, :], W, 1)
         for k in range(3)], axis=1)            # (3, 3*W*b, W*out_ch)
    bor = _shuffled_bias(bo, W, 1)
    return (w1b, b1r, w2b, b2r, w4b, b4r, wob, bor)


# ---------------------------------------------------------------------------
# Fused kernel
# ---------------------------------------------------------------------------

def _make_mff_kernel(H, W, cs):
    H2, W2, H4, W4 = H // 2, W // 2, H // 4, W // 4
    K1, K2, K4, KO = 7, 5, 3, 3
    P1, P2, P4, PO = 3, 2, 1, 1
    WC = W * cs

    def kernel(x1_ref, x2_ref, x4_ref,
               w1_ref, b1_ref, w2_ref, b2_ref, w4_ref, b4_ref,
               wo_ref, bo_ref, o_ref, pad1, pad2, pad4, cat):

        def zero_halo(ref, p):
            z = jnp.zeros((p, ref.shape[1]), jnp.float32)
            ref[0:p, :] = z
            ref[ref.shape[0] - p:ref.shape[0], :] = z

        # Halo = zero rows only (the kx taps / W-boundary zeros live in the
        # banded weights).  Re-zeroed every step so the kernel stays correct
        # when the batch grid is sharded across TensorCores.
        zero_halo(pad1, P1)
        zero_halo(pad2, P2)
        zero_halo(pad4, P4)
        zero_halo(cat, PO)

        # Lane-dense, lane-aligned copies of the inputs into row-padded slabs.
        pad1[P1:P1 + H, :] = x1_ref[0, :, :]
        pad2[P2:P2 + H2, :] = x2_ref[0, :, :]
        pad4[P4:P4 + H4, :] = x4_ref[0, :, :]

        def conv_rows(slab, w_ref, b_ref, K, rows):
            acc = jnp.dot(slab[0:rows, :], w_ref[0],
                          preferred_element_type=jnp.float32)
            for ky in range(1, K):               # K whole-image MXU matmuls
                acc = acc + jnp.dot(slab[ky:ky + rows, :], w_ref[ky],
                                    preferred_element_type=jnp.float32)
            return acc + b_ref[...]

        # Branch convs (+ bias + ReLU); outputs already in shuffled lane order.
        y1 = jnp.maximum(conv_rows(pad1, w1_ref, b1_ref, K1, H), 0.0)   # (H,   W*cs)
        y2 = jnp.maximum(conv_rows(pad2, w2_ref, b2_ref, K2, H2), 0.0)  # (H/2, 2*W*cs)
        y4 = jnp.maximum(conv_rows(pad4, w4_ref, b4_ref, K4, H4), 0.0)  # (H/4, 4*W*cs)

        # PixelShuffle + channel concat = pure row redistribution into `cat`
        # (the lane permutation of the shuffle was folded into the weights).
        cat[PO:PO + H, 0:WC] = y1
        for hc in range(H2):
            for i in range(2):
                r = PO + 2 * hc + i
                cat[r:r + 1, WC:2 * WC] = y2[hc:hc + 1, i * WC:(i + 1) * WC]
        for hc in range(H4):
            for i in range(4):
                r = PO + 4 * hc + i
                cat[r:r + 1, 2 * WC:3 * WC] = y4[hc:hc + 1, i * WC:(i + 1) * WC]

        # Output conv (channel concat folded into wo's stacked rows).
        out = conv_rows(cat, wo_ref, bo_ref, KO, H)      # (H, W*out_ch) lane-dense
        o_ref[0, :, :] = out.astype(o_ref.dtype)

    return kernel


@jax.jit
def mff_forward_pallas(x1, x2, x4, banded):
    """x1:(N,H,W,b)  x2:(N,H/2,W/2,2b)  x4:(N,H/4,W/4,8b)  -> (N,H,W,out_ch)."""
    (w1b, b1r, w2b, b2r, w4b, b4r, wob, bor) = banded
    N, H, W, C1 = map(int, x1.shape)
    H2, W2, C2 = map(int, x2.shape[1:])
    H4, W4, C4 = map(int, x4.shape[1:])
    cs = int(b1r.shape[1]) // W
    out_ch = int(wob.shape[2]) // W

    # Free reshapes: flatten channels into the lane dim (C is minor in NHWC).
    x1f = x1.reshape(N, H, W * C1).astype(jnp.float32)
    x2f = x2.reshape(N, H2, W2 * C2).astype(jnp.float32)
    x4f = x4.reshape(N, H4, W4 * C4).astype(jnp.float32)

    cmap3 = lambda n: (0, 0, 0)          # constant blocks -> DMA'd once
    cmap2 = lambda n: (0, 0)

    outf = pl.pallas_call(
        _make_mff_kernel(H, W, cs),
        out_shape=jax.ShapeDtypeStruct((N, H, W * out_ch), jnp.float32),
        grid=(N,),
        in_specs=[
            pl.BlockSpec((1, H, W * C1), lambda n: (n, 0, 0)),
            pl.BlockSpec((1, H2, W2 * C2), lambda n: (n, 0, 0)),
            pl.BlockSpec((1, H4, W4 * C4), lambda n: (n, 0, 0)),
            pl.BlockSpec(w1b.shape, cmap3),
            pl.BlockSpec(b1r.shape, cmap2),
            pl.BlockSpec(w2b.shape, cmap3),
            pl.BlockSpec(b2r.shape, cmap2),
            pl.BlockSpec(w4b.shape, cmap3),
            pl.BlockSpec(b4r.shape, cmap2),
            pl.BlockSpec(wob.shape, cmap3),
            pl.BlockSpec(bor.shape, cmap2),
        ],
        out_specs=pl.BlockSpec((1, H, W * out_ch), lambda n: (n, 0, 0)),
        scratch_shapes=[
            pltpu.VMEM((H + 6, W * C1), jnp.float32),       # 7x7 halo slab
            pltpu.VMEM((H2 + 4, W2 * C2), jnp.float32),     # 5x5 halo slab
            pltpu.VMEM((H4 + 2, W4 * C4), jnp.float32),     # 3x3 halo slab
            pltpu.VMEM((H + 2, 3 * W * cs), jnp.float32),   # shuffled concat slab
        ],
        compiler_params=pltpu.CompilerParams(
            dimension_semantics=("parallel",)),
    )(x1f, x2f, x4f, w1b, b1r, w2b, b2r, w4b, b4r, wob, bor)

    return outf.reshape(N, H, W, out_ch)


# ----------------------------- pure-JAX reference ---------------------------

def pixel_shuffle_nhwc(x, r):
    if r == 1:
        return x
    N, H, W, Crr = x.shape
    C = Crr // (r * r)
    x = x.reshape(N, H, W, C, r, r)
    x = x.transpose(0, 1, 4, 2, 5, 3)
    return x.reshape(N, H * r, W * r, C)


def _conv_same_ref(x, w_hwio, b, relu):
    out = jax.lax.conv_general_dilated(
        x, w_hwio, window_strides=(1, 1), padding="SAME",
        dimension_numbers=("NHWC", "HWIO", "NHWC"))
    out = out + b.reshape(1, 1, 1, -1)
    return jnp.maximum(out, 0.0) if relu else out


def mff_forward_ref(x1, x2, x4, params, scale=1):
    assert scale == 1
    (w1, b1, w2, b2, w3, b3, wo, bo) = params
    x1_ = _conv_same_ref(x1, w1, b1, True)
    x2_ = pixel_shuffle_nhwc(_conv_same_ref(x2, w2, b2, True), 2)
    x4_ = pixel_shuffle_nhwc(_conv_same_ref(x4, w3, b3, True), 4)
    xc = jnp.concatenate([x1_, x2_, x4_], axis=-1)
    return _conv_same_ref(xc, wo, bo, False)


if __name__ == "__main__":
    # Small MFF config: scale=1, base_channel=8, out_channel=4.
    N, BASE, OUT_CH, SCALE = 2, 8, 4, 1
    H = W = 16

    key = jax.random.PRNGKey(0)
    keys = jax.random.split(key, 11)

    x1 = jax.random.normal(keys[0], (N, H, W, BASE), jnp.float32)
    x2 = jax.random.normal(keys[1], (N, H // 2, W // 2, 2 * BASE), jnp.float32)
    x4 = jax.random.normal(keys[2], (N, H // 4, W // 4, 8 * BASE), jnp.float32)

    def uinit(k, shape, fan_in):
        bnd = 1.0 / (fan_in ** 0.5)
        return jax.random.uniform(k, shape, jnp.float32, -bnd, bnd)

    # HWIO conv weights, PyTorch-Conv2d-like uniform init.
    w1 = uinit(keys[3], (7, 7, BASE, BASE), BASE * 49)
    b1 = uinit(keys[4], (BASE,), BASE * 49)
    w2 = uinit(keys[5], (5, 5, 2 * BASE, 4 * BASE), 2 * BASE * 25)
    b2 = uinit(keys[6], (4 * BASE,), 2 * BASE * 25)
    w3 = uinit(keys[7], (3, 3, 8 * BASE, 16 * BASE), 8 * BASE * 9)
    b3 = uinit(keys[8], (16 * BASE,), 8 * BASE * 9)
    cin_out = 3 * SCALE * SCALE * BASE
    wo = uinit(keys[9], (3, 3, cin_out, OUT_CH), cin_out * 9)
    bo = uinit(keys[10], (OUT_CH,), cin_out * 9)

    params = (w1, b1, w2, b2, w3, b3, wo, bo)

    # Banded weights built once, outside the jitted forward.
    banded = mff_prepare_params(params, H, W, scale=SCALE)

    out = jax.block_until_ready(mff_forward_pallas(x1, x2, x4, banded))
    ref = jax.block_until_ready(mff_forward_ref(x1, x2, x4, params, scale=SCALE))

    assert out.shape == (N, H, W, OUT_CH), out.shape
    max_err = float(jnp.max(jnp.abs(out - ref)))
    assert jnp.allclose(out, ref, rtol=2e-4, atol=2e-4), max_err

    print("KERNEL_OK")
</pallas_src>

<mosaic_0001>
module attributes {stable_mosaic.version = 11 : i64} {
  func.func @kernel(%arg0: i32, %arg1: memref<1x16x128xf32, #tpu.memory_space<vmem>>, %arg2: memref<1x8x128xf32, #tpu.memory_space<vmem>>, %arg3: memref<1x4x256xf32, #tpu.memory_space<vmem>>, %arg4: memref<7x128x128xf32, #tpu.memory_space<vmem>>, %arg5: memref<1x128xf32, #tpu.memory_space<vmem>>, %arg6: memref<5x128x256xf32, #tpu.memory_space<vmem>>, %arg7: memref<1x256xf32, #tpu.memory_space<vmem>>, %arg8: memref<3x256x512xf32, #tpu.memory_space<vmem>>, %arg9: memref<1x512xf32, #tpu.memory_space<vmem>>, %arg10: memref<3x384x64xf32, #tpu.memory_space<vmem>>, %arg11: memref<1x64xf32, #tpu.memory_space<vmem>>, %arg12: memref<1x16x64xf32, #tpu.memory_space<vmem>>, %arg13: memref<22x128xf32, #tpu.memory_space<vmem>>, %arg14: memref<12x128xf32, #tpu.memory_space<vmem>>, %arg15: memref<6x256xf32, #tpu.memory_space<vmem>>, %arg16: memref<18x384xf32, #tpu.memory_space<vmem>>) attributes {dimension_semantics = [#tpu.dimension_semantics<parallel>], iteration_bounds = array<i64: 2>, scalar_prefetch = 0 : i64, scratch_operands = 4 : i64, tpu.core_type = #tpu.core_type<tc>, window_params = [{transform_indices = @transform_0, window_bounds = array<i64: 1, 16, 128>}, {transform_indices = @transform_1, window_bounds = array<i64: 1, 8, 128>}, {transform_indices = @transform_2, window_bounds = array<i64: 1, 4, 256>}, {pipeline_mode = #tpu.pipeline_mode<synchronous>, transform_indices = @transform_3, window_bounds = array<i64: 7, 128, 128>}, {pipeline_mode = #tpu.pipeline_mode<synchronous>, transform_indices = @transform_4, window_bounds = array<i64: 1, 128>}, {pipeline_mode = #tpu.pipeline_mode<synchronous>, transform_indices = @transform_5, window_bounds = array<i64: 5, 128, 256>}, {pipeline_mode = #tpu.pipeline_mode<synchronous>, transform_indices = @transform_6, window_bounds = array<i64: 1, 256>}, {pipeline_mode = #tpu.pipeline_mode<synchronous>, transform_indices = @transform_7, window_bounds = array<i64: 3, 256, 512>}, {pipeline_mode = #tpu.pipeline_mode<synchronous>, transform_indices = @transform_8, window_bounds = array<i64: 1, 512>}, {pipeline_mode = #tpu.pipeline_mode<synchronous>, transform_indices = @transform_9, window_bounds = array<i64: 3, 384, 64>}, {pipeline_mode = #tpu.pipeline_mode<synchronous>, transform_indices = @transform_10, window_bounds = array<i64: 1, 64>}, {transform_indices = @transform_11, window_bounds = array<i64: 1, 16, 64>}]} {
    %cst = arith.constant 0.000000e+00 : f32
    %0 = vector.broadcast %cst : f32 to vector<3x128xf32>
    %c0 = arith.constant 0 : index
    %c0_0 = arith.constant 0 : index
    %1 = vector.load %arg13[%c0, %c0_0] : memref<22x128xf32, #tpu.memory_space<vmem>>, vector<3x128xf32>
    tpu.vector_store %arg13[%c0, %c0_0], %0 {strides = array<i32>} : memref<22x128xf32, #tpu.memory_space<vmem>>, vector<3x128xf32>,
    %c19 = arith.constant 19 : index
    %c0_1 = arith.constant 0 : index
    %2 = vector.load %arg13[%c19, %c0_1] : memref<22x128xf32, #tpu.memory_space<vmem>>, vector<3x128xf32>
    tpu.vector_store %arg13[%c19, %c0_1], %0 {strides = array<i32>} : memref<22x128xf32, #tpu.memory_space<vmem>>, vector<3x128xf32>,
    %cst_2 = arith.constant 0.000000e+00 : f32
    %3 = vector.broadcast %cst_2 : f32 to vector<2x128xf32>
    %c0_3 = arith.constant 0 : index
    %c0_4 = arith.constant 0 : index
    %4 = vector.load %arg14[%c0_3, %c0_4] : memref<12x128xf32, #tpu.memory_space<vmem>>, vector<2x128xf32>
    tpu.vector_store %arg14[%c0_3, %c0_4], %3 {strides = array<i32>} : memref<12x128xf32, #tpu.memory_space<vmem>>, vector<2x128xf32>,
    %c10 = arith.constant 10 : index
    %c0_5 = arith.constant 0 : index
    %5 = vector.load %arg14[%c10, %c0_5] : memref<12x128xf32, #tpu.memory_space<vmem>>, vector<2x128xf32>
    tpu.vector_store %arg14[%c10, %c0_5], %3 {strides = array<i32>} : memref<12x128xf32, #tpu.memory_space<vmem>>, vector<2x128xf32>,
    %cst_6 = arith.constant 0.000000e+00 : f32
    %6 = vector.broadcast %cst_6 : f32 to vector<1x256xf32>
    %c0_7 = arith.constant 0 : index
    %c0_8 = arith.constant 0 : index
    %7 = vector.load %arg15[%c0_7, %c0_8] : memref<6x256xf32, #tpu.memory_space<vmem>>, vector<1x256xf32>
    tpu.vector_store %arg15[%c0_7, %c0_8], %6 {strides = array<i32>} : memref<6x256xf32, #tpu.memory_space<vmem>>, vector<1x256xf32>,
    %c5 = arith.constant 5 : index
    %c0_9 = arith.constant 0 : index
    %8 = vector.load %arg15[%c5, %c0_9] : memref<6x256xf32, #tpu.memory_space<vmem>>, vector<1x256xf32>
    tpu.vector_store %arg15[%c5, %c0_9], %6 {strides = array<i32>} : memref<6x256xf32, #tpu.memory_space<vmem>>, vector<1x256xf32>,
    %cst_10 = arith.constant 0.000000e+00 : f32
    %9 = vector.broadcast %cst_10 : f32 to vector<1x384xf32>
    %c0_11 = arith.constant 0 : index
    %c0_12 = arith.constant 0 : index
    %10 = vector.load %arg16[%c0_11, %c0_12] : memref<18x384xf32, #tpu.memory_space<vmem>>, vector<1x384xf32>
    tpu.vector_store %arg16[%c0_11, %c0_12], %9 {strides = array<i32>} : memref<18x384xf32, #tpu.memory_space<vmem>>, vector<1x384xf32>,
    %c17 = arith.constant 17 : index
    %c0_13 = arith.constant 0 : index
    %11 = vector.load %arg16[%c17, %c0_13] : memref<18x384xf32, #tpu.memory_space<vmem>>, vector<1x384xf32>
    tpu.vector_store %arg16[%c17, %c0_13], %9 {strides = array<i32>} : memref<18x384xf32, #tpu.memory_space<vmem>>, vector<1x384xf32>,
    %c0_14 = arith.constant 0 : index
    %c0_15 = arith.constant 0 : index
    %c0_16 = arith.constant 0 : index
    %12 = vector.load %arg1[%c0_14, %c0_15, %c0_16] : memref<1x16x128xf32, #tpu.memory_space<vmem>>, vector<1x16x128xf32>
    %13 = vector.shape_cast %12 : vector<1x16x128xf32> to vector<16x128xf32>
    %c3 = arith.constant 3 : index
    %c0_17 = arith.constant 0 : index
    %14 = vector.load %arg13[%c3, %c0_17] : memref<22x128xf32, #tpu.memory_space<vmem>>, vector<16x128xf32>
    tpu.vector_store %arg13[%c3, %c0_17], %13 {strides = array<i32>} : memref<22x128xf32, #tpu.memory_space<vmem>>, vector<16x128xf32>,
    %c0_18 = arith.constant 0 : index
    %c0_19 = arith.constant 0 : index
    %c0_20 = arith.constant 0 : index
    %15 = vector.load %arg2[%c0_18, %c0_19, %c0_20] : memref<1x8x128xf32, #tpu.memory_space<vmem>>, vector<1x8x128xf32>
    %16 = vector.shape_cast %15 : vector<1x8x128xf32> to vector<8x128xf32>
    %c2 = arith.constant 2 : index
    %c0_21 = arith.constant 0 : index
    %17 = vector.load %arg14[%c2, %c0_21] : memref<12x128xf32, #tpu.memory_space<vmem>>, vector<8x128xf32>
    tpu.vector_store %arg14[%c2, %c0_21], %16 {strides = array<i32>} : memref<12x128xf32, #tpu.memory_space<vmem>>, vector<8x128xf32>,
    %c0_22 = arith.constant 0 : index
    %c0_23 = arith.constant 0 : index
    %c0_24 = arith.constant 0 : index
    %18 = vector.load %arg3[%c0_22, %c0_23, %c0_24] : memref<1x4x256xf32, #tpu.memory_space<vmem>>, vector<1x4x256xf32>
    %19 = vector.shape_cast %18 : vector<1x4x256xf32> to vector<4x256xf32>
    %c1 = arith.constant 1 : index
    %c0_25 = arith.constant 0 : index
    %20 = vector.load %arg15[%c1, %c0_25] : memref<6x256xf32, #tpu.memory_space<vmem>>, vector<4x256xf32>
    tpu.vector_store %arg15[%c1, %c0_25], %19 {strides = array<i32>} : memref<6x256xf32, #tpu.memory_space<vmem>>, vector<4x256xf32>,
    %c0_26 = arith.constant 0 : index
    %c0_27 = arith.constant 0 : index
    %21 = vector.load %arg13[%c0_26, %c0_27] : memref<22x128xf32, #tpu.memory_space<vmem>>, vector<16x128xf32>
    %c0_28 = arith.constant 0 : index
    %c0_29 = arith.constant 0 : index
    %c0_30 = arith.constant 0 : index
    %22 = vector.load %arg4[%c0_28, %c0_29, %c0_30] : memref<7x128x128xf32, #tpu.memory_space<vmem>>, vector<1x128x128xf32>
    %23 = vector.shape_cast %22 : vector<1x128x128xf32> to vector<128x128xf32>
    %cst_31 = arith.constant dense<0.000000e+00> : vector<16x128xf32>
    %24 = tpu.matmul %21, %23, %cst_31 {dimension_numbers = #tpu.dot_dimension_numbers<[1], [0], [0], [1], [0, 0, 1, 1], [], []>} : vector<16x128xf32>, vector<128x128xf32>, vector<16x128xf32> -> vector<16x128xf32>
    %c1_32 = arith.constant 1 : index
    %c0_33 = arith.constant 0 : index
    %25 = vector.load %arg13[%c1_32, %c0_33] : memref<22x128xf32, #tpu.memory_space<vmem>>, vector<16x128xf32>
    %c1_34 = arith.constant 1 : index
    %c0_35 = arith.constant 0 : index
    %c0_36 = arith.constant 0 : index
    %26 = vector.load %arg4[%c1_34, %c0_35, %c0_36] : memref<7x128x128xf32, #tpu.memory_space<vmem>>, vector<1x128x128xf32>
    %27 = vector.shape_cast %26 : vector<1x128x128xf32> to vector<128x128xf32>
    %cst_37 = arith.constant dense<0.000000e+00> : vector<16x128xf32>
    %28 = tpu.matmul %25, %27, %cst_37 {dimension_numbers = #tpu.dot_dimension_numbers<[1], [0], [0], [1], [0, 0, 1, 1], [], []>} : vector<16x128xf32>, vector<128x128xf32>, vector<16x128xf32> -> vector<16x128xf32>
    %29 = arith.addf %24, %28 : vector<16x128xf32>
    %c2_38 = arith.constant 2 : index
    %c0_39 = arith.constant 0 : index
    %30 = vector.load %arg13[%c2_38, %c0_39] : memref<22x128xf32, #tpu.memory_space<vmem>>, vector<16x128xf32>
    %c2_40 = arith.constant 2 : index
    %c0_41 = arith.constant 0 : index
    %c0_42 = arith.constant 0 : index
    %31 = vector.load %arg4[%c2_40, %c0_41, %c0_42] : memref<7x128x128xf32, #tpu.memory_space<vmem>>, vector<1x128x128xf32>
    %32 = vector.shape_cast %31 : vector<1x128x128xf32> to vector<128x128xf32>
    %cst_43 = arith.constant dense<0.000000e+00> : vector<16x128xf32>
    %33 = tpu.matmul %30, %32, %cst_43 {dimension_numbers = #tpu.dot_dimension_numbers<[1], [0], [0], [1], [0, 0, 1, 1], [], []>} : vector<16x128xf32>, vector<128x128xf32>, vector<16x128xf32> -> vector<16x128xf32>
    %34 = arith.addf %29, %33 : vector<16x128xf32>
    %c3_44 = arith.constant 3 : index
    %c0_45 = arith.constant 0 : index
    %35 = vector.load %arg13[%c3_44, %c0_45] : memref<22x128xf32, #tpu.memory_space<vmem>>, vector<16x128xf32>
    %c3_46 = arith.constant 3 : index
    %c0_47 = arith.constant 0 : index
    %c0_48 = arith.constant 0 : index
    %36 = vector.load %arg4[%c3_46, %c0_47, %c0_48] : memref<7x128x128xf32, #tpu.memory_space<vmem>>, vector<1x128x128xf32>
    %37 = vector.shape_cast %36 : vector<1x128x128xf32> to vector<128x128xf32>
    %cst_49 = arith.constant dense<0.000000e+00> : vector<16x128xf32>
    %38 = tpu.matmul %35, %37, %cst_49 {dimension_numbers = #tpu.dot_dimension_numbers<[1], [0], [0], [1], [0, 0, 1, 1], [], []>} : vector<16x128xf32>, vector<128x128xf32>, vector<16x128xf32> -> vector<16x128xf32>
    %39 = arith.addf %34, %38 : vector<16x128xf32>
    %c4 = arith.constant 4 : index
    %c0_50 = arith.constant 0 : index
    %40 = vector.load %arg13[%c4, %c0_50] : memref<22x128xf32, #tpu.memory_space<vmem>>, vector<16x128xf32>
    %c4_51 = arith.constant 4 : index
    %c0_52 = arith.constant 0 : index
    %c0_53 = arith.constant 0 : index
    %41 = vector.load %arg4[%c4_51, %c0_52, %c0_53] : memref<7x128x128xf32, #tpu.memory_space<vmem>>, vector<1x128x128xf32>
    %42 = vector.shape_cast %41 : vector<1x128x128xf32> to vector<128x128xf32>
    %cst_54 = arith.constant dense<0.000000e+00> : vector<16x128xf32>
    %43 = tpu.matmul %40, %42, %cst_54 {dimension_numbers = #tpu.dot_dimension_numbers<[1], [0], [0], [1], [0, 0, 1, 1], [], []>} : vector<16x128xf32>, vector<128x128xf32>, vector<16x128xf32> -> vector<16x128xf32>
    %44 = arith.addf %39, %43 : vector<16x128xf32>
    %c5_55 = arith.constant 5 : index
    %c0_56 = arith.constant 0 : index
    %45 = vector.load %arg13[%c5_55, %c0_56] : memref<22x128xf32, #tpu.memory_space<vmem>>, vector<16x128xf32>
    %c5_57 = arith.constant 5 : index
    %c0_58 = arith.constant 0 : index
    %c0_59 = arith.constant 0 : index
    %46 = vector.load %arg4[%c5_57, %c0_58, %c0_59] : memref<7x128x128xf32, #tpu.memory_space<vmem>>, vector<1x128x128xf32>
    %47 = vector.shape_cast %46 : vector<1x128x128xf32> to vector<128x128xf32>
    %cst_60 = arith.constant dense<0.000000e+00> : vector<16x128xf32>
    %48 = tpu.matmul %45, %47, %cst_60 {dimension_numbers = #tpu.dot_dimension_numbers<[1], [0], [0], [1], [0, 0, 1, 1], [], []>} : vector<16x128xf32>, vector<128x128xf32>, vector<16x128xf32> -> vector<16x128xf32>
    %49 = arith.addf %44, %48 : vector<16x128xf32>
    %c6 = arith.constant 6 : index
    %c0_61 = arith.constant 0 : index
    %50 = vector.load %arg13[%c6, %c0_61] : memref<22x128xf32, #tpu.memory_space<vmem>>, vector<16x128xf32>
    %c6_62 = arith.constant 6 : index
    %c0_63 = arith.constant 0 : index
    %c0_64 = arith.constant 0 : index
    %51 = vector.load %arg4[%c6_62, %c0_63, %c0_64] : memref<7x128x128xf32, #tpu.memory_space<vmem>>, vector<1x128x128xf32>
    %52 = vector.shape_cast %51 : vector<1x128x128xf32> to vector<128x128xf32>
    %cst_65 = arith.constant dense<0.000000e+00> : vector<16x128xf32>
    %53 = tpu.matmul %50, %52, %cst_65 {dimension_numbers = #tpu.dot_dimension_numbers<[1], [0], [0], [1], [0, 0, 1, 1], [], []>} : vector<16x128xf32>, vector<128x128xf32>, vector<16x128xf32> -> vector<16x128xf32>
    %54 = arith.addf %49, %53 : vector<16x128xf32>
    %c0_66 = arith.constant 0 : index
    %c0_67 = arith.constant 0 : index
    %55 = vector.load %arg5[%c0_66, %c0_67] : memref<1x128xf32, #tpu.memory_space<vmem>>, vector<1x128xf32>
    %56 = vector.broadcast %55 : vector<1x128xf32> to vector<16x128xf32>
    %57 = arith.addf %54, %56 : vector<16x128xf32>
    %cst_68 = arith.constant 0.000000e+00 : f32
    %58 = vector.broadcast %cst_68 : f32 to vector<16x128xf32>
    %59 = arith.maximumf %57, %58 : vector<16x128xf32>
    %c0_69 = arith.constant 0 : index
    %c0_70 = arith.constant 0 : index
    %60 = vector.load %arg14[%c0_69, %c0_70] : memref<12x128xf32, #tpu.memory_space<vmem>>, vector<8x128xf32>
    %c0_71 = arith.constant 0 : index
    %c0_72 = arith.constant 0 : index
    %c0_73 = arith.constant 0 : index
    %61 = vector.load %arg6[%c0_71, %c0_72, %c0_73] : memref<5x128x256xf32, #tpu.memory_space<vmem>>, vector<1x128x256xf32>
    %62 = vector.shape_cast %61 : vector<1x128x256xf32> to vector<128x256xf32>
    %cst_74 = arith.constant dense<0.000000e+00> : vector<8x256xf32>
    %63 = tpu.matmul %60, %62, %cst_74 {dimension_numbers = #tpu.dot_dimension_numbers<[1], [0], [0], [1], [0, 0, 1, 1], [], []>} : vector<8x128xf32>, vector<128x256xf32>, vector<8x256xf32> -> vector<8x256xf32>
    %c1_75 = arith.constant 1 : index
    %c0_76 = arith.constant 0 : index
    %64 = vector.load %arg14[%c1_75, %c0_76] : memref<12x128xf32, #tpu.memory_space<vmem>>, vector<8x128xf32>
    %c1_77 = arith.constant 1 : index
    %c0_78 = arith.constant 0 : index
    %c0_79 = arith.constant 0 : index
    %65 = vector.load %arg6[%c1_77, %c0_78, %c0_79] : memref<5x128x256xf32, #tpu.memory_space<vmem>>, vector<1x128x256xf32>
    %66 = vector.shape_cast %65 : vector<1x128x256xf32> to vector<128x256xf32>
    %cst_80 = arith.constant dense<0.000000e+00> : vector<8x256xf32>
    %67 = tpu.matmul %64, %66, %cst_80 {dimension_numbers = #tpu.dot_dimension_numbers<[1], [0], [0], [1], [0, 0, 1, 1], [], []>} : vector<8x128xf32>, vector<128x256xf32>, vector<8x256xf32> -> vector<8x256xf32>
    %68 = arith.addf %63, %67 : vector<8x256xf32>
    %c2_81 = arith.constant 2 : index
    %c0_82 = arith.constant 0 : index
    %69 = vector.load %arg14[%c2_81, %c0_82] : memref<12x128xf32, #tpu.memory_space<vmem>>, vector<8x128xf32>
    %c2_83 = arith.constant 2 : index
    %c0_84 = arith.constant 0 : index
    %c0_85 = arith.constant 0 : index
    %70 = vector.load %arg6[%c2_83, %c0_84, %c0_85] : memref<5x128x256xf32, #tpu.memory_space<vmem>>, vector<1x128x256xf32>
    %71 = vector.shape_cast %70 : vector<1x128x256xf32> to vector<128x256xf32>
    %cst_86 = arith.constant dense<0.000000e+00> : vector<8x256xf32>
    %72 = tpu.matmul %69, %71, %cst_86 {dimension_numbers = #tpu.dot_dimension_numbers<[1], [0], [0], [1], [0, 0, 1, 1], [], []>} : vector<8x128xf32>, vector<128x256xf32>, vector<8x256xf32> -> vector<8x256xf32>
    %73 = arith.addf %68, %72 : vector<8x256xf32>
    %c3_87 = arith.constant 3 : index
    %c0_88 = arith.constant 0 : index
    %74 = vector.load %arg14[%c3_87, %c0_88] : memref<12x128xf32, #tpu.memory_space<vmem>>, vector<8x128xf32>
    %c3_89 = arith.constant 3 : index
    %c0_90 = arith.constant 0 : index
    %c0_91 = arith.constant 0 : index
    %75 = vector.load %arg6[%c3_89, %c0_90, %c0_91] : memref<5x128x256xf32, #tpu.memory_space<vmem>>, vector<1x128x256xf32>
    %76 = vector.shape_cast %75 : vector<1x128x256xf32> to vector<128x256xf32>
    %cst_92 = arith.constant dense<0.000000e+00> : vector<8x256xf32>
    %77 = tpu.matmul %74, %76, %cst_92 {dimension_numbers = #tpu.dot_dimension_numbers<[1], [0], [0], [1], [0, 0, 1, 1], [], []>} : vector<8x128xf32>, vector<128x256xf32>, vector<8x256xf32> -> vector<8x256xf32>
    %78 = arith.addf %73, %77 : vector<8x256xf32>
    %c4_93 = arith.constant 4 : index
    %c0_94 = arith.constant 0 : index
    %79 = vector.load %arg14[%c4_93, %c0_94] : memref<12x128xf32, #tpu.memory_space<vmem>>, vector<8x128xf32>
    %c4_95 = arith.constant 4 : index
    %c0_96 = arith.constant 0 : index
    %c0_97 = arith.constant 0 : index
    %80 = vector.load %arg6[%c4_95, %c0_96, %c0_97] : memref<5x128x256xf32, #tpu.memory_space<vmem>>, vector<1x128x256xf32>
    %81 = vector.shape_cast %80 : vector<1x128x256xf32> to vector<128x256xf32>
    %cst_98 = arith.constant dense<0.000000e+00> : vector<8x256xf32>
    %82 = tpu.matmul %79, %81, %cst_98 {dimension_numbers = #tpu.dot_dimension_numbers<[1], [0], [0], [1], [0, 0, 1, 1], [], []>} : vector<8x128xf32>, vector<128x256xf32>, vector<8x256xf32> -> vector<8x256xf32>
    %83 = arith.addf %78, %82 : vector<8x256xf32>
    %c0_99 = arith.constant 0 : index
    %c0_100 = arith.constant 0 : index
    %84 = vector.load %arg7[%c0_99, %c0_100] : memref<1x256xf32, #tpu.memory_space<vmem>>, vector<1x256xf32>
    %85 = vector.broadcast %84 : vector<1x256xf32> to vector<8x256xf32>
    %86 = arith.addf %83, %85 : vector<8x256xf32>
    %cst_101 = arith.constant 0.000000e+00 : f32
    %87 = vector.broadcast %cst_101 : f32 to vector<8x256xf32>
    %88 = arith.maximumf %86, %87 : vector<8x256xf32>
    %c0_102 = arith.constant 0 : index
    %c0_103 = arith.constant 0 : index
    %89 = vector.load %arg15[%c0_102, %c0_103] : memref<6x256xf32, #tpu.memory_space<vmem>>, vector<4x256xf32>
    %c0_104 = arith.constant 0 : index
    %c0_105 = arith.constant 0 : index
    %c0_106 = arith.constant 0 : index
    %90 = vector.load %arg8[%c0_104, %c0_105, %c0_106] : memref<3x256x512xf32, #tpu.memory_space<vmem>>, vector<1x256x512xf32>
    %91 = vector.shape_cast %90 : vector<1x256x512xf32> to vector<256x512xf32>
    %cst_107 = arith.constant dense<0.000000e+00> : vector<4x512xf32>
    %92 = tpu.matmul %89, %91, %cst_107 {dimension_numbers = #tpu.dot_dimension_numbers<[1], [0], [0], [1], [0, 0, 1, 1], [], []>} : vector<4x256xf32>, vector<256x512xf32>, vector<4x512xf32> -> vector<4x512xf32>
    %c1_108 = arith.constant 1 : index
    %c0_109 = arith.constant 0 : index
    %93 = vector.load %arg15[%c1_108, %c0_109] : memref<6x256xf32, #tpu.memory_space<vmem>>, vector<4x256xf32>
    %c1_110 = arith.constant 1 : index
    %c0_111 = arith.constant 0 : index
    %c0_112 = arith.constant 0 : index
    %94 = vector.load %arg8[%c1_110, %c0_111, %c0_112] : memref<3x256x512xf32, #tpu.memory_space<vmem>>, vector<1x256x512xf32>
    %95 = vector.shape_cast %94 : vector<1x256x512xf32> to vector<256x512xf32>
    %cst_113 = arith.constant dense<0.000000e+00> : vector<4x512xf32>
    %96 = tpu.matmul %93, %95, %cst_113 {dimension_numbers = #tpu.dot_dimension_numbers<[1], [0], [0], [1], [0, 0, 1, 1], [], []>} : vector<4x256xf32>, vector<256x512xf32>, vector<4x512xf32> -> vector<4x512xf32>
    %97 = arith.addf %92, %96 : vector<4x512xf32>
    %c2_114 = arith.constant 2 : index
    %c0_115 = arith.constant 0 : index
    %98 = vector.load %arg15[%c2_114, %c0_115] : memref<6x256xf32, #tpu.memory_space<vmem>>, vector<4x256xf32>
    %c2_116 = arith.constant 2 : index
    %c0_117 = arith.constant 0 : index
    %c0_118 = arith.constant 0 : index
    %99 = vector.load %arg8[%c2_116, %c0_117, %c0_118] : memref<3x256x512xf32, #tpu.memory_space<vmem>>, vector<1x256x512xf32>
    %100 = vector.shape_cast %99 : vector<1x256x512xf32> to vector<256x512xf32>
    %cst_119 = arith.constant dense<0.000000e+00> : vector<4x512xf32>
    %101 = tpu.matmul %98, %100, %cst_119 {dimension_numbers = #tpu.dot_dimension_numbers<[1], [0], [0], [1], [0, 0, 1, 1], [], []>} : vector<4x256xf32>, vector<256x512xf32>, vector<4x512xf32> -> vector<4x512xf32>
    %102 = arith.addf %97, %101 : vector<4x512xf32>
    %c0_120 = arith.constant 0 : index
    %c0_121 = arith.constant 0 : index
    %103 = vector.load %arg9[%c0_120, %c0_121] : memref<1x512xf32, #tpu.memory_space<vmem>>, vector<1x512xf32>
    %104 = vector.broadcast %103 : vector<1x512xf32> to vector<4x512xf32>
    %105 = arith.addf %102, %104 : vector<4x512xf32>
    %cst_122 = arith.constant 0.000000e+00 : f32
    %106 = vector.broadcast %cst_122 : f32 to vector<4x512xf32>
    %107 = arith.maximumf %105, %106 : vector<4x512xf32>
    %c1_123 = arith.constant 1 : index
    %c0_124 = arith.constant 0 : index
    %108 = vector.load %arg16[%c1_123, %c0_124] : memref<18x384xf32, #tpu.memory_space<vmem>>, vector<16x128xf32>
    tpu.vector_store %arg16[%c1_123, %c0_124], %59 {strides = array<i32>} : memref<18x384xf32, #tpu.memory_space<vmem>>, vector<16x128xf32>,
    %109 = vector.extract_strided_slice %88 {offsets = [0, 0], sizes = [1, 128], strides = [1, 1]} : vector<8x256xf32> to vector<1x128xf32>
    %c1_125 = arith.constant 1 : index
    %c128 = arith.constant 128 : index
    %110 = vector.load %arg16[%c1_125, %c128] : memref<18x384xf32, #tpu.memory_space<vmem>>, vector<1x128xf32>
    tpu.vector_store %arg16[%c1_125, %c128], %109 {strides = array<i32>} : memref<18x384xf32, #tpu.memory_space<vmem>>, vector<1x128xf32>,
    %111 = vector.extract_strided_slice %88 {offsets = [0, 128], sizes = [1, 128], strides = [1, 1]} : vector<8x256xf32> to vector<1x128xf32>
    %c2_126 = arith.constant 2 : index
    %c128_127 = arith.constant 128 : index
    %112 = vector.load %arg16[%c2_126, %c128_127] : memref<18x384xf32, #tpu.memory_space<vmem>>, vector<1x128xf32>
    tpu.vector_store %arg16[%c2_126, %c128_127], %111 {strides = array<i32>} : memref<18x384xf32, #tpu.memory_space<vmem>>, vector<1x128xf32>,
    %113 = vector.extract_strided_slice %88 {offsets = [1, 0], sizes = [1, 128], strides = [1, 1]} : vector<8x256xf32> to vector<1x128xf32>
    %c3_128 = arith.constant 3 : index
    %c128_129 = arith.constant 128 : index
    %114 = vector.load %arg16[%c3_128, %c128_129] : memref<18x384xf32, #tpu.memory_space<vmem>>, vector<1x128xf32>
    tpu.vector_store %arg16[%c3_128, %c128_129], %113 {strides = array<i32>} : memref<18x384xf32, #tpu.memory_space<vmem>>, vector<1x128xf32>,
    %115 = vector.extract_strided_slice %88 {offsets = [1, 128], sizes = [1, 128], strides = [1, 1]} : vector<8x256xf32> to vector<1x128xf32>
    %c4_130 = arith.constant 4 : index
    %c128_131 = arith.constant 128 : index
    %116 = vector.load %arg16[%c4_130, %c128_131] : memref<18x384xf32, #tpu.memory_space<vmem>>, vector<1x128xf32>
    tpu.vector_store %arg16[%c4_130, %c128_131], %115 {strides = array<i32>} : memref<18x384xf32, #tpu.memory_space<vmem>>, vector<1x128xf32>,
    %117 = vector.extract_strided_slice %88 {offsets = [2, 0], sizes = [1, 128], strides = [1, 1]} : vector<8x256xf32> to vector<1x128xf32>
    %c5_132 = arith.constant 5 : index
    %c128_133 = arith.constant 128 : index
    %118 = vector.load %arg16[%c5_132, %c128_133] : memref<18x384xf32, #tpu.memory_space<vmem>>, vector<1x128xf32>
    tpu.vector_store %arg16[%c5_132, %c128_133], %117 {strides = array<i32>} : memref<18x384xf32, #tpu.memory_space<vmem>>, vector<1x128xf32>,
    %119 = vector.extract_strided_slice %88 {offsets = [2, 128], sizes = [1, 128], strides = [1, 1]} : vector<8x256xf32> to vector<1x128xf32>
    %c6_134 = arith.constant 6 : index
    %c128_135 = arith.constant 128 : index
    %120 = vector.load %arg16[%c6_134, %c128_135] : memref<18x384xf32, #tpu.memory_space<vmem>>, vector<1x128xf32>
    tpu.vector_store %arg16[%c6_134, %c128_135], %119 {strides = array<i32>} : memref<18x384xf32, #tpu.memory_space<vmem>>, vector<1x128xf32>,
    %121 = vector.extract_strided_slice %88 {offsets = [3, 0], sizes = [1, 128], strides = [1, 1]} : vector<8x256xf32> to vector<1x128xf32>
    %c7 = arith.constant 7 : index
    %c128_136 = arith.constant 128 : index
    %122 = vector.load %arg16[%c7, %c128_136] : memref<18x384xf32, #tpu.memory_space<vmem>>, vector<1x128xf32>
    tpu.vector_store %arg16[%c7, %c128_136], %121 {strides = array<i32>} : memref<18x384xf32, #tpu.memory_space<vmem>>, vector<1x128xf32>,
    %123 = vector.extract_strided_slice %88 {offsets = [3, 128], sizes = [1, 128], strides = [1, 1]} : vector<8x256xf32> to vector<1x128xf32>
    %c8 = arith.constant 8 : index
    %c128_137 = arith.constant 128 : index
    %124 = vector.load %arg16[%c8, %c128_137] : memref<18x384xf32, #tpu.memory_space<vmem>>, vector<1x128xf32>
    tpu.vector_store %arg16[%c8, %c128_137], %123 {strides = array<i32>} : memref<18x384xf32, #tpu.memory_space<vmem>>, vector<1x128xf32>,
    %125 = vector.extract_strided_slice %88 {offsets = [4, 0], sizes = [1, 128], strides = [1, 1]} : vector<8x256xf32> to vector<1x128xf32>
    %c9 = arith.constant 9 : index
    %c128_138 = arith.constant 128 : index
    %126 = vector.load %arg16[%c9, %c128_138] : memref<18x384xf32, #tpu.memory_space<vmem>>, vector<1x128xf32>
    tpu.vector_store %arg16[%c9, %c128_138], %125 {strides = array<i32>} : memref<18x384xf32, #tpu.memory_space<vmem>>, vector<1x128xf32>,
    %127 = vector.extract_strided_slice %88 {offsets = [4, 128], sizes = [1, 128], strides = [1, 1]} : vector<8x256xf32> to vector<1x128xf32>
    %c10_139 = arith.constant 10 : index
    %c128_140 = arith.constant 128 : index
    %128 = vector.load %arg16[%c10_139, %c128_140] : memref<18x384xf32, #tpu.memory_space<vmem>>, vector<1x128xf32>
    tpu.vector_store %arg16[%c10_139, %c128_140], %127 {strides = array<i32>} : memref<18x384xf32, #tpu.memory_space<vmem>>, vector<1x128xf32>,
    %129 = vector.extract_strided_slice %88 {offsets = [5, 0], sizes = [1, 128], strides = [1, 1]} : vector<8x256xf32> to vector<1x128xf32>
    %c11 = arith.constant 11 : index
    %c128_141 = arith.constant 128 : index
    %130 = vector.load %arg16[%c11, %c128_141] : memref<18x384xf32, #tpu.memory_space<vmem>>, vector<1x128xf32>
    tpu.vector_store %arg16[%c11, %c128_141], %129 {strides = array<i32>} : memref<18x384xf32, #tpu.memory_space<vmem>>, vector<1x128xf32>,
    %131 = vector.extract_strided_slice %88 {offsets = [5, 128], sizes = [1, 128], strides = [1, 1]} : vector<8x256xf32> to vector<1x128xf32>
    %c12 = arith.constant 12 : index
    %c128_142 = arith.constant 128 : index
    %132 = vector.load %arg16[%c12, %c128_142] : memref<18x384xf32, #tpu.memory_space<vmem>>, vector<1x128xf32>
    tpu.vector_store %arg16[%c12, %c128_142], %131 {strides = array<i32>} : memref<18x384xf32, #tpu.memory_space<vmem>>, vector<1x128xf32>,
    %133 = vector.extract_strided_slice %88 {offsets = [6, 0], sizes = [1, 128], strides = [1, 1]} : vector<8x256xf32> to vector<1x128xf32>
    %c13 = arith.constant 13 : index
    %c128_143 = arith.constant 128 : index
    %134 = vector.load %arg16[%c13, %c128_143] : memref<18x384xf32, #tpu.memory_space<vmem>>, vector<1x128xf32>
    tpu.vector_store %arg16[%c13, %c128_143], %133 {strides = array<i32>} : memref<18x384xf32, #tpu.memory_space<vmem>>, vector<1x128xf32>,
    %135 = vector.extract_strided_slice %88 {offsets = [6, 128], sizes = [1, 128], strides = [1, 1]} : vector<8x256xf32> to vector<1x128xf32>
    %c14 = arith.constant 14 : index
    %c128_144 = arith.constant 128 : index
    %136 = vector.load %arg16[%c14, %c128_144] : memref<18x384xf32, #tpu.memory_space<vmem>>, vector<1x128xf32>
    tpu.vector_store %arg16[%c14, %c128_144], %135 {strides = array<i32>} : memref<18x384xf32, #tpu.memory_space<vmem>>, vector<1x128xf32>,
    %137 = vector.extract_strided_slice %88 {offsets = [7, 0], sizes = [1, 128], strides = [1, 1]} : vector<8x256xf32> to vector<1x128xf32>
    %c15 = arith.constant 15 : index
    %c128_145 = arith.constant 128 : index
    %138 = vector.load %arg16[%c15, %c128_145] : memref<18x384xf32, #tpu.memory_space<vmem>>, vector<1x128xf32>
    tpu.vector_store %arg16[%c15, %c128_145], %137 {strides = array<i32>} : memref<18x384xf32, #tpu.memory_space<vmem>>, vector<1x128xf32>,
    %139 = vector.extract_strided_slice %88 {offsets = [7, 128], sizes = [1, 128], strides = [1, 1]} : vector<8x256xf32> to vector<1x128xf32>
    %c16 = arith.constant 16 : index
    %c128_146 = arith.constant 128 : index
    %140 = vector.load %arg16[%c16, %c128_146] : memref<18x384xf32, #tpu.memory_space<vmem>>, vector<1x128xf32>
    tpu.vector_store %arg16[%c16, %c128_146], %139 {strides = array<i32>} : memref<18x384xf32, #tpu.memory_space<vmem>>, vector<1x128xf32>,
    %141 = vector.extract_strided_slice %107 {offsets = [0, 0], sizes = [1, 128], strides = [1, 1]} : vector<4x512xf32> to vector<1x128xf32>
    %c1_147 = arith.constant 1 : index
    %c256 = arith.constant 256 : index
    %142 = vector.load %arg16[%c1_147, %c256] : memref<18x384xf32, #tpu.memory_space<vmem>>, vector<1x128xf32>
    tpu.vector_store %arg16[%c1_147, %c256], %141 {strides = array<i32>} : memref<18x384xf32, #tpu.memory_space<vmem>>, vector<1x128xf32>,
    %143 = vector.extract_strided_slice %107 {offsets = [0, 128], sizes = [1, 128], strides = [1, 1]} : vector<4x512xf32> to vector<1x128xf32>
    %c2_148 = arith.constant 2 : index
    %c256_149 = arith.constant 256 : index
    %144 = vector.load %arg16[%c2_148, %c256_149] : memref<18x384xf32, #tpu.memory_space<vmem>>, vector<1x128xf32>
    tpu.vector_store %arg16[%c2_148, %c256_149], %143 {strides = array<i32>} : memref<18x384xf32, #tpu.memory_space<vmem>>, vector<1x128xf32>,
    %145 = vector.extract_strided_slice %107 {offsets = [0, 256], sizes = [1, 128], strides = [1, 1]} : vector<4x512xf32> to vector<1x128xf32>
    %c3_150 = arith.constant 3 : index
    %c256_151 = arith.constant 256 : index
    %146 = vector.load %arg16[%c3_150, %c256_151] : memref<18x384xf32, #tpu.memory_space<vmem>>, vector<1x128xf32>
    tpu.vector_store %arg16[%c3_150, %c256_151], %145 {strides = array<i32>} : memref<18x384xf32, #tpu.memory_space<vmem>>, vector<1x128xf32>,
    %147 = vector.extract_strided_slice %107 {offsets = [0, 384], sizes = [1, 128], strides = [1, 1]} : vector<4x512xf32> to vector<1x128xf32>
    %c4_152 = arith.constant 4 : index
    %c256_153 = arith.constant 256 : index
    %148 = vector.load %arg16[%c4_152, %c256_153] : memref<18x384xf32, #tpu.memory_space<vmem>>, vector<1x128xf32>
    tpu.vector_store %arg16[%c4_152, %c256_153], %147 {strides = array<i32>} : memref<18x384xf32, #tpu.memory_space<vmem>>, vector<1x128xf32>,
    %149 = vector.extract_strided_slice %107 {offsets = [1, 0], sizes = [1, 128], strides = [1, 1]} : vector<4x512xf32> to vector<1x128xf32>
    %c5_154 = arith.constant 5 : index
    %c256_155 = arith.constant 256 : index
    %150 = vector.load %arg16[%c5_154, %c256_155] : memref<18x384xf32, #tpu.memory_space<vmem>>, vector<1x128xf32>
    tpu.vector_store %arg16[%c5_154, %c256_155], %149 {strides = array<i32>} : memref<18x384xf32, #tpu.memory_space<vmem>>, vector<1x128xf32>,
    %151 = vector.extract_strided_slice %107 {offsets = [1, 128], sizes = [1, 128], strides = [1, 1]} : vector<4x512xf32> to vector<1x128xf32>
    %c6_156 = arith.constant 6 : index
    %c256_157 = arith.constant 256 : index
    %152 = vector.load %arg16[%c6_156, %c256_157] : memref<18x384xf32, #tpu.memory_space<vmem>>, vector<1x128xf32>
    tpu.vector_store %arg16[%c6_156, %c256_157], %151 {strides = array<i32>} : memref<18x384xf32, #tpu.memory_space<vmem>>, vector<1x128xf32>,
    %153 = vector.extract_strided_slice %107 {offsets = [1, 256], sizes = [1, 128], strides = [1, 1]} : vector<4x512xf32> to vector<1x128xf32>
    %c7_158 = arith.constant 7 : index
    %c256_159 = arith.constant 256 : index
    %154 = vector.load %arg16[%c7_158, %c256_159] : memref<18x384xf32, #tpu.memory_space<vmem>>, vector<1x128xf32>
    tpu.vector_store %arg16[%c7_158, %c256_159], %153 {strides = array<i32>} : memref<18x384xf32, #tpu.memory_space<vmem>>, vector<1x128xf32>,
    %155 = vector.extract_strided_slice %107 {offsets = [1, 384], sizes = [1, 128], strides = [1, 1]} : vector<4x512xf32> to vector<1x128xf32>
    %c8_160 = arith.constant 8 : index
    %c256_161 = arith.constant 256 : index
    %156 = vector.load %arg16[%c8_160, %c256_161] : memref<18x384xf32, #tpu.memory_space<vmem>>, vector<1x128xf32>
    tpu.vector_store %arg16[%c8_160, %c256_161], %155 {strides = array<i32>} : memref<18x384xf32, #tpu.memory_space<vmem>>, vector<1x128xf32>,
    %157 = vector.extract_strided_slice %107 {offsets = [2, 0], sizes = [1, 128], strides = [1, 1]} : vector<4x512xf32> to vector<1x128xf32>
    %c9_162 = arith.constant 9 : index
    %c256_163 = arith.constant 256 : index
    %158 = vector.load %arg16[%c9_162, %c256_163] : memref<18x384xf32, #tpu.memory_space<vmem>>, vector<1x128xf32>
    tpu.vector_store %arg16[%c9_162, %c256_163], %157 {strides = array<i32>} : memref<18x384xf32, #tpu.memory_space<vmem>>, vector<1x128xf32>,
    %159 = vector.extract_strided_slice %107 {offsets = [2, 128], sizes = [1, 128], strides = [1, 1]} : vector<4x512xf32> to vector<1x128xf32>
    %c10_164 = arith.constant 10 : index
    %c256_165 = arith.constant 256 : index
    %160 = vector.load %arg16[%c10_164, %c256_165] : memref<18x384xf32, #tpu.memory_space<vmem>>, vector<1x128xf32>
    tpu.vector_store %arg16[%c10_164, %c256_165], %159 {strides = array<i32>} : memref<18x384xf32, #tpu.memory_space<vmem>>, vector<1x128xf32>,
    %161 = vector.extract_strided_slice %107 {offsets = [2, 256], sizes = [1, 128], strides = [1, 1]} : vector<4x512xf32> to vector<1x128xf32>
    %c11_166 = arith.constant 11 : index
    %c256_167 = arith.constant 256 : index
    %162 = vector.load %arg16[%c11_166, %c256_167] : memref<18x384xf32, #tpu.memory_space<vmem>>, vector<1x128xf32>
    tpu.vector_store %arg16[%c11_166, %c256_167], %161 {strides = array<i32>} : memref<18x384xf32, #tpu.memory_space<vmem>>, vector<1x128xf32>,
    %163 = vector.extract_strided_slice %107 {offsets = [2, 384], sizes = [1, 128], strides = [1, 1]} : vector<4x512xf32> to vector<1x128xf32>
    %c12_168 = arith.constant 12 : index
    %c256_169 = arith.constant 256 : index
    %164 = vector.load %arg16[%c12_168, %c256_169] : memref<18x384xf32, #tpu.memory_space<vmem>>, vector<1x128xf32>
    tpu.vector_store %arg16[%c12_168, %c256_169], %163 {strides = array<i32>} : memref<18x384xf32, #tpu.memory_space<vmem>>, vector<1x128xf32>,
    %165 = vector.extract_strided_slice %107 {offsets = [3, 0], sizes = [1, 128], strides = [1, 1]} : vector<4x512xf32> to vector<1x128xf32>
    %c13_170 = arith.constant 13 : index
    %c256_171 = arith.constant 256 : index
    %166 = vector.load %arg16[%c13_170, %c256_171] : memref<18x384xf32, #tpu.memory_space<vmem>>, vector<1x128xf32>
    tpu.vector_store %arg16[%c13_170, %c256_171], %165 {strides = array<i32>} : memref<18x384xf32, #tpu.memory_space<vmem>>, vector<1x128xf32>,
    %167 = vector.extract_strided_slice %107 {offsets = [3, 128], sizes = [1, 128], strides = [1, 1]} : vector<4x512xf32> to vector<1x128xf32>
    %c14_172 = arith.constant 14 : index
    %c256_173 = arith.constant 256 : index
    %168 = vector.load %arg16[%c14_172, %c256_173] : memref<18x384xf32, #tpu.memory_space<vmem>>, vector<1x128xf32>
    tpu.vector_store %arg16[%c14_172, %c256_173], %167 {strides = array<i32>} : memref<18x384xf32, #tpu.memory_space<vmem>>, vector<1x128xf32>,
    %169 = vector.extract_strided_slice %107 {offsets = [3, 256], sizes = [1, 128], strides = [1, 1]} : vector<4x512xf32> to vector<1x128xf32>
    %c15_174 = arith.constant 15 : index
    %c256_175 = arith.constant 256 : index
    %170 = vector.load %arg16[%c15_174, %c256_175] : memref<18x384xf32, #tpu.memory_space<vmem>>, vector<1x128xf32>
    tpu.vector_store %arg16[%c15_174, %c256_175], %169 {strides = array<i32>} : memref<18x384xf32, #tpu.memory_space<vmem>>, vector<1x128xf32>,
    %171 = vector.extract_strided_slice %107 {offsets = [3, 384], sizes = [1, 128], strides = [1, 1]} : vector<4x512xf32> to vector<1x128xf32>
    %c16_176 = arith.constant 16 : index
    %c256_177 = arith.constant 256 : index
    %172 = vector.load %arg16[%c16_176, %c256_177] : memref<18x384xf32, #tpu.memory_space<vmem>>, vector<1x128xf32>
    tpu.vector_store %arg16[%c16_176, %c256_177], %171 {strides = array<i32>} : memref<18x384xf32, #tpu.memory_space<vmem>>, vector<1x128xf32>,
    %c0_178 = arith.constant 0 : index
    %c0_179 = arith.constant 0 : index
    %173 = vector.load %arg16[%c0_178, %c0_179] : memref<18x384xf32, #tpu.memory_space<vmem>>, vector<16x384xf32>
    %c0_180 = arith.constant 0 : index
    %c0_181 = arith.constant 0 : index
    %c0_182 = arith.constant 0 : index
    %174 = vector.load %arg10[%c0_180, %c0_181, %c0_182] : memref<3x384x64xf32, #tpu.memory_space<vmem>>, vector<1x384x64xf32>
    %175 = vector.shape_cast %174 : vector<1x384x64xf32> to vector<384x64xf32>
    %cst_183 = arith.constant dense<0.000000e+00> : vector<16x64xf32>
    %176 = tpu.matmul %173, %175, %cst_183 {dimension_numbers = #tpu.dot_dimension_numbers<[1], [0], [0], [1], [0, 0, 1, 1], [], []>} : vector<16x384xf32>, vector<384x64xf32>, vector<16x64xf32> -> vector<16x64xf32>
    %c1_184 = arith.constant 1 : index
    %c0_185 = arith.constant 0 : index
    %177 = vector.load %arg16[%c1_184, %c0_185] : memref<18x384xf32, #tpu.memory_space<vmem>>, vector<16x384xf32>
    %c1_186 = arith.constant 1 : index
    %c0_187 = arith.constant 0 : index
    %c0_188 = arith.constant 0 : index
    %178 = vector.load %arg10[%c1_186, %c0_187, %c0_188] : memref<3x384x64xf32, #tpu.memory_space<vmem>>, vector<1x384x64xf32>
    %179 = vector.shape_cast %178 : vector<1x384x64xf32> to vector<384x64xf32>
    %cst_189 = arith.constant dense<0.000000e+00> : vector<16x64xf32>
    %180 = tpu.matmul %177, %179, %cst_189 {dimension_numbers = #tpu.dot_dimension_numbers<[1], [0], [0], [1], [0, 0, 1, 1], [], []>} : vector<16x384xf32>, vector<384x64xf32>, vector<16x64xf32> -> vector<16x64xf32>
    %181 = arith.addf %176, %180 : vector<16x64xf32>
    %c2_190 = arith.constant 2 : index
    %c0_191 = arith.constant 0 : index
    %182 = vector.load %arg16[%c2_190, %c0_191] : memref<18x384xf32, #tpu.memory_space<vmem>>, vector<16x384xf32>
    %c2_192 = arith.constant 2 : index
    %c0_193 = arith.constant 0 : index
    %c0_194 = arith.constant 0 : index
    %183 = vector.load %arg10[%c2_192, %c0_193, %c0_194] : memref<3x384x64xf32, #tpu.memory_space<vmem>>, vector<1x384x64xf32>
    %184 = vector.shape_cast %183 : vector<1x384x64xf32> to vector<384x64xf32>
    %cst_195 = arith.constant dense<0.000000e+00> : vector<16x64xf32>
    %185 = tpu.matmul %182, %184, %cst_195 {dimension_numbers = #tpu.dot_dimension_numbers<[1], [0], [0], [1], [0, 0, 1, 1], [], []>} : vector<16x384xf32>, vector<384x64xf32>, vector<16x64xf32> -> vector<16x64xf32>
    %186 = arith.addf %181, %185 : vector<16x64xf32>
    %c0_196 = arith.constant 0 : index
    %c0_197 = arith.constant 0 : index
    %187 = vector.load %arg11[%c0_196, %c0_197] : memref<1x64xf32, #tpu.memory_space<vmem>>, vector<1x64xf32>
    %188 = vector.broadcast %187 : vector<1x64xf32> to vector<16x64xf32>
    %189 = arith.addf %186, %188 : vector<16x64xf32>
    %c0_198 = arith.constant 0 : index
    %c0_199 = arith.constant 0 : index
    %c0_200 = arith.constant 0 : index
    %190 = vector.load %arg12[%c0_198, %c0_199, %c0_200] : memref<1x16x64xf32, #tpu.memory_space<vmem>>, vector<1x16x64xf32>
    %191 = vector.shape_cast %190 : vector<1x16x64xf32> to vector<16x64xf32>
    %192 = vector.shape_cast %189 : vector<16x64xf32> to vector<1x16x64xf32>
    tpu.vector_store %arg12[%c0_198, %c0_199, %c0_200], %192 {strides = array<i32>} : memref<1x16x64xf32, #tpu.memory_space<vmem>>, vector<1x16x64xf32>,
    return
  }
  func.func @transform_0(%arg0: i32) -> (i32, i32, i32) {
    %c0_i32 = arith.constant 0 : i32
    %c0_i32_0 = arith.constant 0 : i32
    %c0_i32_1 = arith.constant 0 : i32
    return %arg0, %c0_i32, %c0_i32_0 : i32, i32, i32
  }
  func.func @transform_1(%arg0: i32) -> (i32, i32, i32) {
    %c0_i32 = arith.constant 0 : i32
    %c0_i32_0 = arith.constant 0 : i32
    %c0_i32_1 = arith.constant 0 : i32
    return %arg0, %c0_i32, %c0_i32_0 : i32, i32, i32
  }
  func.func @transform_2(%arg0: i32) -> (i32, i32, i32) {
    %c0_i32 = arith.constant 0 : i32
    %c0_i32_0 = arith.constant 0 : i32
    %c0_i32_1 = arith.constant 0 : i32
    return %arg0, %c0_i32, %c0_i32_0 : i32, i32, i32
  }
  func.func @transform_3(%arg0: i32) -> (i32, i32, i32) {
    %c0_i32 = arith.constant 0 : i32
    %c0_i32_0 = arith.constant 0 : i32
    %c0_i32_1 = arith.constant 0 : i32
    %c0_i32_2 = arith.constant 0 : i32
    return %c0_i32, %c0_i32_0, %c0_i32_1 : i32, i32, i32
  }
  func.func @transform_4(%arg0: i32) -> (i32, i32) {
    %c0_i32 = arith.constant 0 : i32
    %c0_i32_0 = arith.constant 0 : i32
    %c0_i32_1 = arith.constant 0 : i32
    return %c0_i32, %c0_i32_0 : i32, i32
  }
  func.func @transform_5(%arg0: i32) -> (i32, i32, i32) {
    %c0_i32 = arith.constant 0 : i32
    %c0_i32_0 = arith.constant 0 : i32
    %c0_i32_1 = arith.constant 0 : i32
    %c0_i32_2 = arith.constant 0 : i32
    return %c0_i32, %c0_i32_0, %c0_i32_1 : i32, i32, i32
  }
  func.func @transform_6(%arg0: i32) -> (i32, i32) {
    %c0_i32 = arith.constant 0 : i32
    %c0_i32_0 = arith.constant 0 : i32
    %c0_i32_1 = arith.constant 0 : i32
    return %c0_i32, %c0_i32_0 : i32, i32
  }
  func.func @transform_7(%arg0: i32) -> (i32, i32, i32) {
    %c0_i32 = arith.constant 0 : i32
    %c0_i32_0 = arith.constant 0 : i32
    %c0_i32_1 = arith.constant 0 : i32
    %c0_i32_2 = arith.constant 0 : i32
    return %c0_i32, %c0_i32_0, %c0_i32_1 : i32, i32, i32
  }
  func.func @transform_8(%arg0: i32) -> (i32, i32) {
    %c0_i32 = arith.constant 0 : i32
    %c0_i32_0 = arith.constant 0 : i32
    %c0_i32_1 = arith.constant 0 : i32
    return %c0_i32, %c0_i32_0 : i32, i32
  }
  func.func @transform_9(%arg0: i32) -> (i32, i32, i32) {
    %c0_i32 = arith.constant 0 : i32
    %c0_i32_0 = arith.constant 0 : i32
    %c0_i32_1 = arith.constant 0 : i32
    %c0_i32_2 = arith.constant 0 : i32
    return %c0_i32, %c0_i32_0, %c0_i32_1 : i32, i32, i32
  }
  func.func @transform_10(%arg0: i32) -> (i32, i32) {
    %c0_i32 = arith.constant 0 : i32
    %c0_i32_0 = arith.constant 0 : i32
    %c0_i32_1 = arith.constant 0 : i32
    return %c0_i32, %c0_i32_0 : i32, i32
  }
  func.func @transform_11(%arg0: i32) -> (i32, i32, i32) {
    %c0_i32 = arith.constant 0 : i32
    %c0_i32_0 = arith.constant 0 : i32
    %c0_i32_1 = arith.constant 0 : i32
    return %arg0, %c0_i32, %c0_i32_0 : i32, i32, i32
  }
}

</mosaic_0001>

<llo_original>
// kernel: mff_forward_pallas.1
$region0: #{mff_forward_pallas.1}
  #allocation0 [shape = 'u32[]', space=smem, size = 0x4, offset = 0x4, fixed_abs, tag = 'smem constant byte address 0x4 - core index']
  #allocation1 [shape = 'u32[72,128]{1,0:T(1,128)}', space=vmem, size = 0x9000, scoped, tag = 'internal scratch']
  #allocation2 [shape = 'f32[22,128]{1,0:T(8,128)}', space=vmem, size = 0x3000, scoped, tag = 'scratch operand']
  #allocation3 [shape = 'f32[12,128]{1,0:T(8,128)}', space=vmem, size = 0x2000, scoped, tag = 'scratch operand']
  #allocation4 [shape = 'f32[6,256]{1,0:T(8,128)}', space=vmem, size = 0x2000, scoped, tag = 'scratch operand']
  #allocation5 [shape = 'f32[18,384]{1,0:T(8,128)}', space=vmem, size = 0x9000, scoped, tag = 'scratch operand']
  %s0 = inlined_call_operand.vmem [shape: f32[2,16,128], index: 0, kind: input, shape index: {}]
  %s1 = inlined_call_operand.vmem [shape: f32[2,8,128], index: 1, kind: input, shape index: {}]
  %s2 = inlined_call_operand.vmem [shape: f32[2,4,256], index: 2, kind: input, shape index: {}]
  %s3 = inlined_call_operand.hbm [shape: f32[7,128,128], index: 3, kind: input, shape index: {}]
  %s4 = inlined_call_operand.hbm [shape: f32[1,128], index: 4, kind: input, shape index: {}]
  %s5 = inlined_call_operand.hbm [shape: f32[5,128,256], index: 5, kind: input, shape index: {}]
  %s6 = inlined_call_operand.hbm [shape: f32[1,256], index: 6, kind: input, shape index: {}]
  %s7 = inlined_call_operand.hbm [shape: f32[3,256,512], index: 7, kind: input, shape index: {}]
  %s8 = inlined_call_operand.hbm [shape: f32[1,512], index: 8, kind: input, shape index: {}]
  %s9 = inlined_call_operand.vmem [shape: f32[3,384,64], index: 9, kind: input, shape index: {}]
  %s10 = inlined_call_operand.hbm [shape: f32[1,64], index: 10, kind: input, shape index: {}]
  %s11 = inlined_call_operand.vmem [shape: f32[2,16,64], index: 11, kind: output, shape index: {}]
  %s12 = sld [smem:[#allocation0]]
  $region105: #{mff_forward_pallas.1} parent=0
    _
  %s14 = ssub.s32 1, %s12
  %s15 = scalar_select 0, %s14, %s12
  $region1: #{mff_forward_pallas.1} parent=0
    #allocation6 [shape = 'u8[458752]{0}', space=vmem, size = 0x70000, scoped, tag = 'input window, operand 3, single buffered']
    #allocation7 [shape = 's32[2]{0}', space=sflag, size = 0x8, scoped, tag = 'scoped memory for mff_forward_pallas.1']
    #allocation8 [shape = 'u8[512]{0}', space=vmem, size = 0x400, scoped, tag = 'input window, operand 4, single buffered']
    #allocation9 [shape = 's32[1]{0}', space=sflag, size = 0x4, scoped, tag = 'scoped memory for mff_forward_pallas.1']
    #allocation10 [shape = 'u8[655360]{0}', space=vmem, size = 0xa0000, scoped, tag = 'input window, operand 5, single buffered']
    #allocation11 [shape = 'u8[1024]{0}', space=vmem, size = 0x400, scoped, tag = 'input window, operand 6, single buffered']
    #allocation12 [shape = 's32[1]{0}', space=sflag, size = 0x4, scoped, tag = 'scoped memory for mff_forward_pallas.1']
    #allocation13 [shape = 'u8[1572864]{0}', space=vmem, size = 0x180000, scoped, tag = 'input window, operand 7, single buffered']
    #allocation14 [shape = 'u8[2048]{0}', space=vmem, size = 0x800, scoped, tag = 'input window, operand 8, single buffered']
    #allocation15 [shape = 's32[1]{0}', space=sflag, size = 0x4, scoped, tag = 'scoped memory for mff_forward_pallas.1']
    #allocation16 [shape = 'u8[512]{0}', space=vmem, size = 0x400, scoped, tag = 'input window, operand 10, single buffered']
    %16 = vsyncpa [#allocation7], 0
    %17 = vsyncpa [#allocation9], 0
    %18 = vsyncpa [#allocation12], 0
    %19 = vsyncpa [#allocation15], 0
    loop: start=0, step=1, limit=4
    $region2: #{mff_forward_pallas.1} parent=1 // loop_pre_header
      _
    $region3: #{mff_forward_pallas.1} parent=1 // loop_header
      %s21 = sphi 0, %s25
      %p22 = scmp.ge.s32.totalorder %s21, 4
      %s31 = sphi 0, %s33
      %s34 = sphi 0, %s31
      %s35 = sphi 0, %s34
      %s51 = sphi 0, %s35
      %s57 = sphi 0, %s59
      %s60 = sphi 0, %s57
      %s61 = sphi 0, %s60
      %s77 = sphi 0, %s61
      %s83 = sphi 0, %s85
      %s86 = sphi 0, %s83
      %s87 = sphi 0, %s86
      %s103 = sphi 0, %s87
      %s107 = sphi 0, %s107
      %s109 = sphi 0, %s107
      %s110 = sphi 0, %s109
      %s124 = sphi 0, %s110
      %s128 = sphi 0, %s128
      %s130 = sphi 0, %s128
      %s131 = sphi 0, %s130
      %s145 = sphi 0, %s131
      %s149 = sphi 0, %s149
      %s151 = sphi 0, %s149
      %s152 = sphi 0, %s151
      %s166 = sphi 0, %s152
      %s170 = sphi 0, %s170
      %s172 = sphi 0, %s170
      %s173 = sphi 0, %s172
      %s187 = sphi 0, %s173
      %s191 = sphi 0, %s191
      %s193 = sphi 0, %s191
      %s194 = sphi 0, %s193
      %s208 = sphi 0, %s194
      %s212 = sphi 0, %s212
      %s214 = sphi 0, %s212
      %s215 = sphi 0, %s214
      %s229 = sphi 0, %s215
      %s233 = sphi 0, %s233
      %s235 = sphi 0, %s233
      %s236 = sphi 0, %s235
      %s250 = sphi 0, %s236
      %s254 = sphi 0, %s254
      %s256 = sphi 0, %s254
      %s257 = sphi 0, %s256
      %s271 = sphi 0, %s257
      %s277 = sphi 0, %s279
      %s280 = sphi 0, %s277
      %s281 = sphi 0, %s280
      %s297 = sphi 0, %s281
    $region4: #{mff_forward_pallas.1} parent=1 // loop_header_branch
      %24 = sbr.rel (%p22) target = $region8
    $region5: #{mff_forward_pallas.1} parent=1 // loop_body
      %s26 = ssub.s32 %s21, 1
      %s27 = ssub.s32 %s21, 2
      %s28 = sadd.s32 %s21, 1
      %s29 = ssub.s32 %s21, %s28
      %p30 = scmp.eq.s32.totalorder %s29, 0
      %s32 = sadd.s32 %s31, 1
      %s33 = scalar_select %p30, %s31, %s32
      %p36 = pneg %p30
      %p37 = scmp.eq.s32.totalorder %s21, 1
      %p38 = por %p36, %p37
      %p39 = scmp.ne.s32.totalorder %s31, %s34
      %p40 = scmp.eq.s32.totalorder %s21, 0
      %p41 = por %p39, %p40
      %p42 = scmp.ne.s32.totalorder %s31, %s34
      %p43 = scmp.eq.s32.totalorder %s26, 1
      %p44 = por %p42, %p43
      %p45 = scmp.ne.s32.totalorder %s34, %s35
      %p46 = scmp.eq.s32.totalorder %s26, 0
      %p47 = por %p45, %p46
      %p48 = scmp.ne.s32.totalorder %s34, %s35
      %p49 = scmp.eq.s32.totalorder %s27, 1
      %p50 = por %p48, %p49
      %p52 = scmp.ne.s32.totalorder %s35, %s51
      %p53 = scmp.eq.s32.totalorder %s27, 0
      %p54 = por %p52, %p53
      %s55 = ssub.s32 %s21, %s28
      %p56 = scmp.eq.s32.totalorder %s55, 0
      %s58 = sadd.s32 %s57, 1
      %s59 = scalar_select %p56, %s57, %s58
      %p62 = pneg %p56
      %p63 = scmp.eq.s32.totalorder %s21, 1
      %p64 = por %p62, %p63
      %p65 = scmp.ne.s32.totalorder %s57, %s60
      %p66 = scmp.eq.s32.totalorder %s21, 0
      %p67 = por %p65, %p66
      %p68 = scmp.ne.s32.totalorder %s57, %s60
      %p69 = scmp.eq.s32.totalorder %s26, 1
      %p70 = por %p68, %p69
      %p71 = scmp.ne.s32.totalorder %s60, %s61
      %p72 = scmp.eq.s32.totalorder %s26, 0
      %p73 = por %p71, %p72
      %p74 = scmp.ne.s32.totalorder %s60, %s61
      %p75 = scmp.eq.s32.totalorder %s27, 1
      %p76 = por %p74, %p75
      %p78 = scmp.ne.s32.totalorder %s61, %s77
      %p79 = scmp.eq.s32.totalorder %s27, 0
      %p80 = por %p78, %p79
      %s81 = ssub.s32 %s21, %s28
      %p82 = scmp.eq.s32.totalorder %s81, 0
      %s84 = sadd.s32 %s83, 1
      %s85 = scalar_select %p82, %s83, %s84
      %p88 = pneg %p82
      %p89 = scmp.eq.s32.totalorder %s21, 1
      %p90 = por %p88, %p89
      %p91 = scmp.ne.s32.totalorder %s83, %s86
      %p92 = scmp.eq.s32.totalorder %s21, 0
      %p93 = por %p91, %p92
      %p94 = scmp.ne.s32.totalorder %s83, %s86
      %p95 = scmp.eq.s32.totalorder %s26, 1
      %p96 = por %p94, %p95
      %p97 = scmp.ne.s32.totalorder %s86, %s87
      %p98 = scmp.eq.s32.totalorder %s26, 0
      %p99 = por %p97, %p98
      %p100 = scmp.ne.s32.totalorder %s86, %s87
      %p101 = scmp.eq.s32.totalorder %s27, 1
      %p102 = por %p100, %p101
      %p104 = scmp.ne.s32.totalorder %s87, %s103
      %p105 = scmp.eq.s32.totalorder %s27, 0
      %p106 = por %p104, %p105
      %s108 = sadd.s32 %s107, 1
      %p111 = scmp.eq.s32.totalorder %s21, 1
      %p112 = scmp.ne.s32.totalorder %s107, %s109
      %p113 = scmp.eq.s32.totalorder %s21, 0
      %p114 = por %p112, %p113
      %p115 = scmp.ne.s32.totalorder %s107, %s109
      %p116 = scmp.eq.s32.totalorder %s26, 1
      %p117 = por %p115, %p116
      %p118 = scmp.ne.s32.totalorder %s109, %s110
      %p119 = scmp.eq.s32.totalorder %s26, 0
      %p120 = por %p118, %p119
      %p121 = scmp.ne.s32.totalorder %s109, %s110
      %p122 = scmp.eq.s32.totalorder %s27, 1
      %p123 = por %p121, %p122
      %p125 = scmp.ne.s32.totalorder %s110, %s124
      %p126 = scmp.eq.s32.totalorder %s27, 0
      %p127 = por %p125, %p126
      %s129 = sadd.s32 %s128, 1
      %p132 = scmp.eq.s32.totalorder %s21, 1
      %p133 = scmp.ne.s32.totalorder %s128, %s130
      %p134 = scmp.eq.s32.totalorder %s21, 0
      %p135 = por %p133, %p134
      %p136 = scmp.ne.s32.totalorder %s128, %s130
      %p137 = scmp.eq.s32.totalorder %s26, 1
      %p138 = por %p136, %p137
      %p139 = scmp.ne.s32.totalorder %s130, %s131
      %p140 = scmp.eq.s32.totalorder %s26, 0
      %p141 = por %p139, %p140
      %p142 = scmp.ne.s32.totalorder %s130, %s131
      %p143 = scmp.eq.s32.totalorder %s27, 1
      %p144 = por %p142, %p143
      %p146 = scmp.ne.s32.totalorder %s131, %s145
      %p147 = scmp.eq.s32.totalorder %s27, 0
      %p148 = por %p146, %p147
      %s150 = sadd.s32 %s149, 1
      %p153 = scmp.eq.s32.totalorder %s21, 1
      %p154 = scmp.ne.s32.totalorder %s149, %s151
      %p155 = scmp.eq.s32.totalorder %s21, 0
      %p156 = por %p154, %p155
      %p157 = scmp.ne.s32.totalorder %s149, %s151
      %p158 = scmp.eq.s32.totalorder %s26, 1
      %p159 = por %p157, %p158
      %p160 = scmp.ne.s32.totalorder %s151, %s152
      %p161 = scmp.eq.s32.totalorder %s26, 0
      %p162 = por %p160, %p161
      %p163 = scmp.ne.s32.totalorder %s151, %s152
      %p164 = scmp.eq.s32.totalorder %s27, 1
      %p165 = por %p163, %p164
      %p167 = scmp.ne.s32.totalorder %s152, %s166
      %p168 = scmp.eq.s32.totalorder %s27, 0
      %p169 = por %p167, %p168
      %s171 = sadd.s32 %s170, 1
      %p174 = scmp.eq.s32.totalorder %s21, 1
      %p175 = scmp.ne.s32.totalorder %s170, %s172
      %p176 = scmp.eq.s32.totalorder %s21, 0
      %p177 = por %p175, %p176
      %p178 = scmp.ne.s32.totalorder %s170, %s172
      %p179 = scmp.eq.s32.totalorder %s26, 1
      %p180 = por %p178, %p179
      %p181 = scmp.ne.s32.totalorder %s172, %s173
      %p182 = scmp.eq.s32.totalorder %s26, 0
      %p183 = por %p181, %p182
      %p184 = scmp.ne.s32.totalorder %s172, %s173
      %p185 = scmp.eq.s32.totalorder %s27, 1
      %p186 = por %p184, %p185
      %p188 = scmp.ne.s32.totalorder %s173, %s187
      %p189 = scmp.eq.s32.totalorder %s27, 0
      %p190 = por %p188, %p189
      %s192 = sadd.s32 %s191, 1
      %p195 = scmp.eq.s32.totalorder %s21, 1
      %p196 = scmp.ne.s32.totalorder %s191, %s193
      %p197 = scmp.eq.s32.totalorder %s21, 0
      %p198 = por %p196, %p197
      %p199 = scmp.ne.s32.totalorder %s191, %s193
      %p200 = scmp.eq.s32.totalorder %s26, 1
      %p201 = por %p199, %p200
      %p202 = scmp.ne.s32.totalorder %s193, %s194
      %p203 = scmp.eq.s32.totalorder %s26, 0
      %p204 = por %p202, %p203
      %p205 = scmp.ne.s32.totalorder %s193, %s194
      %p206 = scmp.eq.s32.totalorder %s27, 1
      %p207 = por %p205, %p206
      %p209 = scmp.ne.s32.totalorder %s194, %s208
      %p210 = scmp.eq.s32.totalorder %s27, 0
      %p211 = por %p209, %p210
      %s213 = sadd.s32 %s212, 1
      %p216 = scmp.eq.s32.totalorder %s21, 1
      %p217 = scmp.ne.s32.totalorder %s212, %s214
      %p218 = scmp.eq.s32.totalorder %s21, 0
      %p219 = por %p217, %p218
      %p220 = scmp.ne.s32.totalorder %s212, %s214
      %p221 = scmp.eq.s32.totalorder %s26, 1
      %p222 = por %p220, %p221
      %p223 = scmp.ne.s32.totalorder %s214, %s215
      %p224 = scmp.eq.s32.totalorder %s26, 0
      %p225 = por %p223, %p224
      %p226 = scmp.ne.s32.totalorder %s214, %s215
      %p227 = scmp.eq.s32.totalorder %s27, 1
      %p228 = por %p226, %p227
      %p230 = scmp.ne.s32.totalorder %s215, %s229
      %p231 = scmp.eq.s32.totalorder %s27, 0
      %p232 = por %p230, %p231
      %s234 = sadd.s32 %s233, 1
      %p237 = scmp.eq.s32.totalorder %s21, 1
      %p238 = scmp.ne.s32.totalorder %s233, %s235
      %p239 = scmp.eq.s32.totalorder %s21, 0
      %p240 = por %p238, %p239
      %p241 = scmp.ne.s32.totalorder %s233, %s235
      %p242 = scmp.eq.s32.totalorder %s26, 1
      %p243 = por %p241, %p242
      %p244 = scmp.ne.s32.totalorder %s235, %s236
      %p245 = scmp.eq.s32.totalorder %s26, 0
      %p246 = por %p244, %p245
      %p247 = scmp.ne.s32.totalorder %s235, %s236
      %p248 = scmp.eq.s32.totalorder %s27, 1
      %p249 = por %p247, %p248
      %p251 = scmp.ne.s32.totalorder %s236, %s250
      %p252 = scmp.eq.s32.totalorder %s27, 0
      %p253 = por %p251, %p252
      %s255 = sadd.s32 %s254, 1
      %p258 = scmp.eq.s32.totalorder %s21, 1
      %p259 = scmp.ne.s32.totalorder %s254, %s256
      %p260 = scmp.eq.s32.totalorder %s21, 0
      %p261 = por %p259, %p260
      %p262 = scmp.ne.s32.totalorder %s254, %s256
      %p263 = scmp.eq.s32.totalorder %s26, 1
      %p264 = por %p262, %p263
      %p265 = scmp.ne.s32.totalorder %s256, %s257
      %p266 = scmp.eq.s32.totalorder %s26, 0
      %p267 = por %p265, %p266
      %p268 = scmp.ne.s32.totalorder %s256, %s257
      %p269 = scmp.eq.s32.totalorder %s27, 1
      %p270 = por %p268, %p269
      %p272 = scmp.ne.s32.totalorder %s257, %s271
      %p273 = scmp.eq.s32.totalorder %s27, 0
      %p274 = por %p272, %p273
      %s275 = ssub.s32 %s21, %s28
      %p276 = scmp.eq.s32.totalorder %s275, 0
      %s278 = sadd.s32 %s277, 1
      %s279 = scalar_select %p276, %s277, %s278
      %p282 = pneg %p276
      %p283 = scmp.eq.s32.totalorder %s21, 1
      %p284 = por %p282, %p283
      %p285 = scmp.ne.s32.totalorder %s277, %s280
      %p286 = scmp.eq.s32.totalorder %s21, 0
      %p287 = por %p285, %p286
      %p288 = scmp.ne.s32.totalorder %s277, %s280
      %p289 = scmp.eq.s32.totalorder %s26, 1
      %p290 = por %p288, %p289
      %p291 = scmp.ne.s32.totalorder %s280, %s281
      %p292 = scmp.eq.s32.totalorder %s26, 0
      %p293 = por %p291, %p292
      %p294 = scmp.ne.s32.totalorder %s280, %s281
      %p295 = scmp.eq.s32.totalorder %s27, 1
      %p296 = por %p294, %p295
      %p298 = scmp.ne.s32.totalorder %s281, %s297
      %p299 = scmp.eq.s32.totalorder %s27, 0
      %p300 = por %p298, %p299
      %p301 = scmp.le.s32.totalorder 1, %s21
      %p302 = scmp.lt.s32.totalorder %s21, 3
      %p303 = pnand %p301, %p302
      %p304 = pneg %p303
      // Predicated region
      $region9: #{mff_forward_pallas.1} parent=5 // pred_check
        _
      $region10: #{mff_forward_pallas.1} parent=5 // pred_check_branch
        %306 = sbr.rel (%p303) target = $region12
      $region11: #{mff_forward_pallas.1} parent=5 // pred_region
        %s307 = ssub.s32 %s21, 1
        // Predicated region
        $region13: #{mff_forward_pallas.1} parent=11 // pred_check
          %p308 = pneg %p120
        $region14: #{mff_forward_pallas.1} parent=11 // pred_check_branch
          %310 = sbr.rel (%p308) target = $region16
        $region15: #{mff_forward_pallas.1} parent=11 // pred_region
          %312 = vsyncadd [#allocation7], 0
          %s313 = sshll.u32 %s3, 4
          %s314 = int_to_ptr.hbm [resolvable:$true] %s313
          %s315 = sshll.u32 [#allocation6], 4
          %s316 = int_to_ptr.vmem [resolvable:$true] %s315
          %321 = dma.hbm_to_vmem [thread:$0]  %s314, 14336, %s316, [#allocation7], 128, 128, 8
        $region16: #{mff_forward_pallas.1} parent=11 // pred_fallthru
          _
        // Predicated region
        $region17: #{mff_forward_pallas.1} parent=11 // pred_check
          %p322 = pneg %p141
        $region18: #{mff_forward_pallas.1} parent=11 // pred_check_branch
          %324 = sbr.rel (%p322) target = $region20
        $region19: #{mff_forward_pallas.1} parent=11 // pred_region
          %326 = vsyncadd [#allocation9], 0
          %s328 = sshll.u32 %s4, 4
          %s329 = int_to_ptr.hbm [resolvable:$true] %s328
          %s330 = sshll.u32 [#allocation8], 4
          %s331 = int_to_ptr.vmem [resolvable:$true] %s330
          %333 = dma.hbm_to_vmem [thread:$0]  %s329, 16, %s331, [#allocation9]
        $region20: #{mff_forward_pallas.1} parent=11 // pred_fallthru
          _
        // Predicated region
        $region21: #{mff_forward_pallas.1} parent=11 // pred_check
          %p334 = pneg %p162
        $region22: #{mff_forward_pallas.1} parent=11 // pred_check_branch
          %336 = sbr.rel (%p334) target = $region24
        $region23: #{mff_forward_pallas.1} parent=11 // pred_region
          %338 = vsyncadd [#allocation9], 0
          %s339 = sshll.u32 %s5, 4
          %s340 = int_to_ptr.hbm [resolvable:$true] %s339
          %s341 = sshll.u32 [#allocation10], 4
          %s342 = int_to_ptr.vmem [resolvable:$true] %s341
          %347 = dma.hbm_to_vmem [thread:$0]  %s340, 20480, %s342, [#allocation9], 256, 256, 16
        $region24: #{mff_forward_pallas.1} parent=11 // pred_fallthru
          _
        // Predicated region
        $region25: #{mff_forward_pallas.1} parent=11 // pred_check
          %p348 = pneg %p183
        $region26: #{mff_forward_pallas.1} parent=11 // pred_check_branch
          %350 = sbr.rel (%p348) target = $region28
        $region27: #{mff_forward_pallas.1} parent=11 // pred_region
          %352 = vsyncadd [#allocation12], 0
          %s354 = sshll.u32 %s6, 4
          %s355 = int_to_ptr.hbm [resolvable:$true] %s354
          %s356 = sshll.u32 [#allocation11], 4
          %s357 = int_to_ptr.vmem [resolvable:$true] %s356
          %359 = dma.hbm_to_vmem [thread:$0]  %s355, 32, %s357, [#allocation12]
        $region28: #{mff_forward_pallas.1} parent=11 // pred_fallthru
          _
        // Predicated region
        $region29: #{mff_forward_pallas.1} parent=11 // pred_check
          %p360 = pneg %p204
        $region30: #{mff_forward_pallas.1} parent=11 // pred_check_branch
          %362 = sbr.rel (%p360) target = $region32
        $region31: #{mff_forward_pallas.1} parent=11 // pred_region
          %364 = vsyncadd [#allocation12], 0
          %s365 = sshll.u32 %s7, 4
          %s366 = int_to_ptr.hbm [resolvable:$true] %s365
          %s367 = sshll.u32 [#allocation13], 4
          %s368 = int_to_ptr.vmem [resolvable:$true] %s367
          %373 = dma.hbm_to_vmem [thread:$0]  %s366, 49152, %s368, [#allocation12], 512, 512, 32
        $region32: #{mff_forward_pallas.1} parent=11 // pred_fallthru
          _
        // Predicated region
        $region33: #{mff_forward_pallas.1} parent=11 // pred_check
          %p374 = pneg %p225
        $region34: #{mff_forward_pallas.1} parent=11 // pred_check_branch
          %376 = sbr.rel (%p374) target = $region36
        $region35: #{mff_forward_pallas.1} parent=11 // pred_region
          %378 = vsyncadd [#allocation15], 0
          %s380 = sshll.u32 %s8, 4
          %s381 = int_to_ptr.hbm [resolvable:$true] %s380
          %s382 = sshll.u32 [#allocation14], 4
          %s383 = int_to_ptr.vmem [resolvable:$true] %s382
          %385 = dma.hbm_to_vmem [thread:$0]  %s381, 64, %s383, [#allocation15]
        $region36: #{mff_forward_pallas.1} parent=11 // pred_fallthru
          _
        // Predicated region
        $region37: #{mff_forward_pallas.1} parent=11 // pred_check
          %p386 = pneg %p246
        $region38: #{mff_forward_pallas.1} parent=11 // pred_check_branch
          %388 = sbr.rel (%p386) target = $region40
        $region39: #{mff_forward_pallas.1} parent=11 // pred_region
          _
        $region40: #{mff_forward_pallas.1} parent=11 // pred_fallthru
          _
        // Predicated region
        $region41: #{mff_forward_pallas.1} parent=11 // pred_check
          %p389 = pneg %p267
        $region42: #{mff_forward_pallas.1} parent=11 // pred_check_branch
          %391 = sbr.rel (%p389) target = $region44
        $region43: #{mff_forward_pallas.1} parent=11 // pred_region
          %393 = vsyncadd [#allocation15], 0
          %s395 = sshll.u32 %s10, 4
          %s396 = int_to_ptr.hbm [resolvable:$true] %s395
          %s397 = sshll.u32 [#allocation16], 4
          %s398 = int_to_ptr.vmem [resolvable:$true] %s397
          %400 = dma.hbm_to_vmem [thread:$0]  %s396, 16, %s398, [#allocation15]
        $region44: #{mff_forward_pallas.1} parent=11 // pred_fallthru
          _
      $region12: #{mff_forward_pallas.1} parent=5 // pred_fallthru
        _
      %p401 = scmp.lt.s32.totalorder %s21, 2
      // Predicated region
      $region45: #{mff_forward_pallas.1} parent=5 // pred_check
        %p402 = pneg %p401
      $region46: #{mff_forward_pallas.1} parent=5 // pred_check_branch
        %404 = sbr.rel (%p402) target = $region48
      $region47: #{mff_forward_pallas.1} parent=5 // pred_region
        // Predicated region
        $region49: #{mff_forward_pallas.1} parent=47 // pred_check
          %p405 = pneg %p41
        $region50: #{mff_forward_pallas.1} parent=47 // pred_check_branch
          %407 = sbr.rel (%p405) target = $region52
        $region51: #{mff_forward_pallas.1} parent=47 // pred_region
          %p408 = scmp.lt.s32.totalorder %s21, 1
          %s409 = scalar_select %p408, %s21, 1
          %s410 = smul.addr %s409, 2
          %s411 = smul.addr %s410, 8
          %s412 = scalar_lea.vmem %s0, %s411
        $region52: #{mff_forward_pallas.1} parent=47 // pred_fallthru
          _
        // Predicated region
        $region53: #{mff_forward_pallas.1} parent=47 // pred_check
          %p413 = pneg %p67
        $region54: #{mff_forward_pallas.1} parent=47 // pred_check_branch
          %415 = sbr.rel (%p413) target = $region56
        $region55: #{mff_forward_pallas.1} parent=47 // pred_region
          %p416 = scmp.lt.s32.totalorder %s21, 1
          %s417 = scalar_select %p416, %s21, 1
          %s418 = smul.addr %s417, 8
          %s419 = scalar_lea.vmem %s1, %s418
        $region56: #{mff_forward_pallas.1} parent=47 // pred_fallthru
          _
        // Predicated region
        $region57: #{mff_forward_pallas.1} parent=47 // pred_check
          %p420 = pneg %p93
        $region58: #{mff_forward_pallas.1} parent=47 // pred_check_branch
          %422 = sbr.rel (%p420) target = $region60
        $region59: #{mff_forward_pallas.1} parent=47 // pred_region
          %p423 = scmp.lt.s32.totalorder %s21, 1
          %s424 = scalar_select %p423, %s21, 1
          %s425 = smul.addr %s424, 2
          %s426 = smul.addr %s425, 4
          %s427 = scalar_lea.vmem %s2, %s426
        $region60: #{mff_forward_pallas.1} parent=47 // pred_fallthru
          _
      $region48: #{mff_forward_pallas.1} parent=5 // pred_fallthru
        _
      %p428 = scmp.le.s32.totalorder 1, %s21
      %p429 = scmp.lt.s32.totalorder %s21, 3
      %p430 = pnand %p428, %p429
      %p431 = pneg %p430
      // Predicated region
      $region61: #{mff_forward_pallas.1} parent=5 // pred_check
        _
      $region62: #{mff_forward_pallas.1} parent=5 // pred_check_branch
        %433 = sbr.rel (%p430) target = $region64
      $region63: #{mff_forward_pallas.1} parent=5 // pred_region
        %s434 = ssub.s32 %s21, 1
        // Predicated region
        $region65: #{mff_forward_pallas.1} parent=63 // pred_check
          %p435 = pneg %p120
        $region66: #{mff_forward_pallas.1} parent=63 // pred_check_branch
          %437 = sbr.rel (%p435) target = $region68
        $region67: #{mff_forward_pallas.1} parent=63 // pred_region
          %439 = dma.done [#allocation7], 14336
        $region68: #{mff_forward_pallas.1} parent=63 // pred_fallthru
          _
        // Predicated region
        $region69: #{mff_forward_pallas.1} parent=63 // pred_check
          %p440 = pneg %p141
        $region70: #{mff_forward_pallas.1} parent=63 // pred_check_branch
          %442 = sbr.rel (%p440) target = $region72
        $region71: #{mff_forward_pallas.1} parent=63 // pred_region
          %444 = dma.done [#allocation9], 16
        $region72: #{mff_forward_pallas.1} parent=63 // pred_fallthru
          _
        // Predicated region
        $region73: #{mff_forward_pallas.1} parent=63 // pred_check
          %p445 = pneg %p162
        $region74: #{mff_forward_pallas.1} parent=63 // pred_check_branch
          %447 = sbr.rel (%p445) target = $region76
        $region75: #{mff_forward_pallas.1} parent=63 // pred_region
          %449 = dma.done [#allocation9], 20480
        $region76: #{mff_forward_pallas.1} parent=63 // pred_fallthru
          _
        // Predicated region
        $region77: #{mff_forward_pallas.1} parent=63 // pred_check
          %p450 = pneg %p183
        $region78: #{mff_forward_pallas.1} parent=63 // pred_check_branch
          %452 = sbr.rel (%p450) target = $region80
        $region79: #{mff_forward_pallas.1} parent=63 // pred_region
          %454 = dma.done [#allocation12], 32
        $region80: #{mff_forward_pallas.1} parent=63 // pred_fallthru
          _
        // Predicated region
        $region81: #{mff_forward_pallas.1} parent=63 // pred_check
          %p455 = pneg %p204
        $region82: #{mff_forward_pallas.1} parent=63 // pred_check_branch
          %457 = sbr.rel (%p455) target = $region84
        $region83: #{mff_forward_pallas.1} parent=63 // pred_region
          %459 = dma.done [#allocation12], 49152
        $region84: #{mff_forward_pallas.1} parent=63 // pred_fallthru
          _
        // Predicated region
        $region85: #{mff_forward_pallas.1} parent=63 // pred_check
          %p460 = pneg %p225
        $region86: #{mff_forward_pallas.1} parent=63 // pred_check_branch
          %462 = sbr.rel (%p460) target = $region88
        $region87: #{mff_forward_pallas.1} parent=63 // pred_region
          %464 = dma.done [#allocation15], 64
        $region88: #{mff_forward_pallas.1} parent=63 // pred_fallthru
          _
        // Predicated region
        $region89: #{mff_forward_pallas.1} parent=63 // pred_check
          %p465 = pneg %p267
        $region90: #{mff_forward_pallas.1} parent=63 // pred_check_branch
          %467 = sbr.rel (%p465) target = $region92
        $region91: #{mff_forward_pallas.1} parent=63 // pred_region
          %469 = dma.done [#allocation15], 16
        $region92: #{mff_forward_pallas.1} parent=63 // pred_fallthru
          _
        %p470 = scmp.lt.s32.totalorder %s26, 1
        %s471 = scalar_select %p470, %s26, 1
        %s472 = smul.addr %s471, 2
        %s473 = smul.addr %s472, 8
        %s474 = scalar_lea.vmem %s0, %s473
        %p475 = pneg %p47
        %p476 = pneg %p44
        %p477 = scmp.lt.s32.totalorder %s26, 1
        %s478 = scalar_select %p477, %s26, 1
        %s479 = smul.addr %s478, 8
        %s480 = scalar_lea.vmem %s1, %s479
        %p481 = pneg %p73
        %p482 = pneg %p70
        %p483 = scmp.lt.s32.totalorder %s26, 1
        %s484 = scalar_select %p483, %s26, 1
        %s485 = smul.addr %s484, 2
        %s486 = smul.addr %s485, 4
        %s487 = scalar_lea.vmem %s2, %s486
        %p488 = pneg %p99
        %p489 = pneg %p96
        %p490 = pneg %p120
        %p491 = pneg %p117
        %p492 = pneg %p141
        %p493 = pneg %p138
        %p494 = pneg %p162
        %p495 = pneg %p159
        %p496 = pneg %p183
        %p497 = pneg %p180
        %p498 = pneg %p204
        %p499 = pneg %p201
        %p500 = pneg %p225
        %p501 = pneg %p222
        %p502 = pneg %p246
        %p503 = pneg %p243
        %p504 = pneg %p267
        %p505 = pneg %p264
        %p506 = pneg %p293
        %p507 = pneg %p290
        %p508 = scmp.lt.s32.totalorder %s26, 1
        %s509 = scalar_select %p508, %s26, 1
        %s510 = smul.addr %s509, 2
        %s511 = smul.addr %s510, 8
        %s512 = scalar_lea.vmem %s11, %s511
        %p513 = scmp.lt.s32.totalorder %s26, 1
        %s514 = scalar_select %p513, %s26, 1
        %s515 = smul.addr %s514, 2
        %s516 = smul.addr %s515, 8
        %s517 = scalar_lea.vmem %s0, %s516
        %p518 = scmp.lt.s32.totalorder %s26, 1
        %s519 = scalar_select %p518, %s26, 1
        %s520 = smul.addr %s519, 8
        %s521 = scalar_lea.vmem %s1, %s520
        %p522 = scmp.lt.s32.totalorder %s26, 1
        %s523 = scalar_select %p522, %s26, 1
        %s524 = smul.addr %s523, 2
        %s525 = smul.addr %s524, 4
        %s526 = scalar_lea.vmem %s2, %s525
        %p527 = scmp.lt.s32.totalorder %s26, 1
        %s528 = scalar_select %p527, %s26, 1
        %s529 = smul.addr %s528, 2
        %s530 = smul.addr %s529, 8
        %s531 = scalar_lea.vmem %s11, %s530
        %532 = vst [vmem:[#allocation2] sm:$0x7] 0.0
        %533 = vst [vmem:[#allocation2 + $0x13] sm:$0x7] 0.0
        %534 = vst [vmem:[#allocation3] sm:$0x3] 0.0
        %535 = vst [vmem:[#allocation3 + $0xa] sm:$0x3] 0.0
        %v536 = vlaneseq
        %vm537 = vcmp.ge.s32.totalorder %v536, 0
        %vm538 = vcmp.lt.s32.totalorder %v536, 256
        %vm539 = vmand %vm537, %vm538
        %540 = vst.msk [vmem:[#allocation4] ss:$8 sm:$0x3] %vm539, 0.0
        %541 = vst.msk [vmem:[#allocation4] ss:$8 sm:$0x0] %vm539, 0.0
        %s542 = scalar_lea.vmem [#allocation4], 5
        %543 = vst.msk [vmem:[%s542] ss:$8 sm:$0x3] %vm539, 0.0
        %544 = vst.msk [vmem:[%s542] ss:$8 sm:$0x0] %vm539, 0.0
        %vm545 = vcmp.lt.s32.totalorder %v536, 384
        %vm546 = vmand %vm537, %vm545
        %547 = vst.msk [vmem:[#allocation5] ss:$8 sm:$0x7] %vm546, 0.0
        %548 = vst.msk [vmem:[#allocation5] ss:$8 sm:$0x0] %vm546, 0.0
        %s549 = scalar_lea.vmem [#allocation5], 49
        %550 = vst.msk [vmem:[%s549] ss:$8 sm:$0x7] %vm546, 0.0
        %551 = vst.msk [vmem:[%s549] ss:$8 sm:$0x0] %vm546, 0.0
        %v552 = vld [vmem:[%s517] sm:$0xff]
        %v553 = vld [vmem:[%s517 + $0x8] sm:$0xff]
        %554 = vst [vmem:[#allocation2 + $0x3] sm:$0xff] %v552
        %555 = vst [vmem:[#allocation2 + $0xb] sm:$0xff] %v553
        %v556 = vld [vmem:[%s521] sm:$0xff]
        %557 = vst [vmem:[#allocation3 + $0x2] sm:$0xff] %v556
        %v558 = vld [vmem:[%s526] sm:$0xff]
        %560 = vst [vmem:[#allocation1] ss:$2 sm:$0xff] %v558
        %v561 = vld.sshfl [vmem:[#allocation1] sm:$0xff pattern:$0x75316420]
        %v562 = vld.sshfl [vmem:[#allocation1 + $0x8] sm:$0xff pattern:$0x75316420]
        %v563 = vrot.slane %v561, 7
        %v564 = vrot.slane %v562, 7
        %567 = vst [vmem:[#allocation4] sm:$0x1e] %v563
        %568 = vst [vmem:[#allocation4 + $0x8] sm:$0x1e] %v564
        %v569 = vld [vmem:[#allocation2] sm:$0xff]
        %v570 = vld [vmem:[#allocation2 + $0x8] sm:$0xff]
        %v571 = vld [vmem:[#allocation6] sm:$0xff]
        %v572 = vld [vmem:[#allocation6 + $0x8] sm:$0xff]
        %v573 = vld [vmem:[#allocation6 + $0x10] sm:$0xff]
        %v574 = vld [vmem:[#allocation6 + $0x18] sm:$0xff]
        %v575 = vld [vmem:[#allocation6 + $0x20] sm:$0xff]
        %v576 = vld [vmem:[#allocation6 + $0x28] sm:$0xff]
        %v577 = vld [vmem:[#allocation6 + $0x30] sm:$0xff]
        %v578 = vld [vmem:[#allocation6 + $0x38] sm:$0xff]
        %v579 = vld [vmem:[#allocation6 + $0x40] sm:$0xff]
        %v580 = vld [vmem:[#allocation6 + $0x48] sm:$0xff]
        %v581 = vld [vmem:[#allocation6 + $0x50] sm:$0xff]
        %v582 = vld [vmem:[#allocation6 + $0x58] sm:$0xff]
        %v583 = vld [vmem:[#allocation6 + $0x60] sm:$0xff]
        %v584 = vld [vmem:[#allocation6 + $0x68] sm:$0xff]
        %v585 = vld [vmem:[#allocation6 + $0x70] sm:$0xff]
        %v586 = vld [vmem:[#allocation6 + $0x78] sm:$0xff]
        %v587 = vld [vmem:[#allocation2 + $0x1] sm:$0xff]
        %v588 = vld [vmem:[#allocation2 + $0x9] sm:$0xff]
        %s589 = scalar_lea.vmem [#allocation6], 128
        %v590 = vld [vmem:[%s589] sm:$0xff]
        %v591 = vld [vmem:[%s589 + $0x8] sm:$0xff]
        %v592 = vld [vmem:[%s589 + $0x10] sm:$0xff]
        %v593 = vld [vmem:[%s589 + $0x18] sm:$0xff]
        %v594 = vld [vmem:[%s589 + $0x20] sm:$0xff]
        %v595 = vld [vmem:[%s589 + $0x28] sm:$0xff]
        %v596 = vld [vmem:[%s589 + $0x30] sm:$0xff]
        %v597 = vld [vmem:[%s589 + $0x38] sm:$0xff]
        %v598 = vld [vmem:[%s589 + $0x40] sm:$0xff]
        %v599 = vld [vmem:[%s589 + $0x48] sm:$0xff]
        %v600 = vld [vmem:[%s589 + $0x50] sm:$0xff]
        %v601 = vld [vmem:[%s589 + $0x58] sm:$0xff]
        %v602 = vld [vmem:[%s589 + $0x60] sm:$0xff]
        %v603 = vld [vmem:[%s589 + $0x68] sm:$0xff]
        %v604 = vld [vmem:[%s589 + $0x70] sm:$0xff]
        %v605 = vld [vmem:[%s589 + $0x78] sm:$0xff]
        %606 = vmatpush.msra.mxu0 %v605
        %607 = vmatpush.msra.mxu0 %v604
        %608 = vmatpush.msra.mxu0 %v603
        %609 = vmatpush.msra.mxu0 %v602
        %610 = vmatpush.msra.mxu0 %v601
        %611 = vmatpush.msra.mxu0 %v600
        %612 = vmatpush.msra.mxu0 %v599
        %613 = vmatpush.msra.mxu0 %v598
        %614 = vmatpush.msra.mxu0 %v597
        %615 = vmatpush.msra.mxu0 %v596
        %616 = vmatpush.msra.mxu0 %v595
        %617 = vmatpush.msra.mxu0 %v594
        %618 = vmatpush.msra.mxu0 %v593
        %619 = vmatpush.msra.mxu0 %v592
        %620 = vmatpush.msra.mxu0 %v591
        %621 = vmatpush.msra.mxu0 %v590
        %622 = vmatmul.f32.gmra.mxu0 %v587
        %v623 = vpop.f32.mrf.mxu0
        %v624 = vadd.f32 0.0, %v623
        %625 = vmatmul.f32.gmra.mxu0 %v588
        %v626 = vpop.f32.mrf.mxu0
        %v627 = vadd.f32 0.0, %v626
        %628 = vdwg.mxu0
        %629 = vmatpush.msra.mxu0 %v586
        %630 = vmatpush.msra.mxu0 %v585
        %631 = vmatpush.msra.mxu0 %v584
        %632 = vmatpush.msra.mxu0 %v583
        %633 = vmatpush.msra.mxu0 %v582
        %634 = vmatpush.msra.mxu0 %v581
        %635 = vmatpush.msra.mxu0 %v580
        %636 = vmatpush.msra.mxu0 %v579
        %637 = vmatpush.msra.mxu0 %v578
        %638 = vmatpush.msra.mxu0 %v577
        %639 = vmatpush.msra.mxu0 %v576
        %640 = vmatpush.msra.mxu0 %v575
        %641 = vmatpush.msra.mxu0 %v574
        %642 = vmatpush.msra.mxu0 %v573
        %643 = vmatpush.msra.mxu0 %v572
        %644 = vmatpush.msra.mxu0 %v571
        %645 = vmatmul.f32.gmra.mxu0 %v569
        %v646 = vpop.f32.mrf.mxu0
        %v647 = vadd.f32 %v624, %v646
        %648 = vmatmul.f32.gmra.mxu0 %v570
        %v649 = vpop.f32.mrf.mxu0
        %v650 = vadd.f32 %v627, %v649
        %651 = vdwg.mxu0
        %v652 = vld [vmem:[#allocation2 + $0x2] sm:$0xff]
        %v653 = vld [vmem:[#allocation2 + $0xa] sm:$0xff]
        %s654 = scalar_lea.vmem [#allocation6], 256
        %v655 = vld [vmem:[%s654] sm:$0xff]
        %v656 = vld [vmem:[%s654 + $0x8] sm:$0xff]
        %v657 = vld [vmem:[%s654 + $0x10] sm:$0xff]
        %v658 = vld [vmem:[%s654 + $0x18] sm:$0xff]
        %v659 = vld [vmem:[%s654 + $0x20] sm:$0xff]
        %v660 = vld [vmem:[%s654 + $0x28] sm:$0xff]
        %v661 = vld [vmem:[%s654 + $0x30] sm:$0xff]
        %v662 = vld [vmem:[%s654 + $0x38] sm:$0xff]
        %v663 = vld [vmem:[%s654 + $0x40] sm:$0xff]
        %v664 = vld [vmem:[%s654 + $0x48] sm:$0xff]
        %v665 = vld [vmem:[%s654 + $0x50] sm:$0xff]
        %v666 = vld [vmem:[%s654 + $0x58] sm:$0xff]
        %v667 = vld [vmem:[%s654 + $0x60] sm:$0xff]
        %v668 = vld [vmem:[%s654 + $0x68] sm:$0xff]
        %v669 = vld [vmem:[%s654 + $0x70] sm:$0xff]
        %v670 = vld [vmem:[%s654 + $0x78] sm:$0xff]
        %671 = vmatpush.msra.mxu0 %v670
        %672 = vmatpush.msra.mxu0 %v669
        %673 = vmatpush.msra.mxu0 %v668
        %674 = vmatpush.msra.mxu0 %v667
        %675 = vmatpush.msra.mxu0 %v666
        %676 = vmatpush.msra.mxu0 %v665
        %677 = vmatpush.msra.mxu0 %v664
        %678 = vmatpush.msra.mxu0 %v663
        %679 = vmatpush.msra.mxu0 %v662
        %680 = vmatpush.msra.mxu0 %v661
        %681 = vmatpush.msra.mxu0 %v660
        %682 = vmatpush.msra.mxu0 %v659
        %683 = vmatpush.msra.mxu0 %v658
        %684 = vmatpush.msra.mxu0 %v657
        %685 = vmatpush.msra.mxu0 %v656
        %686 = vmatpush.msra.mxu0 %v655
        %687 = vmatmul.f32.gmra.mxu0 %v652
        %v688 = vpop.f32.mrf.mxu0
        %v689 = vadd.f32 0.0, %v688
        %690 = vmatmul.f32.gmra.mxu0 %v653
        %v691 = vpop.f32.mrf.mxu0
        %v692 = vadd.f32 0.0, %v691
        %693 = vdwg.mxu0
        %v694 = vadd.f32 %v647, %v689
        %v695 = vadd.f32 %v650, %v692
        %v696 = vld [vmem:[#allocation2 + $0x3] sm:$0xff]
        %v697 = vld [vmem:[#allocation2 + $0xb] sm:$0xff]
        %s698 = scalar_lea.vmem [#allocation6], 384
        %v699 = vld [vmem:[%s698] sm:$0xff]
        %v700 = vld [vmem:[%s698 + $0x8] sm:$0xff]
        %v701 = vld [vmem:[%s698 + $0x10] sm:$0xff]
        %v702 = vld [vmem:[%s698 + $0x18] sm:$0xff]
        %v703 = vld [vmem:[%s698 + $0x20] sm:$0xff]
        %v704 = vld [vmem:[%s698 + $0x28] sm:$0xff]
        %v705 = vld [vmem:[%s698 + $0x30] sm:$0xff]
        %v706 = vld [vmem:[%s698 + $0x38] sm:$0xff]
        %v707 = vld [vmem:[%s698 + $0x40] sm:$0xff]
        %v708 = vld [vmem:[%s698 + $0x48] sm:$0xff]
        %v709 = vld [vmem:[%s698 + $0x50] sm:$0xff]
        %v710 = vld [vmem:[%s698 + $0x58] sm:$0xff]
        %v711 = vld [vmem:[%s698 + $0x60] sm:$0xff]
        %v712 = vld [vmem:[%s698 + $0x68] sm:$0xff]
        %v713 = vld [vmem:[%s698 + $0x70] sm:$0xff]
        %v714 = vld [vmem:[%s698 + $0x78] sm:$0xff]
        %715 = vmatpush.msra.mxu0 %v714
        %716 = vmatpush.msra.mxu0 %v713
        %717 = vmatpush.msra.mxu0 %v712
        %718 = vmatpush.msra.mxu0 %v711
        %719 = vmatpush.msra.mxu0 %v710
        %720 = vmatpush.msra.mxu0 %v709
        %721 = vmatpush.msra.mxu0 %v708
        %722 = vmatpush.msra.mxu0 %v707
        %723 = vmatpush.msra.mxu0 %v706
        %724 = vmatpush.msra.mxu0 %v705
        %725 = vmatpush.msra.mxu0 %v704
        %726 = vmatpush.msra.mxu0 %v703
        %727 = vmatpush.msra.mxu0 %v702
        %728 = vmatpush.msra.mxu0 %v701
        %729 = vmatpush.msra.mxu0 %v700
        %730 = vmatpush.msra.mxu0 %v699
        %731 = vmatmul.f32.gmra.mxu0 %v696
        %v732 = vpop.f32.mrf.mxu0
        %v733 = vadd.f32 0.0, %v732
        %734 = vmatmul.f32.gmra.mxu0 %v697
        %v735 = vpop.f32.mrf.mxu0
        %v736 = vadd.f32 0.0, %v735
        %737 = vdwg.mxu0
        %v738 = vadd.f32 %v694, %v733
        %v739 = vadd.f32 %v695, %v736
        %v740 = vld [vmem:[#allocation2 + $0x4] sm:$0xff]
        %v741 = vld [vmem:[#allocation2 + $0xc] sm:$0xff]
        %s742 = scalar_lea.vmem [#allocation6], 512
        %v743 = vld [vmem:[%s742] sm:$0xff]
        %v744 = vld [vmem:[%s742 + $0x8] sm:$0xff]
        %v745 = vld [vmem:[%s742 + $0x10] sm:$0xff]
        %v746 = vld [vmem:[%s742 + $0x18] sm:$0xff]
        %v747 = vld [vmem:[%s742 + $0x20] sm:$0xff]
        %v748 = vld [vmem:[%s742 + $0x28] sm:$0xff]
        %v749 = vld [vmem:[%s742 + $0x30] sm:$0xff]
        %v750 = vld [vmem:[%s742 + $0x38] sm:$0xff]
        %v751 = vld [vmem:[%s742 + $0x40] sm:$0xff]
        %v752 = vld [vmem:[%s742 + $0x48] sm:$0xff]
        %v753 = vld [vmem:[%s742 + $0x50] sm:$0xff]
        %v754 = vld [vmem:[%s742 + $0x58] sm:$0xff]
        %v755 = vld [vmem:[%s742 + $0x60] sm:$0xff]
        %v756 = vld [vmem:[%s742 + $0x68] sm:$0xff]
        %v757 = vld [vmem:[%s742 + $0x70] sm:$0xff]
        %v758 = vld [vmem:[%s742 + $0x78] sm:$0xff]
        %759 = vmatpush.msra.mxu0 %v758
        %760 = vmatpush.msra.mxu0 %v757
        %761 = vmatpush.msra.mxu0 %v756
        %762 = vmatpush.msra.mxu0 %v755
        %763 = vmatpush.msra.mxu0 %v754
        %764 = vmatpush.msra.mxu0 %v753
        %765 = vmatpush.msra.mxu0 %v752
        %766 = vmatpush.msra.mxu0 %v751
        %767 = vmatpush.msra.mxu0 %v750
        %768 = vmatpush.msra.mxu0 %v749
        %769 = vmatpush.msra.mxu0 %v748
        %770 = vmatpush.msra.mxu0 %v747
        %771 = vmatpush.msra.mxu0 %v746
        %772 = vmatpush.msra.mxu0 %v745
        %773 = vmatpush.msra.mxu0 %v744
        %774 = vmatpush.msra.mxu0 %v743
        %775 = vmatmul.f32.gmra.mxu0 %v740
        %v776 = vpop.f32.mrf.mxu0
        %v777 = vadd.f32 0.0, %v776
        %778 = vmatmul.f32.gmra.mxu0 %v741
        %v779 = vpop.f32.mrf.mxu0
        %v780 = vadd.f32 0.0, %v779
        %781 = vdwg.mxu0
        %v782 = vadd.f32 %v738, %v777
        %v783 = vadd.f32 %v739, %v780
        %v784 = vld [vmem:[#allocation2 + $0x5] sm:$0xff]
        %v785 = vld [vmem:[#allocation2 + $0xd] sm:$0xff]
        %s786 = scalar_lea.vmem [#allocation6], 640
        %v787 = vld [vmem:[%s786] sm:$0xff]
        %v788 = vld [vmem:[%s786 + $0x8] sm:$0xff]
        %v789 = vld [vmem:[%s786 + $0x10] sm:$0xff]
        %v790 = vld [vmem:[%s786 + $0x18] sm:$0xff]
        %v791 = vld [vmem:[%s786 + $0x20] sm:$0xff]
        %v792 = vld [vmem:[%s786 + $0x28] sm:$0xff]
        %v793 = vld [vmem:[%s786 + $0x30] sm:$0xff]
        %v794 = vld [vmem:[%s786 + $0x38] sm:$0xff]
        %v795 = vld [vmem:[%s786 + $0x40] sm:$0xff]
        %v796 = vld [vmem:[%s786 + $0x48] sm:$0xff]
        %v797 = vld [vmem:[%s786 + $0x50] sm:$0xff]
        %v798 = vld [vmem:[%s786 + $0x58] sm:$0xff]
        %v799 = vld [vmem:[%s786 + $0x60] sm:$0xff]
        %v800 = vld [vmem:[%s786 + $0x68] sm:$0xff]
        %v801 = vld [vmem:[%s786 + $0x70] sm:$0xff]
        %v802 = vld [vmem:[%s786 + $0x78] sm:$0xff]
        %803 = vmatpush.msra.mxu0 %v802
        %804 = vmatpush.msra.mxu0 %v801
        %805 = vmatpush.msra.mxu0 %v800
        %806 = vmatpush.msra.mxu0 %v799
        %807 = vmatpush.msra.mxu0 %v798
        %808 = vmatpush.msra.mxu0 %v797
        %809 = vmatpush.msra.mxu0 %v796
        %810 = vmatpush.msra.mxu0 %v795
        %811 = vmatpush.msra.mxu0 %v794
        %812 = vmatpush.msra.mxu0 %v793
        %813 = vmatpush.msra.mxu0 %v792
        %814 = vmatpush.msra.mxu0 %v791
        %815 = vmatpush.msra.mxu0 %v790
        %816 = vmatpush.msra.mxu0 %v789
        %817 = vmatpush.msra.mxu0 %v788
        %818 = vmatpush.msra.mxu0 %v787
        %819 = vmatmul.f32.gmra.mxu0 %v784
        %v820 = vpop.f32.mrf.mxu0
        %v821 = vadd.f32 0.0, %v820
        %822 = vmatmul.f32.gmra.mxu0 %v785
        %v823 = vpop.f32.mrf.mxu0
        %v824 = vadd.f32 0.0, %v823
        %825 = vdwg.mxu0
        %v826 = vadd.f32 %v782, %v821
        %v827 = vadd.f32 %v783, %v824
        %v828 = vld [vmem:[#allocation2 + $0x6] sm:$0xff]
        %v829 = vld [vmem:[#allocation2 + $0xe] sm:$0xff]
        %s830 = scalar_lea.vmem [#allocation6], 768
        %v831 = vld [vmem:[%s830] sm:$0xff]
        %v832 = vld [vmem:[%s830 + $0x8] sm:$0xff]
        %v833 = vld [vmem:[%s830 + $0x10] sm:$0xff]
        %v834 = vld [vmem:[%s830 + $0x18] sm:$0xff]
        %v835 = vld [vmem:[%s830 + $0x20] sm:$0xff]
        %v836 = vld [vmem:[%s830 + $0x28] sm:$0xff]
        %v837 = vld [vmem:[%s830 + $0x30] sm:$0xff]
        %v838 = vld [vmem:[%s830 + $0x38] sm:$0xff]
        %v839 = vld [vmem:[%s830 + $0x40] sm:$0xff]
        %v840 = vld [vmem:[%s830 + $0x48] sm:$0xff]
        %v841 = vld [vmem:[%s830 + $0x50] sm:$0xff]
        %v842 = vld [vmem:[%s830 + $0x58] sm:$0xff]
        %v843 = vld [vmem:[%s830 + $0x60] sm:$0xff]
        %v844 = vld [vmem:[%s830 + $0x68] sm:$0xff]
        %v845 = vld [vmem:[%s830 + $0x70] sm:$0xff]
        %v846 = vld [vmem:[%s830 + $0x78] sm:$0xff]
        %847 = vmatpush.msra.mxu0 %v846
        %848 = vmatpush.msra.mxu0 %v845
        %849 = vmatpush.msra.mxu0 %v844
        %850 = vmatpush.msra.mxu0 %v843
        %851 = vmatpush.msra.mxu0 %v842
        %852 = vmatpush.msra.mxu0 %v841
        %853 = vmatpush.msra.mxu0 %v840
        %854 = vmatpush.msra.mxu0 %v839
        %855 = vmatpush.msra.mxu0 %v838
        %856 = vmatpush.msra.mxu0 %v837
        %857 = vmatpush.msra.mxu0 %v836
        %858 = vmatpush.msra.mxu0 %v835
        %859 = vmatpush.msra.mxu0 %v834
        %860 = vmatpush.msra.mxu0 %v833
        %861 = vmatpush.msra.mxu0 %v832
        %862 = vmatpush.msra.mxu0 %v831
        %863 = vmatmul.f32.gmra.mxu0 %v828
        %v864 = vpop.f32.mrf.mxu0
        %v865 = vadd.f32 0.0, %v864
        %866 = vmatmul.f32.gmra.mxu0 %v829
        %v867 = vpop.f32.mrf.mxu0
        %v868 = vadd.f32 0.0, %v867
        %869 = vdwg.mxu0
        %v870 = vadd.f32 %v826, %v865
        %v871 = vadd.f32 %v827, %v868
        %v872 = vld [vmem:[#allocation8] sm:$0x1]
        %v874 = vperm.slane %v872, 0
        %v876 = vadd.f32 %v870, %v874
        %v877 = vadd.f32 %v871, %v874
        %v878 = vmax.f32 %v876, 0.0
        %v879 = vmax.f32 %v877, 0.0
        %v880 = vld [vmem:[#allocation3] sm:$0xff]
        %v881 = vld [vmem:[#allocation10] sm:$0xff]
        %v882 = vld [vmem:[#allocation10 + $0x8] sm:$0xff]
        %v883 = vld [vmem:[#allocation10 + $0x10] sm:$0xff]
        %v884 = vld [vmem:[#allocation10 + $0x18] sm:$0xff]
        %v885 = vld [vmem:[#allocation10 + $0x20] sm:$0xff]
        %v886 = vld [vmem:[#allocation10 + $0x28] sm:$0xff]
        %v887 = vld [vmem:[#allocation10 + $0x30] sm:$0xff]
        %v888 = vld [vmem:[#allocation10 + $0x38] sm:$0xff]
        %v889 = vld [vmem:[#allocation10 + $0x40] sm:$0xff]
        %v890 = vld [vmem:[#allocation10 + $0x48] sm:$0xff]
        %v891 = vld [vmem:[#allocation10 + $0x50] sm:$0xff]
        %v892 = vld [vmem:[#allocation10 + $0x58] sm:$0xff]
        %v893 = vld [vmem:[#allocation10 + $0x60] sm:$0xff]
        %v894 = vld [vmem:[#allocation10 + $0x68] sm:$0xff]
        %v895 = vld [vmem:[#allocation10 + $0x70] sm:$0xff]
        %v896 = vld [vmem:[#allocation10 + $0x78] sm:$0xff]
        %v897 = vld [vmem:[#allocation10 + $0x80] sm:$0xff]
        %v898 = vld [vmem:[#allocation10 + $0x88] sm:$0xff]
        %v899 = vld [vmem:[#allocation10 + $0x90] sm:$0xff]
        %v900 = vld [vmem:[#allocation10 + $0x98] sm:$0xff]
        %v901 = vld [vmem:[#allocation10 + $0xa0] sm:$0xff]
        %v902 = vld [vmem:[#allocation10 + $0xa8] sm:$0xff]
        %v903 = vld [vmem:[#allocation10 + $0xb0] sm:$0xff]
        %v904 = vld [vmem:[#allocation10 + $0xb8] sm:$0xff]
        %v905 = vld [vmem:[#allocation10 + $0xc0] sm:$0xff]
        %v906 = vld [vmem:[#allocation10 + $0xc8] sm:$0xff]
        %v907 = vld [vmem:[#allocation10 + $0xd0] sm:$0xff]
        %v908 = vld [vmem:[#allocation10 + $0xd8] sm:$0xff]
        %v909 = vld [vmem:[#allocation10 + $0xe0] sm:$0xff]
        %v910 = vld [vmem:[#allocation10 + $0xe8] sm:$0xff]
        %v911 = vld [vmem:[#allocation10 + $0xf0] sm:$0xff]
        %v912 = vld [vmem:[#allocation10 + $0xf8] sm:$0xff]
        %v913 = vld [vmem:[#allocation3 + $0x1] sm:$0xff]
        %s914 = scalar_lea.vmem [#allocation10], 256
        %v915 = vld [vmem:[%s914] sm:$0xff]
        %v916 = vld [vmem:[%s914 + $0x8] sm:$0xff]
        %v917 = vld [vmem:[%s914 + $0x10] sm:$0xff]
        %v918 = vld [vmem:[%s914 + $0x18] sm:$0xff]
        %v919 = vld [vmem:[%s914 + $0x20] sm:$0xff]
        %v920 = vld [vmem:[%s914 + $0x28] sm:$0xff]
        %v921 = vld [vmem:[%s914 + $0x30] sm:$0xff]
        %v922 = vld [vmem:[%s914 + $0x38] sm:$0xff]
        %v923 = vld [vmem:[%s914 + $0x40] sm:$0xff]
        %v924 = vld [vmem:[%s914 + $0x48] sm:$0xff]
        %v925 = vld [vmem:[%s914 + $0x50] sm:$0xff]
        %v926 = vld [vmem:[%s914 + $0x58] sm:$0xff]
        %v927 = vld [vmem:[%s914 + $0x60] sm:$0xff]
        %v928 = vld [vmem:[%s914 + $0x68] sm:$0xff]
        %v929 = vld [vmem:[%s914 + $0x70] sm:$0xff]
        %v930 = vld [vmem:[%s914 + $0x78] sm:$0xff]
        %v931 = vld [vmem:[%s914 + $0x80] sm:$0xff]
        %v932 = vld [vmem:[%s914 + $0x88] sm:$0xff]
        %v933 = vld [vmem:[%s914 + $0x90] sm:$0xff]
        %v934 = vld [vmem:[%s914 + $0x98] sm:$0xff]
        %v935 = vld [vmem:[%s914 + $0xa0] sm:$0xff]
        %v936 = vld [vmem:[%s914 + $0xa8] sm:$0xff]
        %v937 = vld [vmem:[%s914 + $0xb0] sm:$0xff]
        %v938 = vld [vmem:[%s914 + $0xb8] sm:$0xff]
        %v939 = vld [vmem:[%s914 + $0xc0] sm:$0xff]
        %v940 = vld [vmem:[%s914 + $0xc8] sm:$0xff]
        %v941 = vld [vmem:[%s914 + $0xd0] sm:$0xff]
        %v942 = vld [vmem:[%s914 + $0xd8] sm:$0xff]
        %v943 = vld [vmem:[%s914 + $0xe0] sm:$0xff]
        %v944 = vld [vmem:[%s914 + $0xe8] sm:$0xff]
        %v945 = vld [vmem:[%s914 + $0xf0] sm:$0xff]
        %v946 = vld [vmem:[%s914 + $0xf8] sm:$0xff]
        %947 = vmatpush.msra.mxu0 %v945
        %948 = vmatpush.msra.mxu0 %v943
        %949 = vmatpush.msra.mxu0 %v941
        %950 = vmatpush.msra.mxu0 %v939
        %951 = vmatpush.msra.mxu0 %v937
        %952 = vmatpush.msra.mxu0 %v935
        %953 = vmatpush.msra.mxu0 %v933
        %954 = vmatpush.msra.mxu0 %v931
        %955 = vmatpush.msra.mxu0 %v929
        %956 = vmatpush.msra.mxu0 %v927
        %957 = vmatpush.msra.mxu0 %v925
        %958 = vmatpush.msra.mxu0 %v923
        %959 = vmatpush.msra.mxu0 %v921
        %960 = vmatpush.msra.mxu0 %v919
        %961 = vmatpush.msra.mxu0 %v917
        %962 = vmatpush.msra.mxu0 %v915
        %963 = vmatmul.f32.gmra.mxu0 %v913
        %v964 = vpop.f32.mrf.mxu0
        %v965 = vadd.f32 0.0, %v964
        %966 = vdwg.mxu0
        %967 = vmatpush.msra.mxu0 %v946
        %968 = vmatpush.msra.mxu0 %v944
        %969 = vmatpush.msra.mxu0 %v942
        %970 = vmatpush.msra.mxu0 %v940
        %971 = vmatpush.msra.mxu0 %v938
        %972 = vmatpush.msra.mxu0 %v936
        %973 = vmatpush.msra.mxu0 %v934
        %974 = vmatpush.msra.mxu0 %v932
        %975 = vmatpush.msra.mxu0 %v930
        %976 = vmatpush.msra.mxu0 %v928
        %977 = vmatpush.msra.mxu0 %v926
        %978 = vmatpush.msra.mxu0 %v924
        %979 = vmatpush.msra.mxu0 %v922
        %980 = vmatpush.msra.mxu0 %v920
        %981 = vmatpush.msra.mxu0 %v918
        %982 = vmatpush.msra.mxu0 %v916
        %983 = vmatmul.f32.gmra.mxu0 %v913
        %v984 = vpop.f32.mrf.mxu0
        %v985 = vadd.f32 0.0, %v984
        %986 = vdwg.mxu0
        %987 = vmatpush.msra.mxu0 %v911
        %988 = vmatpush.msra.mxu0 %v909
        %989 = vmatpush.msra.mxu0 %v907
        %990 = vmatpush.msra.mxu0 %v905
        %991 = vmatpush.msra.mxu0 %v903
        %992 = vmatpush.msra.mxu0 %v901
        %993 = vmatpush.msra.mxu0 %v899
        %994 = vmatpush.msra.mxu0 %v897
        %995 = vmatpush.msra.mxu0 %v895
        %996 = vmatpush.msra.mxu0 %v893
        %997 = vmatpush.msra.mxu0 %v891
        %998 = vmatpush.msra.mxu0 %v889
        %999 = vmatpush.msra.mxu0 %v887
        %1000 = vmatpush.msra.mxu0 %v885
        %1001 = vmatpush.msra.mxu0 %v883
        %1002 = vmatpush.msra.mxu0 %v881
        %1003 = vmatmul.f32.gmra.mxu0 %v880
        %v1004 = vpop.f32.mrf.mxu0
        %v1005 = vadd.f32 %v965, %v1004
        %1006 = vdwg.mxu0
        %1007 = vmatpush.msra.mxu0 %v912
        %1008 = vmatpush.msra.mxu0 %v910
        %1009 = vmatpush.msra.mxu0 %v908
        %1010 = vmatpush.msra.mxu0 %v906
        %1011 = vmatpush.msra.mxu0 %v904
        %1012 = vmatpush.msra.mxu0 %v902
        %1013 = vmatpush.msra.mxu0 %v900
        %1014 = vmatpush.msra.mxu0 %v898
        %1015 = vmatpush.msra.mxu0 %v896
        %1016 = vmatpush.msra.mxu0 %v894
        %1017 = vmatpush.msra.mxu0 %v892
        %1018 = vmatpush.msra.mxu0 %v890
        %1019 = vmatpush.msra.mxu0 %v888
        %1020 = vmatpush.msra.mxu0 %v886
        %1021 = vmatpush.msra.mxu0 %v884
        %1022 = vmatpush.msra.mxu0 %v882
        %1023 = vmatmul.f32.gmra.mxu0 %v880
        %v1024 = vpop.f32.mrf.mxu0
        %v1025 = vadd.f32 %v985, %v1024
        %1026 = vdwg.mxu0
        %v1027 = vld [vmem:[#allocation3 + $0x2] sm:$0xff]
        %s1028 = scalar_lea.vmem [#allocation10], 512
        %v1029 = vld [vmem:[%s1028] sm:$0xff]
        %v1030 = vld [vmem:[%s1028 + $0x8] sm:$0xff]
        %v1031 = vld [vmem:[%s1028 + $0x10] sm:$0xff]
        %v1032 = vld [vmem:[%s1028 + $0x18] sm:$0xff]
        %v1033 = vld [vmem:[%s1028 + $0x20] sm:$0xff]
        %v1034 = vld [vmem:[%s1028 + $0x28] sm:$0xff]
        %v1035 = vld [vmem:[%s1028 + $0x30] sm:$0xff]
        %v1036 = vld [vmem:[%s1028 + $0x38] sm:$0xff]
        %v1037 = vld [vmem:[%s1028 + $0x40] sm:$0xff]
        %v1038 = vld [vmem:[%s1028 + $0x48] sm:$0xff]
        %v1039 = vld [vmem:[%s1028 + $0x50] sm:$0xff]
        %v1040 = vld [vmem:[%s1028 + $0x58] sm:$0xff]
        %v1041 = vld [vmem:[%s1028 + $0x60] sm:$0xff]
        %v1042 = vld [vmem:[%s1028 + $0x68] sm:$0xff]
        %v1043 = vld [vmem:[%s1028 + $0x70] sm:$0xff]
        %v1044 = vld [vmem:[%s1028 + $0x78] sm:$0xff]
        %v1045 = vld [vmem:[%s1028 + $0x80] sm:$0xff]
        %v1046 = vld [vmem:[%s1028 + $0x88] sm:$0xff]
        %v1047 = vld [vmem:[%s1028 + $0x90] sm:$0xff]
        %v1048 = vld [vmem:[%s1028 + $0x98] sm:$0xff]
        %v1049 = vld [vmem:[%s1028 + $0xa0] sm:$0xff]
        %v1050 = vld [vmem:[%s1028 + $0xa8] sm:$0xff]
        %v1051 = vld [vmem:[%s1028 + $0xb0] sm:$0xff]
        %v1052 = vld [vmem:[%s1028 + $0xb8] sm:$0xff]
        %v1053 = vld [vmem:[%s1028 + $0xc0] sm:$0xff]
        %v1054 = vld [vmem:[%s1028 + $0xc8] sm:$0xff]
        %v1055 = vld [vmem:[%s1028 + $0xd0] sm:$0xff]
        %v1056 = vld [vmem:[%s1028 + $0xd8] sm:$0xff]
        %v1057 = vld [vmem:[%s1028 + $0xe0] sm:$0xff]
        %v1058 = vld [vmem:[%s1028 + $0xe8] sm:$0xff]
        %v1059 = vld [vmem:[%s1028 + $0xf0] sm:$0xff]
        %v1060 = vld [vmem:[%s1028 + $0xf8] sm:$0xff]
        %1061 = vmatpush.msra.mxu0 %v1059
        %1062 = vmatpush.msra.mxu0 %v1057
        %1063 = vmatpush.msra.mxu0 %v1055
        %1064 = vmatpush.msra.mxu0 %v1053
        %1065 = vmatpush.msra.mxu0 %v1051
        %1066 = vmatpush.msra.mxu0 %v1049
        %1067 = vmatpush.msra.mxu0 %v1047
        %1068 = vmatpush.msra.mxu0 %v1045
        %1069 = vmatpush.msra.mxu0 %v1043
        %1070 = vmatpush.msra.mxu0 %v1041
        %1071 = vmatpush.msra.mxu0 %v1039
        %1072 = vmatpush.msra.mxu0 %v1037
        %1073 = vmatpush.msra.mxu0 %v1035
        %1074 = vmatpush.msra.mxu0 %v1033
        %1075 = vmatpush.msra.mxu0 %v1031
        %1076 = vmatpush.msra.mxu0 %v1029
        %1077 = vmatmul.f32.gmra.mxu0 %v1027
        %v1078 = vpop.f32.mrf.mxu0
        %v1079 = vadd.f32 0.0, %v1078
        %1080 = vdwg.mxu0
        %1081 = vmatpush.msra.mxu0 %v1060
        %1082 = vmatpush.msra.mxu0 %v1058
        %1083 = vmatpush.msra.mxu0 %v1056
        %1084 = vmatpush.msra.mxu0 %v1054
        %1085 = vmatpush.msra.mxu0 %v1052
        %1086 = vmatpush.msra.mxu0 %v1050
        %1087 = vmatpush.msra.mxu0 %v1048
        %1088 = vmatpush.msra.mxu0 %v1046
        %1089 = vmatpush.msra.mxu0 %v1044
        %1090 = vmatpush.msra.mxu0 %v1042
        %1091 = vmatpush.msra.mxu0 %v1040
        %1092 = vmatpush.msra.mxu0 %v1038
        %1093 = vmatpush.msra.mxu0 %v1036
        %1094 = vmatpush.msra.mxu0 %v1034
        %1095 = vmatpush.msra.mxu0 %v1032
        %1096 = vmatpush.msra.mxu0 %v1030
        %1097 = vmatmul.f32.gmra.mxu0 %v1027
        %v1098 = vpop.f32.mrf.mxu0
        %v1099 = vadd.f32 0.0, %v1098
        %1100 = vdwg.mxu0
        %v1101 = vadd.f32 %v1005, %v1079
        %v1102 = vadd.f32 %v1025, %v1099
        %v1103 = vld [vmem:[#allocation3 + $0x3] sm:$0xff]
        %s1104 = scalar_lea.vmem [#allocation10], 768
        %v1105 = vld [vmem:[%s1104] sm:$0xff]
        %v1106 = vld [vmem:[%s1104 + $0x8] sm:$0xff]
        %v1107 = vld [vmem:[%s1104 + $0x10] sm:$0xff]
        %v1108 = vld [vmem:[%s1104 + $0x18] sm:$0xff]
        %v1109 = vld [vmem:[%s1104 + $0x20] sm:$0xff]
        %v1110 = vld [vmem:[%s1104 + $0x28] sm:$0xff]
        %v1111 = vld [vmem:[%s1104 + $0x30] sm:$0xff]
        %v1112 = vld [vmem:[%s1104 + $0x38] sm:$0xff]
        %v1113 = vld [vmem:[%s1104 + $0x40] sm:$0xff]
        %v1114 = vld [vmem:[%s1104 + $0x48] sm:$0xff]
        %v1115 = vld [vmem:[%s1104 + $0x50] sm:$0xff]
        %v1116 = vld [vmem:[%s1104 + $0x58] sm:$0xff]
        %v1117 = vld [vmem:[%s1104 + $0x60] sm:$0xff]
        %v1118 = vld [vmem:[%s1104 + $0x68] sm:$0xff]
        %v1119 = vld [vmem:[%s1104 + $0x70] sm:$0xff]
        %v1120 = vld [vmem:[%s1104 + $0x78] sm:$0xff]
        %v1121 = vld [vmem:[%s1104 + $0x80] sm:$0xff]
        %v1122 = vld [vmem:[%s1104 + $0x88] sm:$0xff]
        %v1123 = vld [vmem:[%s1104 + $0x90] sm:$0xff]
        %v1124 = vld [vmem:[%s1104 + $0x98] sm:$0xff]
        %v1125 = vld [vmem:[%s1104 + $0xa0] sm:$0xff]
        %v1126 = vld [vmem:[%s1104 + $0xa8] sm:$0xff]
        %v1127 = vld [vmem:[%s1104 + $0xb0] sm:$0xff]
        %v1128 = vld [vmem:[%s1104 + $0xb8] sm:$0xff]
        %v1129 = vld [vmem:[%s1104 + $0xc0] sm:$0xff]
        %v1130 = vld [vmem:[%s1104 + $0xc8] sm:$0xff]
        %v1131 = vld [vmem:[%s1104 + $0xd0] sm:$0xff]
        %v1132 = vld [vmem:[%s1104 + $0xd8] sm:$0xff]
        %v1133 = vld [vmem:[%s1104 + $0xe0] sm:$0xff]
        %v1134 = vld [vmem:[%s1104 + $0xe8] sm:$0xff]
        %v1135 = vld [vmem:[%s1104 + $0xf0] sm:$0xff]
        %v1136 = vld [vmem:[%s1104 + $0xf8] sm:$0xff]
        %1137 = vmatpush.msra.mxu0 %v1135
        %1138 = vmatpush.msra.mxu0 %v1133
        %1139 = vmatpush.msra.mxu0 %v1131
        %1140 = vmatpush.msra.mxu0 %v1129
        %1141 = vmatpush.msra.mxu0 %v1127
        %1142 = vmatpush.msra.mxu0 %v1125
        %1143 = vmatpush.msra.mxu0 %v1123
        %1144 = vmatpush.msra.mxu0 %v1121
        %1145 = vmatpush.msra.mxu0 %v1119
        %1146 = vmatpush.msra.mxu0 %v1117
        %1147 = vmatpush.msra.mxu0 %v1115
        %1148 = vmatpush.msra.mxu0 %v1113
        %1149 = vmatpush.msra.mxu0 %v1111
        %1150 = vmatpush.msra.mxu0 %v1109
        %1151 = vmatpush.msra.mxu0 %v1107
        %1152 = vmatpush.msra.mxu0 %v1105
        %1153 = vmatmul.f32.gmra.mxu0 %v1103
        %v1154 = vpop.f32.mrf.mxu0
        %v1155 = vadd.f32 0.0, %v1154
        %1156 = vdwg.mxu0
        %1157 = vmatpush.msra.mxu0 %v1136
        %1158 = vmatpush.msra.mxu0 %v1134
        %1159 = vmatpush.msra.mxu0 %v1132
        %1160 = vmatpush.msra.mxu0 %v1130
        %1161 = vmatpush.msra.mxu0 %v1128
        %1162 = vmatpush.msra.mxu0 %v1126
        %1163 = vmatpush.msra.mxu0 %v1124
        %1164 = vmatpush.msra.mxu0 %v1122
        %1165 = vmatpush.msra.mxu0 %v1120
        %1166 = vmatpush.msra.mxu0 %v1118
        %1167 = vmatpush.msra.mxu0 %v1116
        %1168 = vmatpush.msra.mxu0 %v1114
        %1169 = vmatpush.msra.mxu0 %v1112
        %1170 = vmatpush.msra.mxu0 %v1110
        %1171 = vmatpush.msra.mxu0 %v1108
        %1172 = vmatpush.msra.mxu0 %v1106
        %1173 = vmatmul.f32.gmra.mxu0 %v1103
        %v1174 = vpop.f32.mrf.mxu0
        %v1175 = vadd.f32 0.0, %v1174
        %1176 = vdwg.mxu0
        %v1177 = vadd.f32 %v1101, %v1155
        %v1178 = vadd.f32 %v1102, %v1175
        %v1179 = vld [vmem:[#allocation3 + $0x4] sm:$0xff]
        %s1180 = scalar_lea.vmem [#allocation10], 1024
        %v1181 = vld [vmem:[%s1180] sm:$0xff]
        %v1182 = vld [vmem:[%s1180 + $0x8] sm:$0xff]
        %v1183 = vld [vmem:[%s1180 + $0x10] sm:$0xff]
        %v1184 = vld [vmem:[%s1180 + $0x18] sm:$0xff]
        %v1185 = vld [vmem:[%s1180 + $0x20] sm:$0xff]
        %v1186 = vld [vmem:[%s1180 + $0x28] sm:$0xff]
        %v1187 = vld [vmem:[%s1180 + $0x30] sm:$0xff]
        %v1188 = vld [vmem:[%s1180 + $0x38] sm:$0xff]
        %v1189 = vld [vmem:[%s1180 + $0x40] sm:$0xff]
        %v1190 = vld [vmem:[%s1180 + $0x48] sm:$0xff]
        %v1191 = vld [vmem:[%s1180 + $0x50] sm:$0xff]
        %v1192 = vld [vmem:[%s1180 + $0x58] sm:$0xff]
        %v1193 = vld [vmem:[%s1180 + $0x60] sm:$0xff]
        %v1194 = vld [vmem:[%s1180 + $0x68] sm:$0xff]
        %v1195 = vld [vmem:[%s1180 + $0x70] sm:$0xff]
        %v1196 = vld [vmem:[%s1180 + $0x78] sm:$0xff]
        %v1197 = vld [vmem:[%s1180 + $0x80] sm:$0xff]
        %v1198 = vld [vmem:[%s1180 + $0x88] sm:$0xff]
        %v1199 = vld [vmem:[%s1180 + $0x90] sm:$0xff]
        %v1200 = vld [vmem:[%s1180 + $0x98] sm:$0xff]
        %v1201 = vld [vmem:[%s1180 + $0xa0] sm:$0xff]
        %v1202 = vld [vmem:[%s1180 + $0xa8] sm:$0xff]
        %v1203 = vld [vmem:[%s1180 + $0xb0] sm:$0xff]
        %v1204 = vld [vmem:[%s1180 + $0xb8] sm:$0xff]
        %v1205 = vld [vmem:[%s1180 + $0xc0] sm:$0xff]
        %v1206 = vld [vmem:[%s1180 + $0xc8] sm:$0xff]
        %v1207 = vld [vmem:[%s1180 + $0xd0] sm:$0xff]
        %v1208 = vld [vmem:[%s1180 + $0xd8] sm:$0xff]
        %v1209 = vld [vmem:[%s1180 + $0xe0] sm:$0xff]
        %v1210 = vld [vmem:[%s1180 + $0xe8] sm:$0xff]
        %v1211 = vld [vmem:[%s1180 + $0xf0] sm:$0xff]
        %v1212 = vld [vmem:[%s1180 + $0xf8] sm:$0xff]
        %1213 = vmatpush.msra.mxu0 %v1211
        %1214 = vmatpush.msra.mxu0 %v1209
        %1215 = vmatpush.msra.mxu0 %v1207
        %1216 = vmatpush.msra.mxu0 %v1205
        %1217 = vmatpush.msra.mxu0 %v1203
        %1218 = vmatpush.msra.mxu0 %v1201
        %1219 = vmatpush.msra.mxu0 %v1199
        %1220 = vmatpush.msra.mxu0 %v1197
        %1221 = vmatpush.msra.mxu0 %v1195
        %1222 = vmatpush.msra.mxu0 %v1193
        %1223 = vmatpush.msra.mxu0 %v1191
        %1224 = vmatpush.msra.mxu0 %v1189
        %1225 = vmatpush.msra.mxu0 %v1187
        %1226 = vmatpush.msra.mxu0 %v1185
        %1227 = vmatpush.msra.mxu0 %v1183
        %1228 = vmatpush.msra.mxu0 %v1181
        %1229 = vmatmul.f32.gmra.mxu0 %v1179
        %v1230 = vpop.f32.mrf.mxu0
        %v1231 = vadd.f32 0.0, %v1230
        %1232 = vdwg.mxu0
        %1233 = vmatpush.msra.mxu0 %v1212
        %1234 = vmatpush.msra.mxu0 %v1210
        %1235 = vmatpush.msra.mxu0 %v1208
        %1236 = vmatpush.msra.mxu0 %v1206
        %1237 = vmatpush.msra.mxu0 %v1204
        %1238 = vmatpush.msra.mxu0 %v1202
        %1239 = vmatpush.msra.mxu0 %v1200
        %1240 = vmatpush.msra.mxu0 %v1198
        %1241 = vmatpush.msra.mxu0 %v1196
        %1242 = vmatpush.msra.mxu0 %v1194
        %1243 = vmatpush.msra.mxu0 %v1192
        %1244 = vmatpush.msra.mxu0 %v1190
        %1245 = vmatpush.msra.mxu0 %v1188
        %1246 = vmatpush.msra.mxu0 %v1186
        %1247 = vmatpush.msra.mxu0 %v1184
        %1248 = vmatpush.msra.mxu0 %v1182
        %1249 = vmatmul.f32.gmra.mxu0 %v1179
        %v1250 = vpop.f32.mrf.mxu0
        %v1251 = vadd.f32 0.0, %v1250
        %1252 = vdwg.mxu0
        %v1253 = vadd.f32 %v1177, %v1231
        %v1254 = vadd.f32 %v1178, %v1251
        %v1255 = vld [vmem:[#allocation11] sm:$0x3]
        %v1257 = vperm.slane %v1255, 0
        %v1258 = vperm.slane %v1255, 1
        %v1261 = vadd.f32 %v1253, %v1257
        %v1262 = vadd.f32 %v1254, %v1258
        %v1263 = vmax.f32 %v1261, 0.0
        %v1264 = vmax.f32 %v1262, 0.0
        %v1265 = vld [vmem:[#allocation4] sm:$0xf]
        %v1266 = vld [vmem:[#allocation4 + $0x8] sm:$0xf]
        %v1267 = vld [vmem:[#allocation13] sm:$0xff]
        %v1268 = vld [vmem:[#allocation13 + $0x8] sm:$0xff]
        %v1269 = vld [vmem:[#allocation13 + $0x10] sm:$0xff]
        %v1270 = vld [vmem:[#allocation13 + $0x18] sm:$0xff]
        %v1271 = vld [vmem:[#allocation13 + $0x20] sm:$0xff]
        %v1272 = vld [vmem:[#allocation13 + $0x28] sm:$0xff]
        %v1273 = vld [vmem:[#allocation13 + $0x30] sm:$0xff]
        %v1274 = vld [vmem:[#allocation13 + $0x38] sm:$0xff]
        %v1275 = vld [vmem:[#allocation13 + $0x40] sm:$0xff]
        %v1276 = vld [vmem:[#allocation13 + $0x48] sm:$0xff]
        %v1277 = vld [vmem:[#allocation13 + $0x50] sm:$0xff]
        %v1278 = vld [vmem:[#allocation13 + $0x58] sm:$0xff]
        %v1279 = vld [vmem:[#allocation13 + $0x60] sm:$0xff]
        %v1280 = vld [vmem:[#allocation13 + $0x68] sm:$0xff]
        %v1281 = vld [vmem:[#allocation13 + $0x70] sm:$0xff]
        %v1282 = vld [vmem:[#allocation13 + $0x78] sm:$0xff]
        %v1283 = vld [vmem:[#allocation13 + $0x80] sm:$0xff]
        %v1284 = vld [vmem:[#allocation13 + $0x88] sm:$0xff]
        %v1285 = vld [vmem:[#allocation13 + $0x90] sm:$0xff]
        %v1286 = vld [vmem:[#allocation13 + $0x98] sm:$0xff]
        %v1287 = vld [vmem:[#allocation13 + $0xa0] sm:$0xff]
        %v1288 = vld [vmem:[#allocation13 + $0xa8] sm:$0xff]
        %v1289 = vld [vmem:[#allocation13 + $0xb0] sm:$0xff]
        %v1290 = vld [vmem:[#allocation13 + $0xb8] sm:$0xff]
        %v1291 = vld [vmem:[#allocation13 + $0xc0] sm:$0xff]
        %v1292 = vld [vmem:[#allocation13 + $0xc8] sm:$0xff]
        %v1293 = vld [vmem:[#allocation13 + $0xd0] sm:$0xff]
        %v1294 = vld [vmem:[#allocation13 + $0xd8] sm:$0xff]
        %v1295 = vld [vmem:[#allocation13 + $0xe0] sm:$0xff]
        %v1296 = vld [vmem:[#allocation13 + $0xe8] sm:$0xff]
        %v1297 = vld [vmem:[#allocation13 + $0xf0] sm:$0xff]
        %v1298 = vld [vmem:[#allocation13 + $0xf8] sm:$0xff]
        %v1299 = vld [vmem:[#allocation13 + $0x100] sm:$0xff]
        %v1300 = vld [vmem:[#allocation13 + $0x108] sm:$0xff]
        %v1301 = vld [vmem:[#allocation13 + $0x110] sm:$0xff]
        %v1302 = vld [vmem:[#allocation13 + $0x118] sm:$0xff]
        %v1303 = vld [vmem:[#allocation13 + $0x120] sm:$0xff]
        %v1304 = vld [vmem:[#allocation13 + $0x128] sm:$0xff]
        %v1305 = vld [vmem:[#allocation13 + $0x130] sm:$0xff]
        %v1306 = vld [vmem:[#allocation13 + $0x138] sm:$0xff]
        %v1307 = vld [vmem:[#allocation13 + $0x140] sm:$0xff]
        %v1308 = vld [vmem:[#allocation13 + $0x148] sm:$0xff]
        %v1309 = vld [vmem:[#allocation13 + $0x150] sm:$0xff]
        %v1310 = vld [vmem:[#allocation13 + $0x158] sm:$0xff]
        %v1311 = vld [vmem:[#allocation13 + $0x160] sm:$0xff]
        %v1312 = vld [vmem:[#allocation13 + $0x168] sm:$0xff]
        %v1313 = vld [vmem:[#allocation13 + $0x170] sm:$0xff]
        %v1314 = vld [vmem:[#allocation13 + $0x178] sm:$0xff]
        %v1315 = vld [vmem:[#allocation13 + $0x180] sm:$0xff]
        %v1316 = vld [vmem:[#allocation13 + $0x188] sm:$0xff]
        %v1317 = vld [vmem:[#allocation13 + $0x190] sm:$0xff]
        %v1318 = vld [vmem:[#allocation13 + $0x198] sm:$0xff]
        %v1319 = vld [vmem:[#allocation13 + $0x1a0] sm:$0xff]
        %v1320 = vld [vmem:[#allocation13 + $0x1a8] sm:$0xff]
        %v1321 = vld [vmem:[#allocation13 + $0x1b0] sm:$0xff]
        %v1322 = vld [vmem:[#allocation13 + $0x1b8] sm:$0xff]
        %v1323 = vld [vmem:[#allocation13 + $0x1c0] sm:$0xff]
        %v1324 = vld [vmem:[#allocation13 + $0x1c8] sm:$0xff]
        %v1325 = vld [vmem:[#allocation13 + $0x1d0] sm:$0xff]
        %v1326 = vld [vmem:[#allocation13 + $0x1d8] sm:$0xff]
        %v1327 = vld [vmem:[#allocation13 + $0x1e0] sm:$0xff]
        %v1328 = vld [vmem:[#allocation13 + $0x1e8] sm:$0xff]
        %v1329 = vld [vmem:[#allocation13 + $0x1f0] sm:$0xff]
        %v1330 = vld [vmem:[#allocation13 + $0x1f8] sm:$0xff]
        %v1331 = vld [vmem:[#allocation13 + $0x200] sm:$0xff]
        %v1332 = vld [vmem:[#allocation13 + $0x208] sm:$0xff]
        %v1333 = vld [vmem:[#allocation13 + $0x210] sm:$0xff]
        %v1334 = vld [vmem:[#allocation13 + $0x218] sm:$0xff]
        %v1335 = vld [vmem:[#allocation13 + $0x220] sm:$0xff]
        %v1336 = vld [vmem:[#allocation13 + $0x228] sm:$0xff]
        %v1337 = vld [vmem:[#allocation13 + $0x230] sm:$0xff]
        %v1338 = vld [vmem:[#allocation13 + $0x238] sm:$0xff]
        %v1339 = vld [vmem:[#allocation13 + $0x240] sm:$0xff]
        %v1340 = vld [vmem:[#allocation13 + $0x248] sm:$0xff]
        %v1341 = vld [vmem:[#allocation13 + $0x250] sm:$0xff]
        %v1342 = vld [vmem:[#allocation13 + $0x258] sm:$0xff]
        %v1343 = vld [vmem:[#allocation13 + $0x260] sm:$0xff]
        %v1344 = vld [vmem:[#allocation13 + $0x268] sm:$0xff]
        %v1345 = vld [vmem:[#allocation13 + $0x270] sm:$0xff]
        %v1346 = vld [vmem:[#allocation13 + $0x278] sm:$0xff]
        %v1347 = vld [vmem:[#allocation13 + $0x280] sm:$0xff]
        %v1348 = vld [vmem:[#allocation13 + $0x288] sm:$0xff]
        %v1349 = vld [vmem:[#allocation13 + $0x290] sm:$0xff]
        %v1350 = vld [vmem:[#allocation13 + $0x298] sm:$0xff]
        %v1351 = vld [vmem:[#allocation13 + $0x2a0] sm:$0xff]
        %v1352 = vld [vmem:[#allocation13 + $0x2a8] sm:$0xff]
        %v1353 = vld [vmem:[#allocation13 + $0x2b0] sm:$0xff]
        %v1354 = vld [vmem:[#allocation13 + $0x2b8] sm:$0xff]
        %v1355 = vld [vmem:[#allocation13 + $0x2c0] sm:$0xff]
        %v1356 = vld [vmem:[#allocation13 + $0x2c8] sm:$0xff]
        %v1357 = vld [vmem:[#allocation13 + $0x2d0] sm:$0xff]
        %v1358 = vld [vmem:[#allocation13 + $0x2d8] sm:$0xff]
        %v1359 = vld [vmem:[#allocation13 + $0x2e0] sm:$0xff]
        %v1360 = vld [vmem:[#allocation13 + $0x2e8] sm:$0xff]
        %v1361 = vld [vmem:[#allocation13 + $0x2f0] sm:$0xff]
        %v1362 = vld [vmem:[#allocation13 + $0x2f8] sm:$0xff]
        %v1363 = vld [vmem:[#allocation13 + $0x300] sm:$0xff]
        %v1364 = vld [vmem:[#allocation13 + $0x308] sm:$0xff]
        %v1365 = vld [vmem:[#allocation13 + $0x310] sm:$0xff]
        %v1366 = vld [vmem:[#allocation13 + $0x318] sm:$0xff]
        %v1367 = vld [vmem:[#allocation13 + $0x320] sm:$0xff]
        %v1368 = vld [vmem:[#allocation13 + $0x328] sm:$0xff]
        %v1369 = vld [vmem:[#allocation13 + $0x330] sm:$0xff]
        %v1370 = vld [vmem:[#allocation13 + $0x338] sm:$0xff]
        %v1371 = vld [vmem:[#allocation13 + $0x340] sm:$0xff]
        %v1372 = vld [vmem:[#allocation13 + $0x348] sm:$0xff]
        %v1373 = vld [vmem:[#allocation13 + $0x350] sm:$0xff]
        %v1374 = vld [vmem:[#allocation13 + $0x358] sm:$0xff]
        %v1375 = vld [vmem:[#allocation13 + $0x360] sm:$0xff]
        %v1376 = vld [vmem:[#allocation13 + $0x368] sm:$0xff]
        %v1377 = vld [vmem:[#allocation13 + $0x370] sm:$0xff]
        %v1378 = vld [vmem:[#allocation13 + $0x378] sm:$0xff]
        %v1379 = vld [vmem:[#allocation13 + $0x380] sm:$0xff]
        %v1380 = vld [vmem:[#allocation13 + $0x388] sm:$0xff]
        %v1381 = vld [vmem:[#allocation13 + $0x390] sm:$0xff]
        %v1382 = vld [vmem:[#allocation13 + $0x398] sm:$0xff]
        %v1383 = vld [vmem:[#allocation13 + $0x3a0] sm:$0xff]
        %v1384 = vld [vmem:[#allocation13 + $0x3a8] sm:$0xff]
        %v1385 = vld [vmem:[#allocation13 + $0x3b0] sm:$0xff]
        %v1386 = vld [vmem:[#allocation13 + $0x3b8] sm:$0xff]
        %v1387 = vld [vmem:[#allocation13 + $0x3c0] sm:$0xff]
        %v1388 = vld [vmem:[#allocation13 + $0x3c8] sm:$0xff]
        %v1389 = vld [vmem:[#allocation13 + $0x3d0] sm:$0xff]
        %v1390 = vld [vmem:[#allocation13 + $0x3d8] sm:$0xff]
        %v1391 = vld [vmem:[#allocation13 + $0x3e0] sm:$0xff]
        %v1392 = vld [vmem:[#allocation13 + $0x3e8] sm:$0xff]
        %v1393 = vld [vmem:[#allocation13 + $0x3f0] sm:$0xff]
        %v1394 = vld [vmem:[#allocation13 + $0x3f8] sm:$0xff]
        %v1395 = vld [vmem:[#allocation4] sm:$0x1e]
        %v1396 = vld [vmem:[#allocation4 + $0x8] sm:$0x1e]
        %s1397 = scalar_lea.vmem [#allocation13], 1024
        %v1398 = vld [vmem:[%s1397] sm:$0xff]
        %v1399 = vld [vmem:[%s1397 + $0x8] sm:$0xff]
        %v1400 = vld [vmem:[%s1397 + $0x10] sm:$0xff]
        %v1401 = vld [vmem:[%s1397 + $0x18] sm:$0xff]
        %v1402 = vld [vmem:[%s1397 + $0x20] sm:$0xff]
        %v1403 = vld [vmem:[%s1397 + $0x28] sm:$0xff]
        %v1404 = vld [vmem:[%s1397 + $0x30] sm:$0xff]
        %v1405 = vld [vmem:[%s1397 + $0x38] sm:$0xff]
        %v1406 = vld [vmem:[%s1397 + $0x40] sm:$0xff]
        %v1407 = vld [vmem:[%s1397 + $0x48] sm:$0xff]
        %v1408 = vld [vmem:[%s1397 + $0x50] sm:$0xff]
        %v1409 = vld [vmem:[%s1397 + $0x58] sm:$0xff]
        %v1410 = vld [vmem:[%s1397 + $0x60] sm:$0xff]
        %v1411 = vld [vmem:[%s1397 + $0x68] sm:$0xff]
        %v1412 = vld [vmem:[%s1397 + $0x70] sm:$0xff]
        %v1413 = vld [vmem:[%s1397 + $0x78] sm:$0xff]
        %v1414 = vld [vmem:[%s1397 + $0x80] sm:$0xff]
        %v1415 = vld [vmem:[%s1397 + $0x88] sm:$0xff]
        %v1416 = vld [vmem:[%s1397 + $0x90] sm:$0xff]
        %v1417 = vld [vmem:[%s1397 + $0x98] sm:$0xff]
        %v1418 = vld [vmem:[%s1397 + $0xa0] sm:$0xff]
        %v1419 = vld [vmem:[%s1397 + $0xa8] sm:$0xff]
        %v1420 = vld [vmem:[%s1397 + $0xb0] sm:$0xff]
        %v1421 = vld [vmem:[%s1397 + $0xb8] sm:$0xff]
        %v1422 = vld [vmem:[%s1397 + $0xc0] sm:$0xff]
        %v1423 = vld [vmem:[%s1397 + $0xc8] sm:$0xff]
        %v1424 = vld [vmem:[%s1397 + $0xd0] sm:$0xff]
        %v1425 = vld [vmem:[%s1397 + $0xd8] sm:$0xff]
        %v1426 = vld [vmem:[%s1397 + $0xe0] sm:$0xff]
        %v1427 = vld [vmem:[%s1397 + $0xe8] sm:$0xff]
        %v1428 = vld [vmem:[%s1397 + $0xf0] sm:$0xff]
        %v1429 = vld [vmem:[%s1397 + $0xf8] sm:$0xff]
        %v1430 = vld [vmem:[%s1397 + $0x100] sm:$0xff]
        %v1431 = vld [vmem:[%s1397 + $0x108] sm:$0xff]
        %v1432 = vld [vmem:[%s1397 + $0x110] sm:$0xff]
        %v1433 = vld [vmem:[%s1397 + $0x118] sm:$0xff]
        %v1434 = vld [vmem:[%s1397 + $0x120] sm:$0xff]
        %v1435 = vld [vmem:[%s1397 + $0x128] sm:$0xff]
        %v1436 = vld [vmem:[%s1397 + $0x130] sm:$0xff]
        %v1437 = vld [vmem:[%s1397 + $0x138] sm:$0xff]
        %v1438 = vld [vmem:[%s1397 + $0x140] sm:$0xff]
        %v1439 = vld [vmem:[%s1397 + $0x148] sm:$0xff]
        %v1440 = vld [vmem:[%s1397 + $0x150] sm:$0xff]
        %v1441 = vld [vmem:[%s1397 + $0x158] sm:$0xff]
        %v1442 = vld [vmem:[%s1397 + $0x160] sm:$0xff]
        %v1443 = vld [vmem:[%s1397 + $0x168] sm:$0xff]
        %v1444 = vld [vmem:[%s1397 + $0x170] sm:$0xff]
        %v1445 = vld [vmem:[%s1397 + $0x178] sm:$0xff]
        %v1446 = vld [vmem:[%s1397 + $0x180] sm:$0xff]
        %v1447 = vld [vmem:[%s1397 + $0x188] sm:$0xff]
        %v1448 = vld [vmem:[%s1397 + $0x190] sm:$0xff]
        %v1449 = vld [vmem:[%s1397 + $0x198] sm:$0xff]
        %v1450 = vld [vmem:[%s1397 + $0x1a0] sm:$0xff]
        %v1451 = vld [vmem:[%s1397 + $0x1a8] sm:$0xff]
        %v1452 = vld [vmem:[%s1397 + $0x1b0] sm:$0xff]
        %v1453 = vld [vmem:[%s1397 + $0x1b8] sm:$0xff]
        %v1454 = vld [vmem:[%s1397 + $0x1c0] sm:$0xff]
        %v1455 = vld [vmem:[%s1397 + $0x1c8] sm:$0xff]
        %v1456 = vld [vmem:[%s1397 + $0x1d0] sm:$0xff]
        %v1457 = vld [vmem:[%s1397 + $0x1d8] sm:$0xff]
        %v1458 = vld [vmem:[%s1397 + $0x1e0] sm:$0xff]
        %v1459 = vld [vmem:[%s1397 + $0x1e8] sm:$0xff]
        %v1460 = vld [vmem:[%s1397 + $0x1f0] sm:$0xff]
        %v1461 = vld [vmem:[%s1397 + $0x1f8] sm:$0xff]
        %v1462 = vld [vmem:[%s1397 + $0x200] sm:$0xff]
        %v1463 = vld [vmem:[%s1397 + $0x208] sm:$0xff]
        %v1464 = vld [vmem:[%s1397 + $0x210] sm:$0xff]
        %v1465 = vld [vmem:[%s1397 + $0x218] sm:$0xff]
        %v1466 = vld [vmem:[%s1397 + $0x220] sm:$0xff]
        %v1467 = vld [vmem:[%s1397 + $0x228] sm:$0xff]
        %v1468 = vld [vmem:[%s1397 + $0x230] sm:$0xff]
        %v1469 = vld [vmem:[%s1397 + $0x238] sm:$0xff]
        %v1470 = vld [vmem:[%s1397 + $0x240] sm:$0xff]
        %v1471 = vld [vmem:[%s1397 + $0x248] sm:$0xff]
        %v1472 = vld [vmem:[%s1397 + $0x250] sm:$0xff]
        %v1473 = vld [vmem:[%s1397 + $0x258] sm:$0xff]
        %v1474 = vld [vmem:[%s1397 + $0x260] sm:$0xff]
        %v1475 = vld [vmem:[%s1397 + $0x268] sm:$0xff]
        %v1476 = vld [vmem:[%s1397 + $0x270] sm:$0xff]
        %v1477 = vld [vmem:[%s1397 + $0x278] sm:$0xff]
        %v1478 = vld [vmem:[%s1397 + $0x280] sm:$0xff]
        %v1479 = vld [vmem:[%s1397 + $0x288] sm:$0xff]
        %v1480 = vld [vmem:[%s1397 + $0x290] sm:$0xff]
        %v1481 = vld [vmem:[%s1397 + $0x298] sm:$0xff]
        %v1482 = vld [vmem:[%s1397 + $0x2a0] sm:$0xff]
        %v1483 = vld [vmem:[%s1397 + $0x2a8] sm:$0xff]
        %v1484 = vld [vmem:[%s1397 + $0x2b0] sm:$0xff]
        %v1485 = vld [vmem:[%s1397 + $0x2b8] sm:$0xff]
        %v1486 = vld [vmem:[%s1397 + $0x2c0] sm:$0xff]
        %v1487 = vld [vmem:[%s1397 + $0x2c8] sm:$0xff]
        %v1488 = vld [vmem:[%s1397 + $0x2d0] sm:$0xff]
        %v1489 = vld [vmem:[%s1397 + $0x2d8] sm:$0xff]
        %v1490 = vld [vmem:[%s1397 + $0x2e0] sm:$0xff]
        %v1491 = vld [vmem:[%s1397 + $0x2e8] sm:$0xff]
        %v1492 = vld [vmem:[%s1397 + $0x2f0] sm:$0xff]
        %v1493 = vld [vmem:[%s1397 + $0x2f8] sm:$0xff]
        %v1494 = vld [vmem:[%s1397 + $0x300] sm:$0xff]
        %v1495 = vld [vmem:[%s1397 + $0x308] sm:$0xff]
        %v1496 = vld [vmem:[%s1397 + $0x310] sm:$0xff]
        %v1497 = vld [vmem:[%s1397 + $0x318] sm:$0xff]
        %v1498 = vld [vmem:[%s1397 + $0x320] sm:$0xff]
        %v1499 = vld [vmem:[%s1397 + $0x328] sm:$0xff]
        %v1500 = vld [vmem:[%s1397 + $0x330] sm:$0xff]
        %v1501 = vld [vmem:[%s1397 + $0x338] sm:$0xff]
        %v1502 = vld [vmem:[%s1397 + $0x340] sm:$0xff]
        %v1503 = vld [vmem:[%s1397 + $0x348] sm:$0xff]
        %v1504 = vld [vmem:[%s1397 + $0x350] sm:$0xff]
        %v1505 = vld [vmem:[%s1397 + $0x358] sm:$0xff]
        %v1506 = vld [vmem:[%s1397 + $0x360] sm:$0xff]
        %v1507 = vld [vmem:[%s1397 + $0x368] sm:$0xff]
        %v1508 = vld [vmem:[%s1397 + $0x370] sm:$0xff]
        %v1509 = vld [vmem:[%s1397 + $0x378] sm:$0xff]
        %v1510 = vld [vmem:[%s1397 + $0x380] sm:$0xff]
        %v1511 = vld [vmem:[%s1397 + $0x388] sm:$0xff]
        %v1512 = vld [vmem:[%s1397 + $0x390] sm:$0xff]
        %v1513 = vld [vmem:[%s1397 + $0x398] sm:$0xff]
        %v1514 = vld [vmem:[%s1397 + $0x3a0] sm:$0xff]
        %v1515 = vld [vmem:[%s1397 + $0x3a8] sm:$0xff]
        %v1516 = vld [vmem:[%s1397 + $0x3b0] sm:$0xff]
        %v1517 = vld [vmem:[%s1397 + $0x3b8] sm:$0xff]
        %v1518 = vld [vmem:[%s1397 + $0x3c0] sm:$0xff]
        %v1519 = vld [vmem:[%s1397 + $0x3c8] sm:$0xff]
        %v1520 = vld [vmem:[%s1397 + $0x3d0] sm:$0xff]
        %v1521 = vld [vmem:[%s1397 + $0x3d8] sm:$0xff]
        %v1522 = vld [vmem:[%s1397 + $0x3e0] sm:$0xff]
        %v1523 = vld [vmem:[%s1397 + $0x3e8] sm:$0xff]
        %v1524 = vld [vmem:[%s1397 + $0x3f0] sm:$0xff]
        %v1525 = vld [vmem:[%s1397 + $0x3f8] sm:$0xff]
        %v1528 = vrot.slane %v1395, 1
        %v1529 = vrot.slane %v1396, 1
        %1532 = vmatpush.msra.mxu0 %v1458
        %1533 = vmatpush.msra.mxu0 %v1454
        %1534 = vmatpush.msra.mxu0 %v1450
        %1535 = vmatpush.msra.mxu0 %v1446
        %1536 = vmatpush.msra.mxu0 %v1442
        %1537 = vmatpush.msra.mxu0 %v1438
        %1538 = vmatpush.msra.mxu0 %v1434
        %1539 = vmatpush.msra.mxu0 %v1430
        %1540 = vmatpush.msra.mxu0 %v1426
        %1541 = vmatpush.msra.mxu0 %v1422
        %1542 = vmatpush.msra.mxu0 %v1418
        %1543 = vmatpush.msra.mxu0 %v1414
        %1544 = vmatpush.msra.mxu0 %v1410
        %1545 = vmatpush.msra.mxu0 %v1406
        %1546 = vmatpush.msra.mxu0 %v1402
        %1547 = vmatpush.msra.mxu0 %v1398
        %1548 = vmatmul.f32.gmra.mxu0 %v1528
        %v1549 = vpop.f32.mrf.mxu0
        %v1550 = vadd.f32 0.0, %v1549
        %1551 = vdwg.mxu0
        %1552 = vmatpush.msra.mxu0 %v1522
        %1553 = vmatpush.msra.mxu0 %v1518
        %1554 = vmatpush.msra.mxu0 %v1514
        %1555 = vmatpush.msra.mxu0 %v1510
        %1556 = vmatpush.msra.mxu0 %v1506
        %1557 = vmatpush.msra.mxu0 %v1502
        %1558 = vmatpush.msra.mxu0 %v1498
        %1559 = vmatpush.msra.mxu0 %v1494
        %1560 = vmatpush.msra.mxu0 %v1490
        %1561 = vmatpush.msra.mxu0 %v1486
        %1562 = vmatpush.msra.mxu0 %v1482
        %1563 = vmatpush.msra.mxu0 %v1478
        %1564 = vmatpush.msra.mxu0 %v1474
        %1565 = vmatpush.msra.mxu0 %v1470
        %1566 = vmatpush.msra.mxu0 %v1466
        %1567 = vmatpush.msra.mxu0 %v1462
        %1568 = vmatmul.f32.gmra.mxu0 %v1529
        %v1569 = vpop.f32.mrf.mxu0
        %v1570 = vadd.f32 %v1550, %v1569
        %1571 = vdwg.mxu0
        %1572 = vmatpush.msra.mxu0 %v1459
        %1573 = vmatpush.msra.mxu0 %v1455
        %1574 = vmatpush.msra.mxu0 %v1451
        %1575 = vmatpush.msra.mxu0 %v1447
        %1576 = vmatpush.msra.mxu0 %v1443
        %1577 = vmatpush.msra.mxu0 %v1439
        %1578 = vmatpush.msra.mxu0 %v1435
        %1579 = vmatpush.msra.mxu0 %v1431
        %1580 = vmatpush.msra.mxu0 %v1427
        %1581 = vmatpush.msra.mxu0 %v1423
        %1582 = vmatpush.msra.mxu0 %v1419
        %1583 = vmatpush.msra.mxu0 %v1415
        %1584 = vmatpush.msra.mxu0 %v1411
        %1585 = vmatpush.msra.mxu0 %v1407
        %1586 = vmatpush.msra.mxu0 %v1403
        %1587 = vmatpush.msra.mxu0 %v1399
        %1588 = vmatmul.f32.gmra.mxu0 %v1528
        %v1589 = vpop.f32.mrf.mxu0
        %v1590 = vadd.f32 0.0, %v1589
        %1591 = vdwg.mxu0
        %1592 = vmatpush.msra.mxu0 %v1523
        %1593 = vmatpush.msra.mxu0 %v1519
        %1594 = vmatpush.msra.mxu0 %v1515
        %1595 = vmatpush.msra.mxu0 %v1511
        %1596 = vmatpush.msra.mxu0 %v1507
        %1597 = vmatpush.msra.mxu0 %v1503
        %1598 = vmatpush.msra.mxu0 %v1499
        %1599 = vmatpush.msra.mxu0 %v1495
        %1600 = vmatpush.msra.mxu0 %v1491
        %1601 = vmatpush.msra.mxu0 %v1487
        %1602 = vmatpush.msra.mxu0 %v1483
        %1603 = vmatpush.msra.mxu0 %v1479
        %1604 = vmatpush.msra.mxu0 %v1475
        %1605 = vmatpush.msra.mxu0 %v1471
        %1606 = vmatpush.msra.mxu0 %v1467
        %1607 = vmatpush.msra.mxu0 %v1463
        %1608 = vmatmul.f32.gmra.mxu0 %v1529
        %v1609 = vpop.f32.mrf.mxu0
        %v1610 = vadd.f32 %v1590, %v1609
        %1611 = vdwg.mxu0
        %1612 = vmatpush.msra.mxu0 %v1460
        %1613 = vmatpush.msra.mxu0 %v1456
        %1614 = vmatpush.msra.mxu0 %v1452
        %1615 = vmatpush.msra.mxu0 %v1448
        %1616 = vmatpush.msra.mxu0 %v1444
        %1617 = vmatpush.msra.mxu0 %v1440
        %1618 = vmatpush.msra.mxu0 %v1436
        %1619 = vmatpush.msra.mxu0 %v1432
        %1620 = vmatpush.msra.mxu0 %v1428
        %1621 = vmatpush.msra.mxu0 %v1424
        %1622 = vmatpush.msra.mxu0 %v1420
        %1623 = vmatpush.msra.mxu0 %v1416
        %1624 = vmatpush.msra.mxu0 %v1412
        %1625 = vmatpush.msra.mxu0 %v1408
        %1626 = vmatpush.msra.mxu0 %v1404
        %1627 = vmatpush.msra.mxu0 %v1400
        %1628 = vmatmul.f32.gmra.mxu0 %v1528
        %v1629 = vpop.f32.mrf.mxu0
        %v1630 = vadd.f32 0.0, %v1629
        %1631 = vdwg.mxu0
        %1632 = vmatpush.msra.mxu0 %v1524
        %1633 = vmatpush.msra.mxu0 %v1520
        %1634 = vmatpush.msra.mxu0 %v1516
        %1635 = vmatpush.msra.mxu0 %v1512
        %1636 = vmatpush.msra.mxu0 %v1508
        %1637 = vmatpush.msra.mxu0 %v1504
        %1638 = vmatpush.msra.mxu0 %v1500
        %1639 = vmatpush.msra.mxu0 %v1496
        %1640 = vmatpush.msra.mxu0 %v1492
        %1641 = vmatpush.msra.mxu0 %v1488
        %1642 = vmatpush.msra.mxu0 %v1484
        %1643 = vmatpush.msra.mxu0 %v1480
        %1644 = vmatpush.msra.mxu0 %v1476
        %1645 = vmatpush.msra.mxu0 %v1472
        %1646 = vmatpush.msra.mxu0 %v1468
        %1647 = vmatpush.msra.mxu0 %v1464
        %1648 = vmatmul.f32.gmra.mxu0 %v1529
        %v1649 = vpop.f32.mrf.mxu0
        %v1650 = vadd.f32 %v1630, %v1649
        %1651 = vdwg.mxu0
        %1652 = vmatpush.msra.mxu0 %v1461
        %1653 = vmatpush.msra.mxu0 %v1457
        %1654 = vmatpush.msra.mxu0 %v1453
        %1655 = vmatpush.msra.mxu0 %v1449
        %1656 = vmatpush.msra.mxu0 %v1445
        %1657 = vmatpush.msra.mxu0 %v1441
        %1658 = vmatpush.msra.mxu0 %v1437
        %1659 = vmatpush.msra.mxu0 %v1433
        %1660 = vmatpush.msra.mxu0 %v1429
        %1661 = vmatpush.msra.mxu0 %v1425
        %1662 = vmatpush.msra.mxu0 %v1421
        %1663 = vmatpush.msra.mxu0 %v1417
        %1664 = vmatpush.msra.mxu0 %v1413
        %1665 = vmatpush.msra.mxu0 %v1409
        %1666 = vmatpush.msra.mxu0 %v1405
        %1667 = vmatpush.msra.mxu0 %v1401
        %1668 = vmatmul.f32.gmra.mxu0 %v1528
        %v1669 = vpop.f32.mrf.mxu0
        %v1670 = vadd.f32 0.0, %v1669
        %1671 = vdwg.mxu0
        %1672 = vmatpush.msra.mxu0 %v1525
        %1673 = vmatpush.msra.mxu0 %v1521
        %1674 = vmatpush.msra.mxu0 %v1517
        %1675 = vmatpush.msra.mxu0 %v1513
        %1676 = vmatpush.msra.mxu0 %v1509
        %1677 = vmatpush.msra.mxu0 %v1505
        %1678 = vmatpush.msra.mxu0 %v1501
        %1679 = vmatpush.msra.mxu0 %v1497
        %1680 = vmatpush.msra.mxu0 %v1493
        %1681 = vmatpush.msra.mxu0 %v1489
        %1682 = vmatpush.msra.mxu0 %v1485
        %1683 = vmatpush.msra.mxu0 %v1481
        %1684 = vmatpush.msra.mxu0 %v1477
        %1685 = vmatpush.msra.mxu0 %v1473
        %1686 = vmatpush.msra.mxu0 %v1469
        %1687 = vmatpush.msra.mxu0 %v1465
        %1688 = vmatmul.f32.gmra.mxu0 %v1529
        %v1689 = vpop.f32.mrf.mxu0
        %v1690 = vadd.f32 %v1670, %v1689
        %1691 = vdwg.mxu0
        %1692 = vmatpush.msra.mxu0 %v1327
        %1693 = vmatpush.msra.mxu0 %v1323
        %1694 = vmatpush.msra.mxu0 %v1319
        %1695 = vmatpush.msra.mxu0 %v1315
        %1696 = vmatpush.msra.mxu0 %v1311
        %1697 = vmatpush.msra.mxu0 %v1307
        %1698 = vmatpush.msra.mxu0 %v1303
        %1699 = vmatpush.msra.mxu0 %v1299
        %1700 = vmatpush.msra.mxu0 %v1295
        %1701 = vmatpush.msra.mxu0 %v1291
        %1702 = vmatpush.msra.mxu0 %v1287
        %1703 = vmatpush.msra.mxu0 %v1283
        %1704 = vmatpush.msra.mxu0 %v1279
        %1705 = vmatpush.msra.mxu0 %v1275
        %1706 = vmatpush.msra.mxu0 %v1271
        %1707 = vmatpush.msra.mxu0 %v1267
        %1708 = vmatmul.f32.gmra.mxu0 %v1265
        %v1709 = vpop.f32.mrf.mxu0
        %v1710 = vadd.f32 %v1570, %v1709
        %1711 = vdwg.mxu0
        %1712 = vmatpush.msra.mxu0 %v1391
        %1713 = vmatpush.msra.mxu0 %v1387
        %1714 = vmatpush.msra.mxu0 %v1383
        %1715 = vmatpush.msra.mxu0 %v1379
        %1716 = vmatpush.msra.mxu0 %v1375
        %1717 = vmatpush.msra.mxu0 %v1371
        %1718 = vmatpush.msra.mxu0 %v1367
        %1719 = vmatpush.msra.mxu0 %v1363
        %1720 = vmatpush.msra.mxu0 %v1359
        %1721 = vmatpush.msra.mxu0 %v1355
        %1722 = vmatpush.msra.mxu0 %v1351
        %1723 = vmatpush.msra.mxu0 %v1347
        %1724 = vmatpush.msra.mxu0 %v1343
        %1725 = vmatpush.msra.mxu0 %v1339
        %1726 = vmatpush.msra.mxu0 %v1335
        %1727 = vmatpush.msra.mxu0 %v1331
        %1728 = vmatmul.f32.gmra.mxu0 %v1266
        %v1729 = vpop.f32.mrf.mxu0
        %v1730 = vadd.f32 %v1710, %v1729
        %1731 = vdwg.mxu0
        %1732 = vmatpush.msra.mxu0 %v1328
        %1733 = vmatpush.msra.mxu0 %v1324
        %1734 = vmatpush.msra.mxu0 %v1320
        %1735 = vmatpush.msra.mxu0 %v1316
        %1736 = vmatpush.msra.mxu0 %v1312
        %1737 = vmatpush.msra.mxu0 %v1308
        %1738 = vmatpush.msra.mxu0 %v1304
        %1739 = vmatpush.msra.mxu0 %v1300
        %1740 = vmatpush.msra.mxu0 %v1296
        %1741 = vmatpush.msra.mxu0 %v1292
        %1742 = vmatpush.msra.mxu0 %v1288
        %1743 = vmatpush.msra.mxu0 %v1284
        %1744 = vmatpush.msra.mxu0 %v1280
        %1745 = vmatpush.msra.mxu0 %v1276
        %1746 = vmatpush.msra.mxu0 %v1272
        %1747 = vmatpush.msra.mxu0 %v1268
        %1748 = vmatmul.f32.gmra.mxu0 %v1265
        %v1749 = vpop.f32.mrf.mxu0
        %v1750 = vadd.f32 %v1610, %v1749
        %1751 = vdwg.mxu0
        %1752 = vmatpush.msra.mxu0 %v1392
        %1753 = vmatpush.msra.mxu0 %v1388
        %1754 = vmatpush.msra.mxu0 %v1384
        %1755 = vmatpush.msra.mxu0 %v1380
        %1756 = vmatpush.msra.mxu0 %v1376
        %1757 = vmatpush.msra.mxu0 %v1372
        %1758 = vmatpush.msra.mxu0 %v1368
        %1759 = vmatpush.msra.mxu0 %v1364
        %1760 = vmatpush.msra.mxu0 %v1360
        %1761 = vmatpush.msra.mxu0 %v1356
        %1762 = vmatpush.msra.mxu0 %v1352
        %1763 = vmatpush.msra.mxu0 %v1348
        %1764 = vmatpush.msra.mxu0 %v1344
        %1765 = vmatpush.msra.mxu0 %v1340
        %1766 = vmatpush.msra.mxu0 %v1336
        %1767 = vmatpush.msra.mxu0 %v1332
        %1768 = vmatmul.f32.gmra.mxu0 %v1266
        %v1769 = vpop.f32.mrf.mxu0
        %v1770 = vadd.f32 %v1750, %v1769
        %1771 = vdwg.mxu0
        %1772 = vmatpush.msra.mxu0 %v1329
        %1773 = vmatpush.msra.mxu0 %v1325
        %1774 = vmatpush.msra.mxu0 %v1321
        %1775 = vmatpush.msra.mxu0 %v1317
        %1776 = vmatpush.msra.mxu0 %v1313
        %1777 = vmatpush.msra.mxu0 %v1309
        %1778 = vmatpush.msra.mxu0 %v1305
        %1779 = vmatpush.msra.mxu0 %v1301
        %1780 = vmatpush.msra.mxu0 %v1297
        %1781 = vmatpush.msra.mxu0 %v1293
        %1782 = vmatpush.msra.mxu0 %v1289
        %1783 = vmatpush.msra.mxu0 %v1285
        %1784 = vmatpush.msra.mxu0 %v1281
        %1785 = vmatpush.msra.mxu0 %v1277
        %1786 = vmatpush.msra.mxu0 %v1273
        %1787 = vmatpush.msra.mxu0 %v1269
        %1788 = vmatmul.f32.gmra.mxu0 %v1265
        %v1789 = vpop.f32.mrf.mxu0
        %v1790 = vadd.f32 %v1650, %v1789
        %1791 = vdwg.mxu0
        %1792 = vmatpush.msra.mxu0 %v1393
        %1793 = vmatpush.msra.mxu0 %v1389
        %1794 = vmatpush.msra.mxu0 %v1385
        %1795 = vmatpush.msra.mxu0 %v1381
        %1796 = vmatpush.msra.mxu0 %v1377
        %1797 = vmatpush.msra.mxu0 %v1373
        %1798 = vmatpush.msra.mxu0 %v1369
        %1799 = vmatpush.msra.mxu0 %v1365
        %1800 = vmatpush.msra.mxu0 %v1361
        %1801 = vmatpush.msra.mxu0 %v1357
        %1802 = vmatpush.msra.mxu0 %v1353
        %1803 = vmatpush.msra.mxu0 %v1349
        %1804 = vmatpush.msra.mxu0 %v1345
        %1805 = vmatpush.msra.mxu0 %v1341
        %1806 = vmatpush.msra.mxu0 %v1337
        %1807 = vmatpush.msra.mxu0 %v1333
        %1808 = vmatmul.f32.gmra.mxu0 %v1266
        %v1809 = vpop.f32.mrf.mxu0
        %v1810 = vadd.f32 %v1790, %v1809
        %1811 = vdwg.mxu0
        %1812 = vmatpush.msra.mxu0 %v1330
        %1813 = vmatpush.msra.mxu0 %v1326
        %1814 = vmatpush.msra.mxu0 %v1322
        %1815 = vmatpush.msra.mxu0 %v1318
        %1816 = vmatpush.msra.mxu0 %v1314
        %1817 = vmatpush.msra.mxu0 %v1310
        %1818 = vmatpush.msra.mxu0 %v1306
        %1819 = vmatpush.msra.mxu0 %v1302
        %1820 = vmatpush.msra.mxu0 %v1298
        %1821 = vmatpush.msra.mxu0 %v1294
        %1822 = vmatpush.msra.mxu0 %v1290
        %1823 = vmatpush.msra.mxu0 %v1286
        %1824 = vmatpush.msra.mxu0 %v1282
        %1825 = vmatpush.msra.mxu0 %v1278
        %1826 = vmatpush.msra.mxu0 %v1274
        %1827 = vmatpush.msra.mxu0 %v1270
        %1828 = vmatmul.f32.gmra.mxu0 %v1265
        %v1829 = vpop.f32.mrf.mxu0
        %v1830 = vadd.f32 %v1690, %v1829
        %1831 = vdwg.mxu0
        %1832 = vmatpush.msra.mxu0 %v1394
        %1833 = vmatpush.msra.mxu0 %v1390
        %1834 = vmatpush.msra.mxu0 %v1386
        %1835 = vmatpush.msra.mxu0 %v1382
        %1836 = vmatpush.msra.mxu0 %v1378
        %1837 = vmatpush.msra.mxu0 %v1374
        %1838 = vmatpush.msra.mxu0 %v1370
        %1839 = vmatpush.msra.mxu0 %v1366
        %1840 = vmatpush.msra.mxu0 %v1362
        %1841 = vmatpush.msra.mxu0 %v1358
        %1842 = vmatpush.msra.mxu0 %v1354
        %1843 = vmatpush.msra.mxu0 %v1350
        %1844 = vmatpush.msra.mxu0 %v1346
        %1845 = vmatpush.msra.mxu0 %v1342
        %1846 = vmatpush.msra.mxu0 %v1338
        %1847 = vmatpush.msra.mxu0 %v1334
        %1848 = vmatmul.f32.gmra.mxu0 %v1266
        %v1849 = vpop.f32.mrf.mxu0
        %v1850 = vadd.f32 %v1830, %v1849
        %1851 = vdwg.mxu0
        %v1852 = vld [vmem:[#allocation4] sm:$0x3c]
        %v1853 = vld [vmem:[#allocation4 + $0x8] sm:$0x3c]
        %s1854 = scalar_lea.vmem [#allocation13], 2048
        %v1855 = vld [vmem:[%s1854] sm:$0xff]
        %v1856 = vld [vmem:[%s1854 + $0x8] sm:$0xff]
        %v1857 = vld [vmem:[%s1854 + $0x10] sm:$0xff]
        %v1858 = vld [vmem:[%s1854 + $0x18] sm:$0xff]
        %v1859 = vld [vmem:[%s1854 + $0x20] sm:$0xff]
        %v1860 = vld [vmem:[%s1854 + $0x28] sm:$0xff]
        %v1861 = vld [vmem:[%s1854 + $0x30] sm:$0xff]
        %v1862 = vld [vmem:[%s1854 + $0x38] sm:$0xff]
        %v1863 = vld [vmem:[%s1854 + $0x40] sm:$0xff]
        %v1864 = vld [vmem:[%s1854 + $0x48] sm:$0xff]
        %v1865 = vld [vmem:[%s1854 + $0x50] sm:$0xff]
        %v1866 = vld [vmem:[%s1854 + $0x58] sm:$0xff]
        %v1867 = vld [vmem:[%s1854 + $0x60] sm:$0xff]
        %v1868 = vld [vmem:[%s1854 + $0x68] sm:$0xff]
        %v1869 = vld [vmem:[%s1854 + $0x70] sm:$0xff]
        %v1870 = vld [vmem:[%s1854 + $0x78] sm:$0xff]
        %v1871 = vld [vmem:[%s1854 + $0x80] sm:$0xff]
        %v1872 = vld [vmem:[%s1854 + $0x88] sm:$0xff]
        %v1873 = vld [vmem:[%s1854 + $0x90] sm:$0xff]
        %v1874 = vld [vmem:[%s1854 + $0x98] sm:$0xff]
        %v1875 = vld [vmem:[%s1854 + $0xa0] sm:$0xff]
        %v1876 = vld [vmem:[%s1854 + $0xa8] sm:$0xff]
        %v1877 = vld [vmem:[%s1854 + $0xb0] sm:$0xff]
        %v1878 = vld [vmem:[%s1854 + $0xb8] sm:$0xff]
        %v1879 = vld [vmem:[%s1854 + $0xc0] sm:$0xff]
        %v1880 = vld [vmem:[%s1854 + $0xc8] sm:$0xff]
        %v1881 = vld [vmem:[%s1854 + $0xd0] sm:$0xff]
        %v1882 = vld [vmem:[%s1854 + $0xd8] sm:$0xff]
        %v1883 = vld [vmem:[%s1854 + $0xe0] sm:$0xff]
        %v1884 = vld [vmem:[%s1854 + $0xe8] sm:$0xff]
        %v1885 = vld [vmem:[%s1854 + $0xf0] sm:$0xff]
        %v1886 = vld [vmem:[%s1854 + $0xf8] sm:$0xff]
        %v1887 = vld [vmem:[%s1854 + $0x100] sm:$0xff]
        %v1888 = vld [vmem:[%s1854 + $0x108] sm:$0xff]
        %v1889 = vld [vmem:[%s1854 + $0x110] sm:$0xff]
        %v1890 = vld [vmem:[%s1854 + $0x118] sm:$0xff]
        %v1891 = vld [vmem:[%s1854 + $0x120] sm:$0xff]
        %v1892 = vld [vmem:[%s1854 + $0x128] sm:$0xff]
        %v1893 = vld [vmem:[%s1854 + $0x130] sm:$0xff]
        %v1894 = vld [vmem:[%s1854 + $0x138] sm:$0xff]
        %v1895 = vld [vmem:[%s1854 + $0x140] sm:$0xff]
        %v1896 = vld [vmem:[%s1854 + $0x148] sm:$0xff]
        %v1897 = vld [vmem:[%s1854 + $0x150] sm:$0xff]
        %v1898 = vld [vmem:[%s1854 + $0x158] sm:$0xff]
        %v1899 = vld [vmem:[%s1854 + $0x160] sm:$0xff]
        %v1900 = vld [vmem:[%s1854 + $0x168] sm:$0xff]
        %v1901 = vld [vmem:[%s1854 + $0x170] sm:$0xff]
        %v1902 = vld [vmem:[%s1854 + $0x178] sm:$0xff]
        %v1903 = vld [vmem:[%s1854 + $0x180] sm:$0xff]
        %v1904 = vld [vmem:[%s1854 + $0x188] sm:$0xff]
        %v1905 = vld [vmem:[%s1854 + $0x190] sm:$0xff]
        %v1906 = vld [vmem:[%s1854 + $0x198] sm:$0xff]
        %v1907 = vld [vmem:[%s1854 + $0x1a0] sm:$0xff]
        %v1908 = vld [vmem:[%s1854 + $0x1a8] sm:$0xff]
        %v1909 = vld [vmem:[%s1854 + $0x1b0] sm:$0xff]
        %v1910 = vld [vmem:[%s1854 + $0x1b8] sm:$0xff]
        %v1911 = vld [vmem:[%s1854 + $0x1c0] sm:$0xff]
        %v1912 = vld [vmem:[%s1854 + $0x1c8] sm:$0xff]
        %v1913 = vld [vmem:[%s1854 + $0x1d0] sm:$0xff]
        %v1914 = vld [vmem:[%s1854 + $0x1d8] sm:$0xff]
        %v1915 = vld [vmem:[%s1854 + $0x1e0] sm:$0xff]
        %v1916 = vld [vmem:[%s1854 + $0x1e8] sm:$0xff]
        %v1917 = vld [vmem:[%s1854 + $0x1f0] sm:$0xff]
        %v1918 = vld [vmem:[%s1854 + $0x1f8] sm:$0xff]
        %v1919 = vld [vmem:[%s1854 + $0x200] sm:$0xff]
        %v1920 = vld [vmem:[%s1854 + $0x208] sm:$0xff]
        %v1921 = vld [vmem:[%s1854 + $0x210] sm:$0xff]
        %v1922 = vld [vmem:[%s1854 + $0x218] sm:$0xff]
        %v1923 = vld [vmem:[%s1854 + $0x220] sm:$0xff]
        %v1924 = vld [vmem:[%s1854 + $0x228] sm:$0xff]
        %v1925 = vld [vmem:[%s1854 + $0x230] sm:$0xff]
        %v1926 = vld [vmem:[%s1854 + $0x238] sm:$0xff]
        %v1927 = vld [vmem:[%s1854 + $0x240] sm:$0xff]
        %v1928 = vld [vmem:[%s1854 + $0x248] sm:$0xff]
        %v1929 = vld [vmem:[%s1854 + $0x250] sm:$0xff]
        %v1930 = vld [vmem:[%s1854 + $0x258] sm:$0xff]
        %v1931 = vld [vmem:[%s1854 + $0x260] sm:$0xff]
        %v1932 = vld [vmem:[%s1854 + $0x268] sm:$0xff]
        %v1933 = vld [vmem:[%s1854 + $0x270] sm:$0xff]
        %v1934 = vld [vmem:[%s1854 + $0x278] sm:$0xff]
        %v1935 = vld [vmem:[%s1854 + $0x280] sm:$0xff]
        %v1936 = vld [vmem:[%s1854 + $0x288] sm:$0xff]
        %v1937 = vld [vmem:[%s1854 + $0x290] sm:$0xff]
        %v1938 = vld [vmem:[%s1854 + $0x298] sm:$0xff]
        %v1939 = vld [vmem:[%s1854 + $0x2a0] sm:$0xff]
        %v1940 = vld [vmem:[%s1854 + $0x2a8] sm:$0xff]
        %v1941 = vld [vmem:[%s1854 + $0x2b0] sm:$0xff]
        %v1942 = vld [vmem:[%s1854 + $0x2b8] sm:$0xff]
        %v1943 = vld [vmem:[%s1854 + $0x2c0] sm:$0xff]
        %v1944 = vld [vmem:[%s1854 + $0x2c8] sm:$0xff]
        %v1945 = vld [vmem:[%s1854 + $0x2d0] sm:$0xff]
        %v1946 = vld [vmem:[%s1854 + $0x2d8] sm:$0xff]
        %v1947 = vld [vmem:[%s1854 + $0x2e0] sm:$0xff]
        %v1948 = vld [vmem:[%s1854 + $0x2e8] sm:$0xff]
        %v1949 = vld [vmem:[%s1854 + $0x2f0] sm:$0xff]
        %v1950 = vld [vmem:[%s1854 + $0x2f8] sm:$0xff]
        %v1951 = vld [vmem:[%s1854 + $0x300] sm:$0xff]
        %v1952 = vld [vmem:[%s1854 + $0x308] sm:$0xff]
        %v1953 = vld [vmem:[%s1854 + $0x310] sm:$0xff]
        %v1954 = vld [vmem:[%s1854 + $0x318] sm:$0xff]
        %v1955 = vld [vmem:[%s1854 + $0x320] sm:$0xff]
        %v1956 = vld [vmem:[%s1854 + $0x328] sm:$0xff]
        %v1957 = vld [vmem:[%s1854 + $0x330] sm:$0xff]
        %v1958 = vld [vmem:[%s1854 + $0x338] sm:$0xff]
        %v1959 = vld [vmem:[%s1854 + $0x340] sm:$0xff]
        %v1960 = vld [vmem:[%s1854 + $0x348] sm:$0xff]
        %v1961 = vld [vmem:[%s1854 + $0x350] sm:$0xff]
        %v1962 = vld [vmem:[%s1854 + $0x358] sm:$0xff]
        %v1963 = vld [vmem:[%s1854 + $0x360] sm:$0xff]
        %v1964 = vld [vmem:[%s1854 + $0x368] sm:$0xff]
        %v1965 = vld [vmem:[%s1854 + $0x370] sm:$0xff]
        %v1966 = vld [vmem:[%s1854 + $0x378] sm:$0xff]
        %v1967 = vld [vmem:[%s1854 + $0x380] sm:$0xff]
        %v1968 = vld [vmem:[%s1854 + $0x388] sm:$0xff]
        %v1969 = vld [vmem:[%s1854 + $0x390] sm:$0xff]
        %v1970 = vld [vmem:[%s1854 + $0x398] sm:$0xff]
        %v1971 = vld [vmem:[%s1854 + $0x3a0] sm:$0xff]
        %v1972 = vld [vmem:[%s1854 + $0x3a8] sm:$0xff]
        %v1973 = vld [vmem:[%s1854 + $0x3b0] sm:$0xff]
        %v1974 = vld [vmem:[%s1854 + $0x3b8] sm:$0xff]
        %v1975 = vld [vmem:[%s1854 + $0x3c0] sm:$0xff]
        %v1976 = vld [vmem:[%s1854 + $0x3c8] sm:$0xff]
        %v1977 = vld [vmem:[%s1854 + $0x3d0] sm:$0xff]
        %v1978 = vld [vmem:[%s1854 + $0x3d8] sm:$0xff]
        %v1979 = vld [vmem:[%s1854 + $0x3e0] sm:$0xff]
        %v1980 = vld [vmem:[%s1854 + $0x3e8] sm:$0xff]
        %v1981 = vld [vmem:[%s1854 + $0x3f0] sm:$0xff]
        %v1982 = vld [vmem:[%s1854 + $0x3f8] sm:$0xff]
        %v1985 = vrot.slane %v1852, 2
        %v1986 = vrot.slane %v1853, 2
        %1989 = vmatpush.msra.mxu0 %v1915
        %1990 = vmatpush.msra.mxu0 %v1911
        %1991 = vmatpush.msra.mxu0 %v1907
        %1992 = vmatpush.msra.mxu0 %v1903
        %1993 = vmatpush.msra.mxu0 %v1899
        %1994 = vmatpush.msra.mxu0 %v1895
        %1995 = vmatpush.msra.mxu0 %v1891
        %1996 = vmatpush.msra.mxu0 %v1887
        %1997 = vmatpush.msra.mxu0 %v1883
        %1998 = vmatpush.msra.mxu0 %v1879
        %1999 = vmatpush.msra.mxu0 %v1875
        %2000 = vmatpush.msra.mxu0 %v1871
        %2001 = vmatpush.msra.mxu0 %v1867
        %2002 = vmatpush.msra.mxu0 %v1863
        %2003 = vmatpush.msra.mxu0 %v1859
        %2004 = vmatpush.msra.mxu0 %v1855
        %2005 = vmatmul.f32.gmra.mxu0 %v1985
        %v2006 = vpop.f32.mrf.mxu0
        %v2007 = vadd.f32 0.0, %v2006
        %2008 = vdwg.mxu0
        %2009 = vmatpush.msra.mxu0 %v1979
        %2010 = vmatpush.msra.mxu0 %v1975
        %2011 = vmatpush.msra.mxu0 %v1971
        %2012 = vmatpush.msra.mxu0 %v1967
        %2013 = vmatpush.msra.mxu0 %v1963
        %2014 = vmatpush.msra.mxu0 %v1959
        %2015 = vmatpush.msra.mxu0 %v1955
        %2016 = vmatpush.msra.mxu0 %v1951
        %2017 = vmatpush.msra.mxu0 %v1947
        %2018 = vmatpush.msra.mxu0 %v1943
        %2019 = vmatpush.msra.mxu0 %v1939
        %2020 = vmatpush.msra.mxu0 %v1935
        %2021 = vmatpush.msra.mxu0 %v1931
        %2022 = vmatpush.msra.mxu0 %v1927
        %2023 = vmatpush.msra.mxu0 %v1923
        %2024 = vmatpush.msra.mxu0 %v1919
        %2025 = vmatmul.f32.gmra.mxu0 %v1986
        %v2026 = vpop.f32.mrf.mxu0
        %v2027 = vadd.f32 %v2007, %v2026
        %2028 = vdwg.mxu0
        %2029 = vmatpush.msra.mxu0 %v1916
        %2030 = vmatpush.msra.mxu0 %v1912
        %2031 = vmatpush.msra.mxu0 %v1908
        %2032 = vmatpush.msra.mxu0 %v1904
        %2033 = vmatpush.msra.mxu0 %v1900
        %2034 = vmatpush.msra.mxu0 %v1896
        %2035 = vmatpush.msra.mxu0 %v1892
        %2036 = vmatpush.msra.mxu0 %v1888
        %2037 = vmatpush.msra.mxu0 %v1884
        %2038 = vmatpush.msra.mxu0 %v1880
        %2039 = vmatpush.msra.mxu0 %v1876
        %2040 = vmatpush.msra.mxu0 %v1872
        %2041 = vmatpush.msra.mxu0 %v1868
        %2042 = vmatpush.msra.mxu0 %v1864
        %2043 = vmatpush.msra.mxu0 %v1860
        %2044 = vmatpush.msra.mxu0 %v1856
        %2045 = vmatmul.f32.gmra.mxu0 %v1985
        %v2046 = vpop.f32.mrf.mxu0
        %v2047 = vadd.f32 0.0, %v2046
        %2048 = vdwg.mxu0
        %2049 = vmatpush.msra.mxu0 %v1980
        %2050 = vmatpush.msra.mxu0 %v1976
        %2051 = vmatpush.msra.mxu0 %v1972
        %2052 = vmatpush.msra.mxu0 %v1968
        %2053 = vmatpush.msra.mxu0 %v1964
        %2054 = vmatpush.msra.mxu0 %v1960
        %2055 = vmatpush.msra.mxu0 %v1956
        %2056 = vmatpush.msra.mxu0 %v1952
        %2057 = vmatpush.msra.mxu0 %v1948
        %2058 = vmatpush.msra.mxu0 %v1944
        %2059 = vmatpush.msra.mxu0 %v1940
        %2060 = vmatpush.msra.mxu0 %v1936
        %2061 = vmatpush.msra.mxu0 %v1932
        %2062 = vmatpush.msra.mxu0 %v1928
        %2063 = vmatpush.msra.mxu0 %v1924
        %2064 = vmatpush.msra.mxu0 %v1920
        %2065 = vmatmul.f32.gmra.mxu0 %v1986
        %v2066 = vpop.f32.mrf.mxu0
        %v2067 = vadd.f32 %v2047, %v2066
        %2068 = vdwg.mxu0
        %2069 = vmatpush.msra.mxu0 %v1917
        %2070 = vmatpush.msra.mxu0 %v1913
        %2071 = vmatpush.msra.mxu0 %v1909
        %2072 = vmatpush.msra.mxu0 %v1905
        %2073 = vmatpush.msra.mxu0 %v1901
        %2074 = vmatpush.msra.mxu0 %v1897
        %2075 = vmatpush.msra.mxu0 %v1893
        %2076 = vmatpush.msra.mxu0 %v1889
        %2077 = vmatpush.msra.mxu0 %v1885
        %2078 = vmatpush.msra.mxu0 %v1881
        %2079 = vmatpush.msra.mxu0 %v1877
        %2080 = vmatpush.msra.mxu0 %v1873
        %2081 = vmatpush.msra.mxu0 %v1869
        %2082 = vmatpush.msra.mxu0 %v1865
        %2083 = vmatpush.msra.mxu0 %v1861
        %2084 = vmatpush.msra.mxu0 %v1857
        %2085 = vmatmul.f32.gmra.mxu0 %v1985
        %v2086 = vpop.f32.mrf.mxu0
        %v2087 = vadd.f32 0.0, %v2086
        %2088 = vdwg.mxu0
        %2089 = vmatpush.msra.mxu0 %v1981
        %2090 = vmatpush.msra.mxu0 %v1977
        %2091 = vmatpush.msra.mxu0 %v1973
        %2092 = vmatpush.msra.mxu0 %v1969
        %2093 = vmatpush.msra.mxu0 %v1965
        %2094 = vmatpush.msra.mxu0 %v1961
        %2095 = vmatpush.msra.mxu0 %v1957
        %2096 = vmatpush.msra.mxu0 %v1953
        %2097 = vmatpush.msra.mxu0 %v1949
        %2098 = vmatpush.msra.mxu0 %v1945
        %2099 = vmatpush.msra.mxu0 %v1941
        %2100 = vmatpush.msra.mxu0 %v1937
        %2101 = vmatpush.msra.mxu0 %v1933
        %2102 = vmatpush.msra.mxu0 %v1929
        %2103 = vmatpush.msra.mxu0 %v1925
        %2104 = vmatpush.msra.mxu0 %v1921
        %2105 = vmatmul.f32.gmra.mxu0 %v1986
        %v2106 = vpop.f32.mrf.mxu0
        %v2107 = vadd.f32 %v2087, %v2106
        %2108 = vdwg.mxu0
        %2109 = vmatpush.msra.mxu0 %v1918
        %2110 = vmatpush.msra.mxu0 %v1914
        %2111 = vmatpush.msra.mxu0 %v1910
        %2112 = vmatpush.msra.mxu0 %v1906
        %2113 = vmatpush.msra.mxu0 %v1902
        %2114 = vmatpush.msra.mxu0 %v1898
        %2115 = vmatpush.msra.mxu0 %v1894
        %2116 = vmatpush.msra.mxu0 %v1890
        %2117 = vmatpush.msra.mxu0 %v1886
        %2118 = vmatpush.msra.mxu0 %v1882
        %2119 = vmatpush.msra.mxu0 %v1878
        %2120 = vmatpush.msra.mxu0 %v1874
        %2121 = vmatpush.msra.mxu0 %v1870
        %2122 = vmatpush.msra.mxu0 %v1866
        %2123 = vmatpush.msra.mxu0 %v1862
        %2124 = vmatpush.msra.mxu0 %v1858
        %2125 = vmatmul.f32.gmra.mxu0 %v1985
        %v2126 = vpop.f32.mrf.mxu0
        %v2127 = vadd.f32 0.0, %v2126
        %2128 = vdwg.mxu0
        %2129 = vmatpush.msra.mxu0 %v1982
        %2130 = vmatpush.msra.mxu0 %v1978
        %2131 = vmatpush.msra.mxu0 %v1974
        %2132 = vmatpush.msra.mxu0 %v1970
        %2133 = vmatpush.msra.mxu0 %v1966
        %2134 = vmatpush.msra.mxu0 %v1962
        %2135 = vmatpush.msra.mxu0 %v1958
        %2136 = vmatpush.msra.mxu0 %v1954
        %2137 = vmatpush.msra.mxu0 %v1950
        %2138 = vmatpush.msra.mxu0 %v1946
        %2139 = vmatpush.msra.mxu0 %v1942
        %2140 = vmatpush.msra.mxu0 %v1938
        %2141 = vmatpush.msra.mxu0 %v1934
        %2142 = vmatpush.msra.mxu0 %v1930
        %2143 = vmatpush.msra.mxu0 %v1926
        %2144 = vmatpush.msra.mxu0 %v1922
        %2145 = vmatmul.f32.gmra.mxu0 %v1986
        %v2146 = vpop.f32.mrf.mxu0
        %v2147 = vadd.f32 %v2127, %v2146
        %2148 = vdwg.mxu0
        %v2149 = vadd.f32 %v1730, %v2027
        %v2150 = vadd.f32 %v1770, %v2067
        %v2151 = vadd.f32 %v1810, %v2107
        %v2152 = vadd.f32 %v1850, %v2147
        %v2153 = vld [vmem:[#allocation14] sm:$0xf]
        %v2155 = vperm.slane %v2153, 0
        %v2156 = vperm.slane %v2153, 1
        %v2157 = vperm.slane %v2153, 2
        %v2158 = vperm.slane %v2153, 3
        %v2163 = vadd.f32 %v2149, %v2155
        %v2164 = vadd.f32 %v2150, %v2156
        %v2165 = vadd.f32 %v2151, %v2157
        %v2166 = vadd.f32 %v2152, %v2158
        %v2167 = vmax.f32 %v2163, 0.0
        %v2168 = vmax.f32 %v2164, 0.0
        %v2169 = vmax.f32 %v2165, 0.0
        %v2170 = vmax.f32 %v2166, 0.0
        %vm2173 = vcmask 1040384
        %v2174 = vrot.slane %v878, 7
        %v2175 = vrot.slane %v879, 7
        %v2176 = vsel %vm2173, %v2174, %v2175
        %2180 = vst [vmem:[#allocation5] sm:$0xfe] %v2174
        %2181 = vst [vmem:[#allocation5 + $0x18] sm:$0xff] %v2176
        %2182 = vst [vmem:[#allocation5 + $0x30] sm:$0x1] %v2175
        %2183 = vst [vmem:[#allocation5 + $0x9] sm:$0x1] %v1263
        %2184 = vst [vmem:[#allocation5 + $0xa] sm:$0x1] %v1264
        %v2186 = vrot.slane %v1263, 1
        %2188 = vst [vmem:[#allocation5 + $0xb] sm:$0x1] %v2186
        %v2190 = vrot.slane %v1264, 1
        %2192 = vst [vmem:[#allocation5 + $0xc] sm:$0x1] %v2190
        %v2193 = vrot.slane %v1263, 2
        %2195 = vst [vmem:[#allocation5 + $0xd] sm:$0x1] %v2193
        %v2196 = vrot.slane %v1264, 2
        %2198 = vst [vmem:[#allocation5 + $0xe] sm:$0x1] %v2196
        %v2199 = vrot.slane %v1263, 3
        %2201 = vst [vmem:[#allocation5 + $0xf] sm:$0x1] %v2199
        %v2202 = vrot.slane %v1264, 3
        %2204 = vst [vmem:[#allocation5 + $0x20] sm:$0x1] %v2202
        %v2205 = vrot.slane %v1263, 4
        %2207 = vst [vmem:[#allocation5 + $0x21] sm:$0x1] %v2205
        %v2208 = vrot.slane %v1264, 4
        %2210 = vst [vmem:[#allocation5 + $0x22] sm:$0x1] %v2208
        %v2211 = vrot.slane %v1263, 5
        %2213 = vst [vmem:[#allocation5 + $0x23] sm:$0x1] %v2211
        %v2214 = vrot.slane %v1264, 5
        %2216 = vst [vmem:[#allocation5 + $0x24] sm:$0x1] %v2214
        %v2217 = vrot.slane %v1263, 6
        %2219 = vst [vmem:[#allocation5 + $0x25] sm:$0x1] %v2217
        %v2220 = vrot.slane %v1264, 6
        %2222 = vst [vmem:[#allocation5 + $0x26] sm:$0x1] %v2220
        %v2223 = vrot.slane %v1263, 7
        %2225 = vst [vmem:[#allocation5 + $0x27] sm:$0x1] %v2223
        %v2226 = vrot.slane %v1264, 7
        %2228 = vst [vmem:[#allocation5 + $0x38] sm:$0x1] %v2226
        %2229 = vst [vmem:[#allocation5 + $0x11] sm:$0x1] %v2167
        %2230 = vst [vmem:[#allocation5 + $0x12] sm:$0x1] %v2168
        %2231 = vst [vmem:[#allocation5 + $0x13] sm:$0x1] %v2169
        %2232 = vst [vmem:[#allocation5 + $0x14] sm:$0x1] %v2170
        %v2234 = vrot.slane %v2167, 1
        %2236 = vst [vmem:[#allocation5 + $0x15] sm:$0x1] %v2234
        %v2238 = vrot.slane %v2168, 1
        %2240 = vst [vmem:[#allocation5 + $0x16] sm:$0x1] %v2238
        %v2242 = vrot.slane %v2169, 1
        %2244 = vst [vmem:[#allocation5 + $0x17] sm:$0x1] %v2242
        %v2246 = vrot.slane %v2170, 1
        %2248 = vst [vmem:[#allocation5 + $0x28] sm:$0x1] %v2246
        %v2249 = vrot.slane %v2167, 2
        %2251 = vst [vmem:[#allocation5 + $0x29] sm:$0x1] %v2249
        %v2252 = vrot.slane %v2168, 2
        %2254 = vst [vmem:[#allocation5 + $0x2a] sm:$0x1] %v2252
        %v2255 = vrot.slane %v2169, 2
        %2257 = vst [vmem:[#allocation5 + $0x2b] sm:$0x1] %v2255
        %v2258 = vrot.slane %v2170, 2
        %2260 = vst [vmem:[#allocation5 + $0x2c] sm:$0x1] %v2258
        %v2261 = vrot.slane %v2167, 3
        %2263 = vst [vmem:[#allocation5 + $0x2d] sm:$0x1] %v2261
        %v2264 = vrot.slane %v2168, 3
        %2266 = vst [vmem:[#allocation5 + $0x2e] sm:$0x1] %v2264
        %v2267 = vrot.slane %v2169, 3
        %2269 = vst [vmem:[#allocation5 + $0x2f] sm:$0x1] %v2267
        %v2270 = vrot.slane %v2170, 3
        %2272 = vst [vmem:[#allocation5 + $0x40] sm:$0x1] %v2270
        %v2273 = vld [vmem:[#allocation5] sm:$0xff]
        %v2274 = vld [vmem:[#allocation5 + $0x8] sm:$0xff]
        %v2275 = vld [vmem:[#allocation5 + $0x10] sm:$0xff]
        %v2276 = vld [vmem:[#allocation5 + $0x18] sm:$0xff]
        %v2277 = vld [vmem:[#allocation5 + $0x20] sm:$0xff]
        %v2278 = vld [vmem:[#allocation5 + $0x28] sm:$0xff]
        %v2279 = vld [vmem:[%s9] sm:$0xff]
        %v2280 = vld [vmem:[%s9 + $0x8] sm:$0xff]
        %v2281 = vld [vmem:[%s9 + $0x10] sm:$0xff]
        %v2282 = vld [vmem:[%s9 + $0x18] sm:$0xff]
        %v2283 = vld [vmem:[%s9 + $0x20] sm:$0xff]
        %v2284 = vld [vmem:[%s9 + $0x28] sm:$0xff]
        %v2285 = vld [vmem:[%s9 + $0x30] sm:$0xff]
        %v2286 = vld [vmem:[%s9 + $0x38] sm:$0xff]
        %v2287 = vld [vmem:[%s9 + $0x40] sm:$0xff]
        %v2288 = vld [vmem:[%s9 + $0x48] sm:$0xff]
        %v2289 = vld [vmem:[%s9 + $0x50] sm:$0xff]
        %v2290 = vld [vmem:[%s9 + $0x58] sm:$0xff]
        %v2291 = vld [vmem:[%s9 + $0x60] sm:$0xff]
        %v2292 = vld [vmem:[%s9 + $0x68] sm:$0xff]
        %v2293 = vld [vmem:[%s9 + $0x70] sm:$0xff]
        %v2294 = vld [vmem:[%s9 + $0x78] sm:$0xff]
        %v2295 = vld [vmem:[%s9 + $0x80] sm:$0xff]
        %v2296 = vld [vmem:[%s9 + $0x88] sm:$0xff]
        %v2297 = vld [vmem:[%s9 + $0x90] sm:$0xff]
        %v2298 = vld [vmem:[%s9 + $0x98] sm:$0xff]
        %v2299 = vld [vmem:[%s9 + $0xa0] sm:$0xff]
        %v2300 = vld [vmem:[%s9 + $0xa8] sm:$0xff]
        %v2301 = vld [vmem:[%s9 + $0xb0] sm:$0xff]
        %v2302 = vld [vmem:[%s9 + $0xb8] sm:$0xff]
        %v2303 = vld [vmem:[%s9 + $0xc0] sm:$0xff]
        %v2304 = vld [vmem:[%s9 + $0xc8] sm:$0xff]
        %v2305 = vld [vmem:[%s9 + $0xd0] sm:$0xff]
        %v2306 = vld [vmem:[%s9 + $0xd8] sm:$0xff]
        %v2307 = vld [vmem:[%s9 + $0xe0] sm:$0xff]
        %v2308 = vld [vmem:[%s9 + $0xe8] sm:$0xff]
        %v2309 = vld [vmem:[%s9 + $0xf0] sm:$0xff]
        %v2310 = vld [vmem:[%s9 + $0xf8] sm:$0xff]
        %v2311 = vld [vmem:[%s9 + $0x100] sm:$0xff]
        %v2312 = vld [vmem:[%s9 + $0x108] sm:$0xff]
        %v2313 = vld [vmem:[%s9 + $0x110] sm:$0xff]
        %v2314 = vld [vmem:[%s9 + $0x118] sm:$0xff]
        %v2315 = vld [vmem:[%s9 + $0x120] sm:$0xff]
        %v2316 = vld [vmem:[%s9 + $0x128] sm:$0xff]
        %v2317 = vld [vmem:[%s9 + $0x130] sm:$0xff]
        %v2318 = vld [vmem:[%s9 + $0x138] sm:$0xff]
        %v2319 = vld [vmem:[%s9 + $0x140] sm:$0xff]
        %v2320 = vld [vmem:[%s9 + $0x148] sm:$0xff]
        %v2321 = vld [vmem:[%s9 + $0x150] sm:$0xff]
        %v2322 = vld [vmem:[%s9 + $0x158] sm:$0xff]
        %v2323 = vld [vmem:[%s9 + $0x160] sm:$0xff]
        %v2324 = vld [vmem:[%s9 + $0x168] sm:$0xff]
        %v2325 = vld [vmem:[%s9 + $0x170] sm:$0xff]
        %v2326 = vld [vmem:[%s9 + $0x178] sm:$0xff]
        %v2327 = vld [vmem:[#allocation5] sm:$0xfe]
        %v2328 = vld [vmem:[#allocation5 + $0x8] sm:$0xfe]
        %v2329 = vld [vmem:[#allocation5 + $0x10] sm:$0xfe]
        %v2330 = vld [vmem:[#allocation5 + $0x30] sm:$0x1]
        %v2331 = vld [vmem:[#allocation5 + $0x38] sm:$0x1]
        %v2332 = vld [vmem:[#allocation5 + $0x40] sm:$0x1]
        %s2333 = scalar_lea.vmem %s9, 384
        %v2334 = vld [vmem:[%s2333] sm:$0xff]
        %v2335 = vld [vmem:[%s2333 + $0x8] sm:$0xff]
        %v2336 = vld [vmem:[%s2333 + $0x10] sm:$0xff]
        %v2337 = vld [vmem:[%s2333 + $0x18] sm:$0xff]
        %v2338 = vld [vmem:[%s2333 + $0x20] sm:$0xff]
        %v2339 = vld [vmem:[%s2333 + $0x28] sm:$0xff]
        %v2340 = vld [vmem:[%s2333 + $0x30] sm:$0xff]
        %v2341 = vld [vmem:[%s2333 + $0x38] sm:$0xff]
        %v2342 = vld [vmem:[%s2333 + $0x40] sm:$0xff]
        %v2343 = vld [vmem:[%s2333 + $0x48] sm:$0xff]
        %v2344 = vld [vmem:[%s2333 + $0x50] sm:$0xff]
        %v2345 = vld [vmem:[%s2333 + $0x58] sm:$0xff]
        %v2346 = vld [vmem:[%s2333 + $0x60] sm:$0xff]
        %v2347 = vld [vmem:[%s2333 + $0x68] sm:$0xff]
        %v2348 = vld [vmem:[%s2333 + $0x70] sm:$0xff]
        %v2349 = vld [vmem:[%s2333 + $0x78] sm:$0xff]
        %v2350 = vld [vmem:[%s2333 + $0x80] sm:$0xff]
        %v2351 = vld [vmem:[%s2333 + $0x88] sm:$0xff]
        %v2352 = vld [vmem:[%s2333 + $0x90] sm:$0xff]
        %v2353 = vld [vmem:[%s2333 + $0x98] sm:$0xff]
        %v2354 = vld [vmem:[%s2333 + $0xa0] sm:$0xff]
        %v2355 = vld [vmem:[%s2333 + $0xa8] sm:$0xff]
        %v2356 = vld [vmem:[%s2333 + $0xb0] sm:$0xff]
        %v2357 = vld [vmem:[%s2333 + $0xb8] sm:$0xff]
        %v2358 = vld [vmem:[%s2333 + $0xc0] sm:$0xff]
        %v2359 = vld [vmem:[%s2333 + $0xc8] sm:$0xff]
        %v2360 = vld [vmem:[%s2333 + $0xd0] sm:$0xff]
        %v2361 = vld [vmem:[%s2333 + $0xd8] sm:$0xff]
        %v2362 = vld [vmem:[%s2333 + $0xe0] sm:$0xff]
        %v2363 = vld [vmem:[%s2333 + $0xe8] sm:$0xff]
        %v2364 = vld [vmem:[%s2333 + $0xf0] sm:$0xff]
        %v2365 = vld [vmem:[%s2333 + $0xf8] sm:$0xff]
        %v2366 = vld [vmem:[%s2333 + $0x100] sm:$0xff]
        %v2367 = vld [vmem:[%s2333 + $0x108] sm:$0xff]
        %v2368 = vld [vmem:[%s2333 + $0x110] sm:$0xff]
        %v2369 = vld [vmem:[%s2333 + $0x118] sm:$0xff]
        %v2370 = vld [vmem:[%s2333 + $0x120] sm:$0xff]
        %v2371 = vld [vmem:[%s2333 + $0x128] sm:$0xff]
        %v2372 = vld [vmem:[%s2333 + $0x130] sm:$0xff]
        %v2373 = vld [vmem:[%s2333 + $0x138] sm:$0xff]
        %v2374 = vld [vmem:[%s2333 + $0x140] sm:$0xff]
        %v2375 = vld [vmem:[%s2333 + $0x148] sm:$0xff]
        %v2376 = vld [vmem:[%s2333 + $0x150] sm:$0xff]
        %v2377 = vld [vmem:[%s2333 + $0x158] sm:$0xff]
        %v2378 = vld [vmem:[%s2333 + $0x160] sm:$0xff]
        %v2379 = vld [vmem:[%s2333 + $0x168] sm:$0xff]
        %v2380 = vld [vmem:[%s2333 + $0x170] sm:$0xff]
        %v2381 = vld [vmem:[%s2333 + $0x178] sm:$0xff]
        %vm2391 = vcmask 1046528
        %v2392 = vrot.slane %v2327, 1
        %v2393 = vrot.slane %v2276, 1
        %v2394 = vsel %vm2391, %v2392, %v2393
        %v2395 = vrot.slane %v2328, 1
        %v2396 = vrot.slane %v2277, 1
        %v2397 = vsel %vm2391, %v2395, %v2396
        %v2398 = vrot.slane %v2329, 1
        %v2399 = vrot.slane %v2278, 1
        %v2400 = vsel %vm2391, %v2398, %v2399
        %v2401 = vrot.slane %v2330, 1
        %v2402 = vsel %vm2391, %v2393, %v2401
        %v2403 = vrot.slane %v2331, 1
        %v2404 = vsel %vm2391, %v2396, %v2403
        %v2405 = vrot.slane %v2332, 1
        %v2406 = vsel %vm2391, %v2399, %v2405
        %2413 = vmatpush.msra.mxu0 %v2349
        %2414 = vmatpush.msra.mxu0 %v2348
        %2415 = vmatpush.msra.mxu0 %v2347
        %2416 = vmatpush.msra.mxu0 %v2346
        %2417 = vmatpush.msra.mxu0 %v2345
        %2418 = vmatpush.msra.mxu0 %v2344
        %2419 = vmatpush.msra.mxu0 %v2343
        %2420 = vmatpush.msra.mxu0 %v2342
        %2421 = vmatpush.msra.mxu0 %v2341
        %2422 = vmatpush.msra.mxu0 %v2340
        %2423 = vmatpush.msra.mxu0 %v2339
        %2424 = vmatpush.msra.mxu0 %v2338
        %2425 = vmatpush.msra.mxu0 %v2337
        %2426 = vmatpush.msra.mxu0 %v2336
        %2427 = vmatpush.msra.mxu0 %v2335
        %2428 = vmatpush.msra.mxu0 %v2334
        %2429 = vmatmul.f32.gmra.mxu0 %v2394
        %v2430 = vpop.f32.mrf.mxu0
        %v2431 = vadd.f32 0.0, %v2430
        %2432 = vmatmul.f32.gmra.mxu0 %v2402
        %v2433 = vpop.f32.mrf.mxu0
        %v2434 = vadd.f32 0.0, %v2433
        %2435 = vdwg.mxu0
        %2436 = vmatpush.msra.mxu0 %v2365
        %2437 = vmatpush.msra.mxu0 %v2364
        %2438 = vmatpush.msra.mxu0 %v2363
        %2439 = vmatpush.msra.mxu0 %v2362
        %2440 = vmatpush.msra.mxu0 %v2361
        %2441 = vmatpush.msra.mxu0 %v2360
        %2442 = vmatpush.msra.mxu0 %v2359
        %2443 = vmatpush.msra.mxu0 %v2358
        %2444 = vmatpush.msra.mxu0 %v2357
        %2445 = vmatpush.msra.mxu0 %v2356
        %2446 = vmatpush.msra.mxu0 %v2355
        %2447 = vmatpush.msra.mxu0 %v2354
        %2448 = vmatpush.msra.mxu0 %v2353
        %2449 = vmatpush.msra.mxu0 %v2352
        %2450 = vmatpush.msra.mxu0 %v2351
        %2451 = vmatpush.msra.mxu0 %v2350
        %2452 = vmatmul.f32.gmra.mxu0 %v2397
        %v2453 = vpop.f32.mrf.mxu0
        %v2454 = vadd.f32 %v2431, %v2453
        %2455 = vmatmul.f32.gmra.mxu0 %v2404
        %v2456 = vpop.f32.mrf.mxu0
        %v2457 = vadd.f32 %v2434, %v2456
        %2458 = vdwg.mxu0
        %2459 = vmatpush.msra.mxu0 %v2381
        %2460 = vmatpush.msra.mxu0 %v2380
        %2461 = vmatpush.msra.mxu0 %v2379
        %2462 = vmatpush.msra.mxu0 %v2378
        %2463 = vmatpush.msra.mxu0 %v2377
        %2464 = vmatpush.msra.mxu0 %v2376
        %2465 = vmatpush.msra.mxu0 %v2375
        %2466 = vmatpush.msra.mxu0 %v2374
        %2467 = vmatpush.msra.mxu0 %v2373
        %2468 = vmatpush.msra.mxu0 %v2372
        %2469 = vmatpush.msra.mxu0 %v2371
        %2470 = vmatpush.msra.mxu0 %v2370
        %2471 = vmatpush.msra.mxu0 %v2369
        %2472 = vmatpush.msra.mxu0 %v2368
        %2473 = vmatpush.msra.mxu0 %v2367
        %2474 = vmatpush.msra.mxu0 %v2366
        %2475 = vmatmul.f32.gmra.mxu0 %v2400
        %v2476 = vpop.f32.mrf.mxu0
        %v2477 = vadd.f32 %v2454, %v2476
        %2478 = vmatmul.f32.gmra.mxu0 %v2406
        %v2479 = vpop.f32.mrf.mxu0
        %v2480 = vadd.f32 %v2457, %v2479
        %2481 = vdwg.mxu0
        %2482 = vmatpush.msra.mxu0 %v2294
        %2483 = vmatpush.msra.mxu0 %v2293
        %2484 = vmatpush.msra.mxu0 %v2292
        %2485 = vmatpush.msra.mxu0 %v2291
        %2486 = vmatpush.msra.mxu0 %v2290
        %2487 = vmatpush.msra.mxu0 %v2289
        %2488 = vmatpush.msra.mxu0 %v2288
        %2489 = vmatpush.msra.mxu0 %v2287
        %2490 = vmatpush.msra.mxu0 %v2286
        %2491 = vmatpush.msra.mxu0 %v2285
        %2492 = vmatpush.msra.mxu0 %v2284
        %2493 = vmatpush.msra.mxu0 %v2283
        %2494 = vmatpush.msra.mxu0 %v2282
        %2495 = vmatpush.msra.mxu0 %v2281
        %2496 = vmatpush.msra.mxu0 %v2280
        %2497 = vmatpush.msra.mxu0 %v2279
        %2498 = vmatmul.f32.gmra.mxu0 %v2273
        %v2499 = vpop.f32.mrf.mxu0
        %v2500 = vadd.f32 %v2477, %v2499
        %2501 = vmatmul.f32.gmra.mxu0 %v2276
        %v2502 = vpop.f32.mrf.mxu0
        %v2503 = vadd.f32 %v2480, %v2502
        %2504 = vdwg.mxu0
        %2505 = vmatpush.msra.mxu0 %v2310
        %2506 = vmatpush.msra.mxu0 %v2309
        %2507 = vmatpush.msra.mxu0 %v2308
        %2508 = vmatpush.msra.mxu0 %v2307
        %2509 = vmatpush.msra.mxu0 %v2306
        %2510 = vmatpush.msra.mxu0 %v2305
        %2511 = vmatpush.msra.mxu0 %v2304
        %2512 = vmatpush.msra.mxu0 %v2303
        %2513 = vmatpush.msra.mxu0 %v2302
        %2514 = vmatpush.msra.mxu0 %v2301
        %2515 = vmatpush.msra.mxu0 %v2300
        %2516 = vmatpush.msra.mxu0 %v2299
        %2517 = vmatpush.msra.mxu0 %v2298
        %2518 = vmatpush.msra.mxu0 %v2297
        %2519 = vmatpush.msra.mxu0 %v2296
        %2520 = vmatpush.msra.mxu0 %v2295
        %2521 = vmatmul.f32.gmra.mxu0 %v2274
        %v2522 = vpop.f32.mrf.mxu0
        %v2523 = vadd.f32 %v2500, %v2522
        %2524 = vmatmul.f32.gmra.mxu0 %v2277
        %v2525 = vpop.f32.mrf.mxu0
        %v2526 = vadd.f32 %v2503, %v2525
        %2527 = vdwg.mxu0
        %2528 = vmatpush.msra.mxu0 %v2326
        %2529 = vmatpush.msra.mxu0 %v2325
        %2530 = vmatpush.msra.mxu0 %v2324
        %2531 = vmatpush.msra.mxu0 %v2323
        %2532 = vmatpush.msra.mxu0 %v2322
        %2533 = vmatpush.msra.mxu0 %v2321
        %2534 = vmatpush.msra.mxu0 %v2320
        %2535 = vmatpush.msra.mxu0 %v2319
        %2536 = vmatpush.msra.mxu0 %v2318
        %2537 = vmatpush.msra.mxu0 %v2317
        %2538 = vmatpush.msra.mxu0 %v2316
        %2539 = vmatpush.msra.mxu0 %v2315
        %2540 = vmatpush.msra.mxu0 %v2314
        %2541 = vmatpush.msra.mxu0 %v2313
        %2542 = vmatpush.msra.mxu0 %v2312
        %2543 = vmatpush.msra.mxu0 %v2311
        %2544 = vmatmul.f32.gmra.mxu0 %v2275
        %v2545 = vpop.f32.mrf.mxu0
        %v2546 = vadd.f32 %v2523, %v2545
        %2547 = vmatmul.f32.gmra.mxu0 %v2278
        %v2548 = vpop.f32.mrf.mxu0
        %v2549 = vadd.f32 %v2526, %v2548
        %2550 = vdwg.mxu0
        %v2551 = vld [vmem:[#allocation5] sm:$0xfc]
        %v2552 = vld [vmem:[#allocation5 + $0x8] sm:$0xfc]
        %v2553 = vld [vmem:[#allocation5 + $0x10] sm:$0xfc]
        %v2554 = vld [vmem:[#allocation5 + $0x30] sm:$0x3]
        %v2555 = vld [vmem:[#allocation5 + $0x38] sm:$0x3]
        %v2556 = vld [vmem:[#allocation5 + $0x40] sm:$0x3]
        %s2557 = scalar_lea.vmem %s9, 768
        %v2558 = vld [vmem:[%s2557] sm:$0xff]
        %v2559 = vld [vmem:[%s2557 + $0x8] sm:$0xff]
        %v2560 = vld [vmem:[%s2557 + $0x10] sm:$0xff]
        %v2561 = vld [vmem:[%s2557 + $0x18] sm:$0xff]
        %v2562 = vld [vmem:[%s2557 + $0x20] sm:$0xff]
        %v2563 = vld [vmem:[%s2557 + $0x28] sm:$0xff]
        %v2564 = vld [vmem:[%s2557 + $0x30] sm:$0xff]
        %v2565 = vld [vmem:[%s2557 + $0x38] sm:$0xff]
        %v2566 = vld [vmem:[%s2557 + $0x40] sm:$0xff]
        %v2567 = vld [vmem:[%s2557 + $0x48] sm:$0xff]
        %v2568 = vld [vmem:[%s2557 + $0x50] sm:$0xff]
        %v2569 = vld [vmem:[%s2557 + $0x58] sm:$0xff]
        %v2570 = vld [vmem:[%s2557 + $0x60] sm:$0xff]
        %v2571 = vld [vmem:[%s2557 + $0x68] sm:$0xff]
        %v2572 = vld [vmem:[%s2557 + $0x70] sm:$0xff]
        %v2573 = vld [vmem:[%s2557 + $0x78] sm:$0xff]
        %v2574 = vld [vmem:[%s2557 + $0x80] sm:$0xff]
        %v2575 = vld [vmem:[%s2557 + $0x88] sm:$0xff]
        %v2576 = vld [vmem:[%s2557 + $0x90] sm:$0xff]
        %v2577 = vld [vmem:[%s2557 + $0x98] sm:$0xff]
        %v2578 = vld [vmem:[%s2557 + $0xa0] sm:$0xff]
        %v2579 = vld [vmem:[%s2557 + $0xa8] sm:$0xff]
        %v2580 = vld [vmem:[%s2557 + $0xb0] sm:$0xff]
        %v2581 = vld [vmem:[%s2557 + $0xb8] sm:$0xff]
        %v2582 = vld [vmem:[%s2557 + $0xc0] sm:$0xff]
        %v2583 = vld [vmem:[%s2557 + $0xc8] sm:$0xff]
        %v2584 = vld [vmem:[%s2557 + $0xd0] sm:$0xff]
        %v2585 = vld [vmem:[%s2557 + $0xd8] sm:$0xff]
        %v2586 = vld [vmem:[%s2557 + $0xe0] sm:$0xff]
        %v2587 = vld [vmem:[%s2557 + $0xe8] sm:$0xff]
        %v2588 = vld [vmem:[%s2557 + $0xf0] sm:$0xff]
        %v2589 = vld [vmem:[%s2557 + $0xf8] sm:$0xff]
        %v2590 = vld [vmem:[%s2557 + $0x100] sm:$0xff]
        %v2591 = vld [vmem:[%s2557 + $0x108] sm:$0xff]
        %v2592 = vld [vmem:[%s2557 + $0x110] sm:$0xff]
        %v2593 = vld [vmem:[%s2557 + $0x118] sm:$0xff]
        %v2594 = vld [vmem:[%s2557 + $0x120] sm:$0xff]
        %v2595 = vld [vmem:[%s2557 + $0x128] sm:$0xff]
        %v2596 = vld [vmem:[%s2557 + $0x130] sm:$0xff]
        %v2597 = vld [vmem:[%s2557 + $0x138] sm:$0xff]
        %v2598 = vld [vmem:[%s2557 + $0x140] sm:$0xff]
        %v2599 = vld [vmem:[%s2557 + $0x148] sm:$0xff]
        %v2600 = vld [vmem:[%s2557 + $0x150] sm:$0xff]
        %v2601 = vld [vmem:[%s2557 + $0x158] sm:$0xff]
        %v2602 = vld [vmem:[%s2557 + $0x160] sm:$0xff]
        %v2603 = vld [vmem:[%s2557 + $0x168] sm:$0xff]
        %v2604 = vld [vmem:[%s2557 + $0x170] sm:$0xff]
        %v2605 = vld [vmem:[%s2557 + $0x178] sm:$0xff]
        %vm2612 = vcmask 1045504
        %v2613 = vrot.slane %v2551, 2
        %v2614 = vrot.slane %v2276, 2
        %v2615 = vsel %vm2612, %v2613, %v2614
        %v2616 = vrot.slane %v2552, 2
        %v2617 = vrot.slane %v2277, 2
        %v2618 = vsel %vm2612, %v2616, %v2617
        %v2619 = vrot.slane %v2553, 2
        %v2620 = vrot.slane %v2278, 2
        %v2621 = vsel %vm2612, %v2619, %v2620
        %v2622 = vrot.slane %v2554, 2
        %v2623 = vsel %vm2612, %v2614, %v2622
        %v2624 = vrot.slane %v2555, 2
        %v2625 = vsel %vm2612, %v2617, %v2624
        %v2626 = vrot.slane %v2556, 2
        %v2627 = vsel %vm2612, %v2620, %v2626
        %2634 = vmatpush.msra.mxu0 %v2573
        %2635 = vmatpush.msra.mxu0 %v2572
        %2636 = vmatpush.msra.mxu0 %v2571
        %2637 = vmatpush.msra.mxu0 %v2570
        %2638 = vmatpush.msra.mxu0 %v2569
        %2639 = vmatpush.msra.mxu0 %v2568
        %2640 = vmatpush.msra.mxu0 %v2567
        %2641 = vmatpush.msra.mxu0 %v2566
        %2642 = vmatpush.msra.mxu0 %v2565
        %2643 = vmatpush.msra.mxu0 %v2564
        %2644 = vmatpush.msra.mxu0 %v2563
        %2645 = vmatpush.msra.mxu0 %v2562
        %2646 = vmatpush.msra.mxu0 %v2561
        %2647 = vmatpush.msra.mxu0 %v2560
        %2648 = vmatpush.msra.mxu0 %v2559
        %2649 = vmatpush.msra.mxu0 %v2558
        %2650 = vmatmul.f32.gmra.mxu0 %v2615
        %v2651 = vpop.f32.mrf.mxu0
        %v2652 = vadd.f32 0.0, %v2651
        %2653 = vmatmul.f32.gmra.mxu0 %v2623
        %v2654 = vpop.f32.mrf.mxu0
        %v2655 = vadd.f32 0.0, %v2654
        %2656 = vdwg.mxu0
        %2657 = vmatpush.msra.mxu0 %v2589
        %2658 = vmatpush.msra.mxu0 %v2588
        %2659 = vmatpush.msra.mxu0 %v2587
        %2660 = vmatpush.msra.mxu0 %v2586
        %2661 = vmatpush.msra.mxu0 %v2585
        %2662 = vmatpush.msra.mxu0 %v2584
        %2663 = vmatpush.msra.mxu0 %v2583
        %2664 = vmatpush.msra.mxu0 %v2582
        %2665 = vmatpush.msra.mxu0 %v2581
        %2666 = vmatpush.msra.mxu0 %v2580
        %2667 = vmatpush.msra.mxu0 %v2579
        %2668 = vmatpush.msra.mxu0 %v2578
        %2669 = vmatpush.msra.mxu0 %v2577
        %2670 = vmatpush.msra.mxu0 %v2576
        %2671 = vmatpush.msra.mxu0 %v2575
        %2672 = vmatpush.msra.mxu0 %v2574
        %2673 = vmatmul.f32.gmra.mxu0 %v2618
        %v2674 = vpop.f32.mrf.mxu0
        %v2675 = vadd.f32 %v2652, %v2674
        %2676 = vmatmul.f32.gmra.mxu0 %v2625
        %v2677 = vpop.f32.mrf.mxu0
        %v2678 = vadd.f32 %v2655, %v2677
        %2679 = vdwg.mxu0
        %2680 = vmatpush.msra.mxu0 %v2605
        %2681 = vmatpush.msra.mxu0 %v2604
        %2682 = vmatpush.msra.mxu0 %v2603
        %2683 = vmatpush.msra.mxu0 %v2602
        %2684 = vmatpush.msra.mxu0 %v2601
        %2685 = vmatpush.msra.mxu0 %v2600
        %2686 = vmatpush.msra.mxu0 %v2599
        %2687 = vmatpush.msra.mxu0 %v2598
        %2688 = vmatpush.msra.mxu0 %v2597
        %2689 = vmatpush.msra.mxu0 %v2596
        %2690 = vmatpush.msra.mxu0 %v2595
        %2691 = vmatpush.msra.mxu0 %v2594
        %2692 = vmatpush.msra.mxu0 %v2593
        %2693 = vmatpush.msra.mxu0 %v2592
        %2694 = vmatpush.msra.mxu0 %v2591
        %2695 = vmatpush.msra.mxu0 %v2590
        %2696 = vmatmul.f32.gmra.mxu0 %v2621
        %v2697 = vpop.f32.mrf.mxu0
        %v2698 = vadd.f32 %v2675, %v2697
        %2699 = vmatmul.f32.gmra.mxu0 %v2627
        %v2700 = vpop.f32.mrf.mxu0
        %v2701 = vadd.f32 %v2678, %v2700
        %2702 = vdwg.mxu0
        %v2703 = vadd.f32 %v2546, %v2698
        %v2704 = vadd.f32 %v2549, %v2701
        %v2705 = vld [vmem:[#allocation16] sm:$0x1]
        %v2707 = vperm.slane %v2705, 0
        %v2709 = vadd.f32 %v2703, %v2707
        %v2710 = vadd.f32 %v2704, %v2707
        %vm2711 = vcmask 523264
        %2712 = vst.msk [vmem:[%s531] sm:$0xff] %vm2711, %v2709
        %2713 = vst.msk [vmem:[%s531 + $0x8] sm:$0xff] %vm2711, %v2710
        %p2714 = scmp.lt.s32.totalorder %s26, 1
        %s2715 = scalar_select %p2714, %s26, 1
        %s2716 = smul.addr %s2715, 2
        %s2717 = smul.addr %s2716, 8
        %s2718 = scalar_lea.vmem %s11, %s2717
        // Predicated region
        $region93: #{mff_forward_pallas.1} parent=63 // pred_check
          %p2719 = pneg %p290
        $region94: #{mff_forward_pallas.1} parent=63 // pred_check_branch
          %2721 = sbr.rel (%p2719) target = $region96
        $region95: #{mff_forward_pallas.1} parent=63 // pred_region
          _
        $region96: #{mff_forward_pallas.1} parent=63 // pred_fallthru
          _
      $region64: #{mff_forward_pallas.1} parent=5 // pred_fallthru
        _
      %p2722 = scmp.le.s32.totalorder 2, %s21
      // Predicated region
      $region97: #{mff_forward_pallas.1} parent=5 // pred_check
        %p2723 = pneg %p2722
      $region98: #{mff_forward_pallas.1} parent=5 // pred_check_branch
        %2725 = sbr.rel (%p2723) target = $region100
      $region99: #{mff_forward_pallas.1} parent=5 // pred_region
        %s2726 = ssub.s32 %s21, 2
        // Predicated region
        $region101: #{mff_forward_pallas.1} parent=99 // pred_check
          %p2727 = pneg %p296
        $region102: #{mff_forward_pallas.1} parent=99 // pred_check_branch
          %2729 = sbr.rel (%p2727) target = $region104
        $region103: #{mff_forward_pallas.1} parent=99 // pred_region
          %p2730 = scmp.lt.s32.totalorder %s27, 1
          %s2731 = scalar_select %p2730, %s27, 1
          %s2732 = smul.addr %s2731, 2
          %s2733 = smul.addr %s2732, 8
          %s2734 = scalar_lea.vmem %s11, %s2733
        $region104: #{mff_forward_pallas.1} parent=99 // pred_fallthru
          _
      $region100: #{mff_forward_pallas.1} parent=5 // pred_fallthru
        _
    $region6: #{mff_forward_pallas.1} parent=1 // loop_footer
      %s25 = sadd.s32 1, %s21
    $region7: #{mff_forward_pallas.1} parent=1 // loop_footer_branch
      %20 = sbr.rel target = $region3
    $region8: #{mff_forward_pallas.1} parent=1 // loop_exit
      _
    %2735 = vsyncpa [#allocation7], 1
    %s2736 = scalar_lea.sflag [#allocation7], 1
    %2737 = vsyncpa %s2736, 1
    %2738 = vsyncpa [#allocation9], 1
    %2739 = vsyncpa [#allocation12], 1
    %2740 = vsyncpa [#allocation15], 1

</llo_original>
